<compile_context>
chip_gen: v7x
topology: tpu7x:2x2x1
jax: 0.10.0
libtpu: 0.0.40
codegen_flags: <defaults>
</compile_context>

<pallas_src>
import functools

import jax
import jax.numpy as jnp
import numpy as np
from jax.experimental import pallas as pl
from jax.experimental.pallas import tpu as pltpu


# ------------------------------- helpers ------------------------------------

def _pick_row_tile(n, target=256):
    """Largest sublane-friendly row tile <= target that divides n (falls back to n)."""
    for t in (target, 128, 64, 32, 16, 8):
        if t <= n and n % t == 0:
            return t
    return n


def _nbytes(shape, dtype):
    return int(np.prod(shape)) * jnp.dtype(dtype).itemsize


def _vmem_limit(block_bytes):
    """Scoped VMEM budget: double-buffered blocks + headroom, capped at v7x physical (64 MiB)."""
    return int(min(64 << 20, max(2 * block_bytes + (8 << 20), 32 << 20)))


# ----------------------------- Pallas kernels -------------------------------

def _qkv_prep_kernel(x_ref, ln1_g_ref, ln1_b_ref, w_qkv_ref, b_qkv_ref,
                     lnh_g_ref, lnh_b_ref, q_ref, kv_ref,
                     *, n_heads, head_dim):
    """LN1 -> QKV projection -> per-head LN(q, k) for one (1, tm, D) row tile."""
    x = x_ref[0]                                           # (tm, D) f32
    D = x.shape[-1]

    mu = jnp.mean(x, axis=-1, keepdims=True)
    xc = x - mu
    var = jnp.mean(xc * xc, axis=-1, keepdims=True)
    h1 = xc * jax.lax.rsqrt(var + 1e-5) * ln1_g_ref[...] + ln1_b_ref[...]

    # bf16 MXU operands, f32 accumulation
    qkv = jnp.dot(h1.astype(jnp.bfloat16), w_qkv_ref[...],
                  preferred_element_type=jnp.float32) + b_qkv_ref[...]

    lnh_g = lnh_g_ref[...]                                 # (1, Dh)
    lnh_b = lnh_b_ref[...]

    def head_ln(z):                                        # LayerNorm over head_dim (f32)
        m = jnp.mean(z, axis=-1, keepdims=True)
        zc = z - m
        v = jnp.mean(zc * zc, axis=-1, keepdims=True)
        return zc * jax.lax.rsqrt(v + 1e-5) * lnh_g + lnh_b

    for h in range(n_heads):                               # static, small head count
        lo = h * head_dim
        q_ref[0, :, lo:lo + head_dim] = head_ln(
            qkv[:, lo:lo + head_dim]).astype(jnp.bfloat16)
        kv_ref[0, :, lo:lo + head_dim] = head_ln(
            qkv[:, D + lo:D + lo + head_dim]).astype(jnp.bfloat16)
    kv_ref[0, :, D:] = qkv[:, 2 * D:].astype(jnp.bfloat16)           # V half


def _attn_mlp_kernel(x_ref, q_ref, kv_ref, cen_ref,
                     coef_ref, diag_ref, imp_ref, cc_ref,
                     w_out_ref, b_out_ref, ln2_g_ref, ln2_b_ref,
                     w1_ref, b1_ref, w2_ref, b2_ref,
                     o_ref, comb_ref,
                     *, n_heads, n_splats, head_dim, block_q):
    """GSA splat attention + out_proj + residual + fused MLP for one (1, tq, D) query tile."""
    x = x_ref[0]                                           # (tq, D) f32 residual input
    tq, D = x.shape
    T = kv_ref.shape[1]

    # diagonal mask in *global* coordinates, built once per grid step
    qi = pl.program_id(1)
    row = qi * block_q + jax.lax.broadcasted_iota(jnp.int32, (tq, T), 0)
    col = jax.lax.broadcasted_iota(jnp.int32, (tq, T), 1)
    diag_mask = row == col

    dn = (((1,), (1,)), ((), ()))                          # contract last dims (no transpose)

    for h in range(n_heads):                               # static, small head count
        lo = h * head_dim
        q_h = q_ref[0, :, lo:lo + head_dim]                # (tq, Dh) bf16 (head-LN'd)
        k_h = kv_ref[0, :, lo:lo + head_dim]               # (T, Dh)  bf16 (head-LN'd)
        v_h = kv_ref[0, :, D + lo:D + lo + head_dim]       # (T, Dh)  bf16
        c_h = cen_ref[h]                                   # (S, Dh)  bf16

        # hoist the QK matmul out of the splat loop: (q-c)(k-c)^T = qk^T - qc - kc + c.c
        qk = jax.lax.dot_general(q_h, k_h, dn, preferred_element_type=jnp.float32)  # (tq, T)
        qc = jax.lax.dot_general(q_h, c_h, dn, preferred_element_type=jnp.float32)  # (tq, S)
        kc = jax.lax.dot_general(c_h, k_h, dn, preferred_element_type=jnp.float32)  # (S, T)

        acc = jnp.zeros((tq, head_dim), jnp.float32)
        for s in range(n_splats):                          # static, small splat count
            coef = coef_ref[h, s]                          # amp / scale^2     (SMEM scalar)
            dg = diag_ref[h, s]                            # 0.01 * amp        (SMEM scalar)
            imp = imp_ref[h, s]                            # splat importance  (SMEM scalar)
            cc = cc_ref[h, s]                              # center . center   (SMEM scalar)
            att = coef * (qk - qc[:, s:s + 1] - kc[s:s + 1, :] + cc)
            att = jnp.where(diag_mask, att + dg, att)      # one select, no f32 eye multiply
            m = jnp.max(att, axis=-1, keepdims=True)       # softmax in f32
            e = jnp.exp(att - m)
            denom = jnp.sum(e, axis=-1, keepdims=True)
            w = imp * pl.reciprocal(denom, approx=True)    # EUP slot; fold norm + importance
            acc = acc + w * jnp.dot(e.astype(jnp.bfloat16), v_h,
                                    preferred_element_type=jnp.float32)
        comb_ref[:, lo:lo + head_dim] = acc                # direct column write, no concat

    attn_out = jnp.dot(comb_ref[...].astype(jnp.bfloat16), w_out_ref[...],
                       preferred_element_type=jnp.float32) + b_out_ref[...]
    y = x + attn_out                                       # dropout = identity

    # ---- MLP branch fused into the epilogue (LN2 -> W1 -> GELU -> W2 -> residual) ----
    mu = jnp.mean(y, axis=-1, keepdims=True)
    yc = y - mu
    var = jnp.mean(yc * yc, axis=-1, keepdims=True)
    h2 = yc * jax.lax.rsqrt(var + 1e-5) * ln2_g_ref[...] + ln2_b_ref[...]
    mid = jnp.dot(h2.astype(jnp.bfloat16), w1_ref[...],
                  preferred_element_type=jnp.float32) + b1_ref[...]
    # TODO(synk): PyTorch nn.GELU() is exact-erf; tanh approximation differs by <~3e-4 absolute.
    c0 = 0.7978845608028654                                # sqrt(2/pi)
    g = 0.5 * mid * (1.0 + jnp.tanh(c0 * (mid + 0.044715 * mid * mid * mid)))
    mlp_out = jnp.dot(g.astype(jnp.bfloat16), w2_ref[...],
                      preferred_element_type=jnp.float32) + b2_ref[...]
    o_ref[0] = y + mlp_out                                 # dropout = identity


# ------------------------------ forward pass --------------------------------

def gsa_transformer_block(x, p):
    B, T, D = x.shape
    H, S, Dh = p["centers"].shape
    Dm = p["w1"].shape[1]
    bf16 = jnp.bfloat16
    f32 = jnp.float32

    # tiny (H,S) scalar precomputes done once in XLA glue
    scale = jnp.clip(jnp.exp(p["log_scale"]), 1e-4, 10.0)
    amp = p["amplitude"]
    coef = (amp / (scale * scale)).astype(f32)             # amp / scale^2
    diag = (0.01 * amp).astype(f32)
    imp = jax.nn.softmax(amp, axis=-1).astype(f32)         # splat importance
    cc = jnp.sum(p["centers"] * p["centers"], axis=-1).astype(f32)

    # bf16 weight copies: MXU-native operands, half the resident VMEM / HBM traffic
    w_qkv = p["w_qkv"].astype(bf16)
    w_out = p["w_out"].astype(bf16)
    w1 = p["w1"].astype(bf16)
    w2 = p["w2"].astype(bf16)
    centers = p["centers"].astype(bf16)

    ln1_g = p["ln1_g"].reshape(1, D)
    ln1_b = p["ln1_b"].reshape(1, D)
    ln2_g = p["ln2_g"].reshape(1, D)
    ln2_b = p["ln2_b"].reshape(1, D)
    lnh_g = p["lnh_g"].reshape(1, Dh)
    lnh_b = p["lnh_b"].reshape(1, Dh)
    b_qkv = p["b_qkv"].reshape(1, 3 * D)
    b_out = p["b_out"].reshape(1, D)
    b1 = p["b1"].reshape(1, Dm)
    b2 = p["b2"].reshape(1, D)

    def full2(a):      # grid-invariant whole-array spec (2-D grid)
        return pl.BlockSpec(a.shape, lambda b, i: (0, 0))

    def full3(a):
        return pl.BlockSpec(a.shape, lambda b, i: (0, 0, 0))

    smem = pl.BlockSpec(memory_space=pltpu.MemorySpace.SMEM)

    # ---- kernel 1: LN1 + QKV + per-head LN(q, k) ----
    tm = _pick_row_tile(T)
    prep_bytes = (_nbytes((1, tm, D), f32) + 2 * _nbytes((1, D), f32)
                  + _nbytes((D, 3 * D), bf16) + _nbytes((1, 3 * D), f32)
                  + 2 * _nbytes((1, Dh), f32)
                  + _nbytes((1, tm, D), bf16) + _nbytes((1, tm, 2 * D), bf16)
                  + _nbytes((tm, 3 * D), f32))             # qkv intermediate
    q_ln, kv = pl.pallas_call(
        functools.partial(_qkv_prep_kernel, n_heads=H, head_dim=Dh),
        out_shape=(jax.ShapeDtypeStruct((B, T, D), bf16),
                   jax.ShapeDtypeStruct((B, T, 2 * D), bf16)),
        grid=(B, T // tm),
        in_specs=[
            pl.BlockSpec((1, tm, D), lambda b, i: (b, i, 0)),
            full2(ln1_g), full2(ln1_b), full2(w_qkv), full2(b_qkv),
            full2(lnh_g), full2(lnh_b),
        ],
        out_specs=(pl.BlockSpec((1, tm, D), lambda b, i: (b, i, 0)),
                   pl.BlockSpec((1, tm, 2 * D), lambda b, i: (b, i, 0))),
        compiler_params=pltpu.CompilerParams(
            dimension_semantics=("parallel", "parallel"),
            vmem_limit_bytes=_vmem_limit(prep_bytes)),
    )(x, ln1_g, ln1_b, w_qkv, b_qkv, lnh_g, lnh_b)

    # ---- kernel 2: splat attention + out_proj + residual + fused MLP ----
    tq = _pick_row_tile(T)
    attn_bytes = (_nbytes((1, tq, D), f32) + _nbytes((1, tq, D), bf16)
                  + _nbytes((1, T, 2 * D), bf16) + _nbytes((H, S, Dh), bf16)
                  + _nbytes((D, D), bf16) + _nbytes((1, D), f32)
                  + 2 * _nbytes((1, D), f32)
                  + _nbytes((D, Dm), bf16) + _nbytes((1, Dm), f32)
                  + _nbytes((Dm, D), bf16) + _nbytes((1, D), f32)
                  + _nbytes((1, tq, D), f32)                # output tile
                  + _nbytes((tq, D), f32)                   # comb scratch
                  + 4 * _nbytes((tq, T), f32)               # score working buffers
                  + _nbytes((tq, Dm), f32))                 # GELU intermediate
    out = pl.pallas_call(
        functools.partial(_attn_mlp_kernel, n_heads=H, n_splats=S,
                          head_dim=Dh, block_q=tq),
        out_shape=jax.ShapeDtypeStruct((B, T, D), f32),
        grid=(B, T // tq),
        in_specs=[
            pl.BlockSpec((1, tq, D), lambda b, i: (b, i, 0)),      # x (residual)
            pl.BlockSpec((1, tq, D), lambda b, i: (b, i, 0)),      # q_ln tile
            pl.BlockSpec((1, T, 2 * D), lambda b, i: (b, 0, 0)),   # full K|V for batch b
            full3(centers),
            smem, smem, smem, smem,
            full2(w_out), full2(b_out), full2(ln2_g), full2(ln2_b),
            full2(w1), full2(b1), full2(w2), full2(b2),
        ],
        out_specs=pl.BlockSpec((1, tq, D), lambda b, i: (b, i, 0)),
        scratch_shapes=[pltpu.VMEM((tq, D), f32)],
        compiler_params=pltpu.CompilerParams(
            dimension_semantics=("parallel", "parallel"),
            vmem_limit_bytes=_vmem_limit(attn_bytes)),
    )(x, q_ln, kv, centers, coef, diag, imp, cc,
      w_out, b_out, ln2_g, ln2_b, w1, b1, w2, b2)
    return out


# --------------------------- pure-JAX reference ------------------------------

def reference_block(x, p):
    B, T, D = x.shape
    H, S, Dh = p["centers"].shape

    def ln(z, g, b):
        mu = jnp.mean(z, -1, keepdims=True)
        zc = z - mu
        var = jnp.mean(zc * zc, -1, keepdims=True)
        return zc * jax.lax.rsqrt(var + 1e-5) * g + b

    h1 = ln(x, p["ln1_g"], p["ln1_b"])
    qkv = h1 @ p["w_qkv"] + p["b_qkv"]
    q, k, v = jnp.split(qkv, 3, axis=-1)
    q = q.reshape(B, T, H, Dh).transpose(0, 2, 1, 3)
    k = k.reshape(B, T, H, Dh).transpose(0, 2, 1, 3)
    v = v.reshape(B, T, H, Dh).transpose(0, 2, 1, 3)
    q = ln(q, p["lnh_g"], p["lnh_b"])
    k = ln(k, p["lnh_g"], p["lnh_b"])

    scale = jnp.clip(jnp.exp(p["log_scale"]), 1e-4, 10.0)
    imp = jax.nn.softmax(p["amplitude"], axis=-1)
    eye = jnp.eye(T, dtype=jnp.float32)
    outs = []
    for h in range(H):
        acc = jnp.zeros((B, T, Dh), jnp.float32)
        for s in range(S):
            c = p["centers"][h, s]
            qs = (q[:, h] - c) / scale[h, s]
            ks = (k[:, h] - c) / scale[h, s]
            att = p["amplitude"][h, s] * jnp.einsum("btd,bsd->bts", qs, ks)
            att = att + 0.01 * p["amplitude"][h, s] * eye
            pn = jax.nn.softmax(att, -1)
            acc = acc + imp[h, s] * jnp.einsum("bts,bsd->btd", pn, v[:, h])
        outs.append(acc)
    head_out = jnp.stack(outs, axis=1)                       # (B, H, T, Dh)
    comb = head_out.transpose(0, 2, 1, 3).reshape(B, T, D)
    x = x + (comb @ p["w_out"] + p["b_out"])
    h2 = ln(x, p["ln2_g"], p["ln2_b"])
    m = jax.nn.gelu(h2 @ p["w1"] + p["b1"], approximate=False)
    x = x + (m @ p["w2"] + p["b2"])
    return x


# --------------------------------- params ------------------------------------

def init_params(key, dim, n_heads, n_splats, head_dim):
    ks = jax.random.split(key, 8)
    mlp_dim = 4 * dim
    f32 = jnp.float32
    return dict(
        ln1_g=jnp.ones((dim,), f32), ln1_b=jnp.zeros((dim,), f32),
        ln2_g=jnp.ones((dim,), f32), ln2_b=jnp.zeros((dim,), f32),
        lnh_g=jnp.ones((head_dim,), f32), lnh_b=jnp.zeros((head_dim,), f32),
        w_qkv=0.02 * jax.random.normal(ks[0], (dim, 3 * dim), f32),
        b_qkv=jnp.zeros((3 * dim,), f32),
        w_out=0.02 * jax.random.normal(ks[1], (dim, dim), f32),
        b_out=jnp.zeros((dim,), f32),
        w1=0.02 * jax.random.normal(ks[2], (dim, mlp_dim), f32),
        b1=jnp.zeros((mlp_dim,), f32),
        w2=0.02 * jax.random.normal(ks[3], (mlp_dim, dim), f32),
        b2=jnp.zeros((dim,), f32),
        # splat params (diverse deterministic init, mirroring _init_splats_diversely)
        centers=0.2 * jax.random.normal(ks[4], (n_heads, n_splats, head_dim), f32),
        log_scale=0.5 * jax.random.normal(ks[5], (n_heads, n_splats), f32),
        amplitude=0.5 + 2.0 * jax.random.uniform(ks[6], (n_heads, n_splats), f32),
    )


if __name__ == "__main__":
    B, T, D = 2, 8, 32           # batch, seq, model dim
    H, S = 4, 2                  # heads, splats per head
    Dh = D // H

    key = jax.random.PRNGKey(0)
    kx, kp = jax.random.split(key)
    x = jax.random.normal(kx, (B, T, D), dtype=jnp.float32)
    params = init_params(kp, D, H, S, Dh)

    out = jax.jit(gsa_transformer_block)(x, params)
    out = jax.block_until_ready(out)

    ref = reference_block(x, params)
    assert out.shape == (B, T, D)
    # tolerance loosened vs the f32 reference: bf16 MXU operands + tanh GELU + approx reciprocal
    np.testing.assert_allclose(np.asarray(out), np.asarray(ref), rtol=2e-2, atol=2e-2)
    print("KERNEL_OK")
</pallas_src>

<mosaic_0001>
module attributes {stable_mosaic.version = 11 : i64} {
  func.func @_qkv_prep_kernel(%arg0: i32, %arg1: i32, %arg2: memref<1x8x32xf32, #tpu.memory_space<vmem>>, %arg3: memref<1x32xf32, #tpu.memory_space<vmem>>, %arg4: memref<1x32xf32, #tpu.memory_space<vmem>>, %arg5: memref<32x96xbf16, #tpu.memory_space<vmem>>, %arg6: memref<1x96xf32, #tpu.memory_space<vmem>>, %arg7: memref<1x8xf32, #tpu.memory_space<vmem>>, %arg8: memref<1x8xf32, #tpu.memory_space<vmem>>, %arg9: memref<1x8x32xbf16, #tpu.memory_space<vmem>>, %arg10: memref<1x8x64xbf16, #tpu.memory_space<vmem>>) attributes {dimension_semantics = [#tpu.dimension_semantics<parallel>, #tpu.dimension_semantics<parallel>], iteration_bounds = array<i64: 2, 1>, scalar_prefetch = 0 : i64, scratch_operands = 0 : i64, tpu.core_type = #tpu.core_type<tc>, window_params = [{transform_indices = @transform_0, window_bounds = array<i64: 1, 8, 32>}, {pipeline_mode = #tpu.pipeline_mode<synchronous>, transform_indices = @transform_1, window_bounds = array<i64: 1, 32>}, {pipeline_mode = #tpu.pipeline_mode<synchronous>, transform_indices = @transform_2, window_bounds = array<i64: 1, 32>}, {pipeline_mode = #tpu.pipeline_mode<synchronous>, transform_indices = @transform_3, window_bounds = array<i64: 32, 96>}, {pipeline_mode = #tpu.pipeline_mode<synchronous>, transform_indices = @transform_4, window_bounds = array<i64: 1, 96>}, {pipeline_mode = #tpu.pipeline_mode<synchronous>, transform_indices = @transform_5, window_bounds = array<i64: 1, 8>}, {pipeline_mode = #tpu.pipeline_mode<synchronous>, transform_indices = @transform_6, window_bounds = array<i64: 1, 8>}, {transform_indices = @transform_7, window_bounds = array<i64: 1, 8, 32>}, {transform_indices = @transform_8, window_bounds = array<i64: 1, 8, 64>}]} {
    %c0 = arith.constant 0 : index
    %c0_0 = arith.constant 0 : index
    %c0_1 = arith.constant 0 : index
    %0 = vector.load %arg2[%c0, %c0_0, %c0_1] : memref<1x8x32xf32, #tpu.memory_space<vmem>>, vector<1x8x32xf32>
    %1 = vector.shape_cast %0 : vector<1x8x32xf32> to vector<8x32xf32>
    %cst = arith.constant dense<0.000000e+00> : vector<8xf32>
    %2 = vector.multi_reduction <add>, %1, %cst [1] : vector<8x32xf32> to vector<8xf32>
    %3 = vector.shape_cast %2 : vector<8xf32> to vector<8x1xf32>
    %cst_2 = arith.constant 3.200000e+01 : f32
    %4 = vector.broadcast %cst_2 : f32 to vector<8x1xf32>
    %5 = arith.divf %3, %4 : vector<8x1xf32>
    %6 = vector.broadcast %5 : vector<8x1xf32> to vector<8x32xf32>
    %7 = arith.subf %1, %6 : vector<8x32xf32>
    %8 = arith.mulf %7, %7 : vector<8x32xf32>
    %cst_3 = arith.constant dense<0.000000e+00> : vector<8xf32>
    %9 = vector.multi_reduction <add>, %8, %cst_3 [1] : vector<8x32xf32> to vector<8xf32>
    %10 = vector.shape_cast %9 : vector<8xf32> to vector<8x1xf32>
    %cst_4 = arith.constant 3.200000e+01 : f32
    %11 = vector.broadcast %cst_4 : f32 to vector<8x1xf32>
    %12 = arith.divf %10, %11 : vector<8x1xf32>
    %cst_5 = arith.constant 9.99999974E-6 : f32
    %13 = vector.broadcast %cst_5 : f32 to vector<8x1xf32>
    %14 = arith.addf %12, %13 : vector<8x1xf32>
    %15 = math.rsqrt %14 : vector<8x1xf32>
    %16 = vector.broadcast %15 : vector<8x1xf32> to vector<8x32xf32>
    %17 = arith.mulf %7, %16 : vector<8x32xf32>
    %c0_6 = arith.constant 0 : index
    %c0_7 = arith.constant 0 : index
    %18 = vector.load %arg3[%c0_6, %c0_7] : memref<1x32xf32, #tpu.memory_space<vmem>>, vector<1x32xf32>
    %19 = vector.broadcast %18 : vector<1x32xf32> to vector<8x32xf32>
    %20 = arith.mulf %17, %19 : vector<8x32xf32>
    %c0_8 = arith.constant 0 : index
    %c0_9 = arith.constant 0 : index
    %21 = vector.load %arg4[%c0_8, %c0_9] : memref<1x32xf32, #tpu.memory_space<vmem>>, vector<1x32xf32>
    %22 = vector.broadcast %21 : vector<1x32xf32> to vector<8x32xf32>
    %23 = arith.addf %20, %22 : vector<8x32xf32>
    %24 = arith.truncf %23 : vector<8x32xf32> to vector<8x32xbf16>
    %c0_10 = arith.constant 0 : index
    %c0_11 = arith.constant 0 : index
    %25 = vector.load %arg5[%c0_10, %c0_11] : memref<32x96xbf16, #tpu.memory_space<vmem>>, vector<32x96xbf16>
    %cst_12 = arith.constant dense<0.000000e+00> : vector<8x96xf32>
    %26 = tpu.matmul %24, %25, %cst_12 {dimension_numbers = #tpu.dot_dimension_numbers<[1], [0], [0], [1], [0, 0, 1, 1], [], []>} : vector<8x32xbf16>, vector<32x96xbf16>, vector<8x96xf32> -> vector<8x96xf32>
    %c0_13 = arith.constant 0 : index
    %c0_14 = arith.constant 0 : index
    %27 = vector.load %arg6[%c0_13, %c0_14] : memref<1x96xf32, #tpu.memory_space<vmem>>, vector<1x96xf32>
    %28 = vector.broadcast %27 : vector<1x96xf32> to vector<8x96xf32>
    %29 = arith.addf %26, %28 : vector<8x96xf32>
    %c0_15 = arith.constant 0 : index
    %c0_16 = arith.constant 0 : index
    %30 = vector.load %arg7[%c0_15, %c0_16] : memref<1x8xf32, #tpu.memory_space<vmem>>, vector<1x8xf32>
    %c0_17 = arith.constant 0 : index
    %c0_18 = arith.constant 0 : index
    %31 = vector.load %arg8[%c0_17, %c0_18] : memref<1x8xf32, #tpu.memory_space<vmem>>, vector<1x8xf32>
    %32 = vector.extract_strided_slice %29 {offsets = [0, 0], sizes = [8, 8], strides = [1, 1]} : vector<8x96xf32> to vector<8x8xf32>
    %cst_19 = arith.constant dense<0.000000e+00> : vector<8xf32>
    %33 = vector.multi_reduction <add>, %32, %cst_19 [1] : vector<8x8xf32> to vector<8xf32>
    %34 = vector.shape_cast %33 : vector<8xf32> to vector<8x1xf32>
    %cst_20 = arith.constant 8.000000e+00 : f32
    %35 = vector.broadcast %cst_20 : f32 to vector<8x1xf32>
    %36 = arith.divf %34, %35 : vector<8x1xf32>
    %37 = vector.broadcast %36 : vector<8x1xf32> to vector<8x8xf32>
    %38 = arith.subf %32, %37 : vector<8x8xf32>
    %39 = arith.mulf %38, %38 : vector<8x8xf32>
    %cst_21 = arith.constant dense<0.000000e+00> : vector<8xf32>
    %40 = vector.multi_reduction <add>, %39, %cst_21 [1] : vector<8x8xf32> to vector<8xf32>
    %41 = vector.shape_cast %40 : vector<8xf32> to vector<8x1xf32>
    %cst_22 = arith.constant 8.000000e+00 : f32
    %42 = vector.broadcast %cst_22 : f32 to vector<8x1xf32>
    %43 = arith.divf %41, %42 : vector<8x1xf32>
    %cst_23 = arith.constant 9.99999974E-6 : f32
    %44 = vector.broadcast %cst_23 : f32 to vector<8x1xf32>
    %45 = arith.addf %43, %44 : vector<8x1xf32>
    %46 = math.rsqrt %45 : vector<8x1xf32>
    %47 = vector.broadcast %46 : vector<8x1xf32> to vector<8x8xf32>
    %48 = arith.mulf %38, %47 : vector<8x8xf32>
    %49 = vector.broadcast %30 : vector<1x8xf32> to vector<8x8xf32>
    %50 = arith.mulf %48, %49 : vector<8x8xf32>
    %51 = vector.broadcast %31 : vector<1x8xf32> to vector<8x8xf32>
    %52 = arith.addf %50, %51 : vector<8x8xf32>
    %53 = arith.truncf %52 : vector<8x8xf32> to vector<8x8xbf16>
    %c0_24 = arith.constant 0 : index
    %c0_25 = arith.constant 0 : index
    %c0_26 = arith.constant 0 : index
    %54 = vector.load %arg9[%c0_24, %c0_25, %c0_26] : memref<1x8x32xbf16, #tpu.memory_space<vmem>>, vector<1x8x8xbf16>
    %55 = vector.shape_cast %54 : vector<1x8x8xbf16> to vector<8x8xbf16>
    %56 = vector.shape_cast %53 : vector<8x8xbf16> to vector<1x8x8xbf16>
    tpu.vector_store %arg9[%c0_24, %c0_25, %c0_26], %56 {strides = array<i32>} : memref<1x8x32xbf16, #tpu.memory_space<vmem>>, vector<1x8x8xbf16>,
    %57 = vector.extract_strided_slice %29 {offsets = [0, 32], sizes = [8, 8], strides = [1, 1]} : vector<8x96xf32> to vector<8x8xf32>
    %cst_27 = arith.constant dense<0.000000e+00> : vector<8xf32>
    %58 = vector.multi_reduction <add>, %57, %cst_27 [1] : vector<8x8xf32> to vector<8xf32>
    %59 = vector.shape_cast %58 : vector<8xf32> to vector<8x1xf32>
    %cst_28 = arith.constant 8.000000e+00 : f32
    %60 = vector.broadcast %cst_28 : f32 to vector<8x1xf32>
    %61 = arith.divf %59, %60 : vector<8x1xf32>
    %62 = vector.broadcast %61 : vector<8x1xf32> to vector<8x8xf32>
    %63 = arith.subf %57, %62 : vector<8x8xf32>
    %64 = arith.mulf %63, %63 : vector<8x8xf32>
    %cst_29 = arith.constant dense<0.000000e+00> : vector<8xf32>
    %65 = vector.multi_reduction <add>, %64, %cst_29 [1] : vector<8x8xf32> to vector<8xf32>
    %66 = vector.shape_cast %65 : vector<8xf32> to vector<8x1xf32>
    %cst_30 = arith.constant 8.000000e+00 : f32
    %67 = vector.broadcast %cst_30 : f32 to vector<8x1xf32>
    %68 = arith.divf %66, %67 : vector<8x1xf32>
    %cst_31 = arith.constant 9.99999974E-6 : f32
    %69 = vector.broadcast %cst_31 : f32 to vector<8x1xf32>
    %70 = arith.addf %68, %69 : vector<8x1xf32>
    %71 = math.rsqrt %70 : vector<8x1xf32>
    %72 = vector.broadcast %71 : vector<8x1xf32> to vector<8x8xf32>
    %73 = arith.mulf %63, %72 : vector<8x8xf32>
    %74 = vector.broadcast %30 : vector<1x8xf32> to vector<8x8xf32>
    %75 = arith.mulf %73, %74 : vector<8x8xf32>
    %76 = vector.broadcast %31 : vector<1x8xf32> to vector<8x8xf32>
    %77 = arith.addf %75, %76 : vector<8x8xf32>
    %78 = arith.truncf %77 : vector<8x8xf32> to vector<8x8xbf16>
    %c0_32 = arith.constant 0 : index
    %c0_33 = arith.constant 0 : index
    %c0_34 = arith.constant 0 : index
    %79 = vector.load %arg10[%c0_32, %c0_33, %c0_34] : memref<1x8x64xbf16, #tpu.memory_space<vmem>>, vector<1x8x8xbf16>
    %80 = vector.shape_cast %79 : vector<1x8x8xbf16> to vector<8x8xbf16>
    %81 = vector.shape_cast %78 : vector<8x8xbf16> to vector<1x8x8xbf16>
    tpu.vector_store %arg10[%c0_32, %c0_33, %c0_34], %81 {strides = array<i32>} : memref<1x8x64xbf16, #tpu.memory_space<vmem>>, vector<1x8x8xbf16>,
    %82 = vector.extract_strided_slice %29 {offsets = [0, 8], sizes = [8, 8], strides = [1, 1]} : vector<8x96xf32> to vector<8x8xf32>
    %cst_35 = arith.constant dense<0.000000e+00> : vector<8xf32>
    %83 = vector.multi_reduction <add>, %82, %cst_35 [1] : vector<8x8xf32> to vector<8xf32>
    %84 = vector.shape_cast %83 : vector<8xf32> to vector<8x1xf32>
    %cst_36 = arith.constant 8.000000e+00 : f32
    %85 = vector.broadcast %cst_36 : f32 to vector<8x1xf32>
    %86 = arith.divf %84, %85 : vector<8x1xf32>
    %87 = vector.broadcast %86 : vector<8x1xf32> to vector<8x8xf32>
    %88 = arith.subf %82, %87 : vector<8x8xf32>
    %89 = arith.mulf %88, %88 : vector<8x8xf32>
    %cst_37 = arith.constant dense<0.000000e+00> : vector<8xf32>
    %90 = vector.multi_reduction <add>, %89, %cst_37 [1] : vector<8x8xf32> to vector<8xf32>
    %91 = vector.shape_cast %90 : vector<8xf32> to vector<8x1xf32>
    %cst_38 = arith.constant 8.000000e+00 : f32
    %92 = vector.broadcast %cst_38 : f32 to vector<8x1xf32>
    %93 = arith.divf %91, %92 : vector<8x1xf32>
    %cst_39 = arith.constant 9.99999974E-6 : f32
    %94 = vector.broadcast %cst_39 : f32 to vector<8x1xf32>
    %95 = arith.addf %93, %94 : vector<8x1xf32>
    %96 = math.rsqrt %95 : vector<8x1xf32>
    %97 = vector.broadcast %96 : vector<8x1xf32> to vector<8x8xf32>
    %98 = arith.mulf %88, %97 : vector<8x8xf32>
    %99 = vector.broadcast %30 : vector<1x8xf32> to vector<8x8xf32>
    %100 = arith.mulf %98, %99 : vector<8x8xf32>
    %101 = vector.broadcast %31 : vector<1x8xf32> to vector<8x8xf32>
    %102 = arith.addf %100, %101 : vector<8x8xf32>
    %103 = arith.truncf %102 : vector<8x8xf32> to vector<8x8xbf16>
    %c0_40 = arith.constant 0 : index
    %c0_41 = arith.constant 0 : index
    %c8 = arith.constant 8 : index
    %104 = vector.load %arg9[%c0_40, %c0_41, %c8] : memref<1x8x32xbf16, #tpu.memory_space<vmem>>, vector<1x8x8xbf16>
    %105 = vector.shape_cast %104 : vector<1x8x8xbf16> to vector<8x8xbf16>
    %106 = vector.shape_cast %103 : vector<8x8xbf16> to vector<1x8x8xbf16>
    tpu.vector_store %arg9[%c0_40, %c0_41, %c8], %106 {strides = array<i32>} : memref<1x8x32xbf16, #tpu.memory_space<vmem>>, vector<1x8x8xbf16>,
    %107 = vector.extract_strided_slice %29 {offsets = [0, 40], sizes = [8, 8], strides = [1, 1]} : vector<8x96xf32> to vector<8x8xf32>
    %cst_42 = arith.constant dense<0.000000e+00> : vector<8xf32>
    %108 = vector.multi_reduction <add>, %107, %cst_42 [1] : vector<8x8xf32> to vector<8xf32>
    %109 = vector.shape_cast %108 : vector<8xf32> to vector<8x1xf32>
    %cst_43 = arith.constant 8.000000e+00 : f32
    %110 = vector.broadcast %cst_43 : f32 to vector<8x1xf32>
    %111 = arith.divf %109, %110 : vector<8x1xf32>
    %112 = vector.broadcast %111 : vector<8x1xf32> to vector<8x8xf32>
    %113 = arith.subf %107, %112 : vector<8x8xf32>
    %114 = arith.mulf %113, %113 : vector<8x8xf32>
    %cst_44 = arith.constant dense<0.000000e+00> : vector<8xf32>
    %115 = vector.multi_reduction <add>, %114, %cst_44 [1] : vector<8x8xf32> to vector<8xf32>
    %116 = vector.shape_cast %115 : vector<8xf32> to vector<8x1xf32>
    %cst_45 = arith.constant 8.000000e+00 : f32
    %117 = vector.broadcast %cst_45 : f32 to vector<8x1xf32>
    %118 = arith.divf %116, %117 : vector<8x1xf32>
    %cst_46 = arith.constant 9.99999974E-6 : f32
    %119 = vector.broadcast %cst_46 : f32 to vector<8x1xf32>
    %120 = arith.addf %118, %119 : vector<8x1xf32>
    %121 = math.rsqrt %120 : vector<8x1xf32>
    %122 = vector.broadcast %121 : vector<8x1xf32> to vector<8x8xf32>
    %123 = arith.mulf %113, %122 : vector<8x8xf32>
    %124 = vector.broadcast %30 : vector<1x8xf32> to vector<8x8xf32>
    %125 = arith.mulf %123, %124 : vector<8x8xf32>
    %126 = vector.broadcast %31 : vector<1x8xf32> to vector<8x8xf32>
    %127 = arith.addf %125, %126 : vector<8x8xf32>
    %128 = arith.truncf %127 : vector<8x8xf32> to vector<8x8xbf16>
    %c0_47 = arith.constant 0 : index
    %c0_48 = arith.constant 0 : index
    %c8_49 = arith.constant 8 : index
    %129 = vector.load %arg10[%c0_47, %c0_48, %c8_49] : memref<1x8x64xbf16, #tpu.memory_space<vmem>>, vector<1x8x8xbf16>
    %130 = vector.shape_cast %129 : vector<1x8x8xbf16> to vector<8x8xbf16>
    %131 = vector.shape_cast %128 : vector<8x8xbf16> to vector<1x8x8xbf16>
    tpu.vector_store %arg10[%c0_47, %c0_48, %c8_49], %131 {strides = array<i32>} : memref<1x8x64xbf16, #tpu.memory_space<vmem>>, vector<1x8x8xbf16>,
    %132 = vector.extract_strided_slice %29 {offsets = [0, 16], sizes = [8, 8], strides = [1, 1]} : vector<8x96xf32> to vector<8x8xf32>
    %cst_50 = arith.constant dense<0.000000e+00> : vector<8xf32>
    %133 = vector.multi_reduction <add>, %132, %cst_50 [1] : vector<8x8xf32> to vector<8xf32>
    %134 = vector.shape_cast %133 : vector<8xf32> to vector<8x1xf32>
    %cst_51 = arith.constant 8.000000e+00 : f32
    %135 = vector.broadcast %cst_51 : f32 to vector<8x1xf32>
    %136 = arith.divf %134, %135 : vector<8x1xf32>
    %137 = vector.broadcast %136 : vector<8x1xf32> to vector<8x8xf32>
    %138 = arith.subf %132, %137 : vector<8x8xf32>
    %139 = arith.mulf %138, %138 : vector<8x8xf32>
    %cst_52 = arith.constant dense<0.000000e+00> : vector<8xf32>
    %140 = vector.multi_reduction <add>, %139, %cst_52 [1] : vector<8x8xf32> to vector<8xf32>
    %141 = vector.shape_cast %140 : vector<8xf32> to vector<8x1xf32>
    %cst_53 = arith.constant 8.000000e+00 : f32
    %142 = vector.broadcast %cst_53 : f32 to vector<8x1xf32>
    %143 = arith.divf %141, %142 : vector<8x1xf32>
    %cst_54 = arith.constant 9.99999974E-6 : f32
    %144 = vector.broadcast %cst_54 : f32 to vector<8x1xf32>
    %145 = arith.addf %143, %144 : vector<8x1xf32>
    %146 = math.rsqrt %145 : vector<8x1xf32>
    %147 = vector.broadcast %146 : vector<8x1xf32> to vector<8x8xf32>
    %148 = arith.mulf %138, %147 : vector<8x8xf32>
    %149 = vector.broadcast %30 : vector<1x8xf32> to vector<8x8xf32>
    %150 = arith.mulf %148, %149 : vector<8x8xf32>
    %151 = vector.broadcast %31 : vector<1x8xf32> to vector<8x8xf32>
    %152 = arith.addf %150, %151 : vector<8x8xf32>
    %153 = arith.truncf %152 : vector<8x8xf32> to vector<8x8xbf16>
    %c0_55 = arith.constant 0 : index
    %c0_56 = arith.constant 0 : index
    %c16 = arith.constant 16 : index
    %154 = vector.load %arg9[%c0_55, %c0_56, %c16] : memref<1x8x32xbf16, #tpu.memory_space<vmem>>, vector<1x8x8xbf16>
    %155 = vector.shape_cast %154 : vector<1x8x8xbf16> to vector<8x8xbf16>
    %156 = vector.shape_cast %153 : vector<8x8xbf16> to vector<1x8x8xbf16>
    tpu.vector_store %arg9[%c0_55, %c0_56, %c16], %156 {strides = array<i32>} : memref<1x8x32xbf16, #tpu.memory_space<vmem>>, vector<1x8x8xbf16>,
    %157 = vector.extract_strided_slice %29 {offsets = [0, 48], sizes = [8, 8], strides = [1, 1]} : vector<8x96xf32> to vector<8x8xf32>
    %cst_57 = arith.constant dense<0.000000e+00> : vector<8xf32>
    %158 = vector.multi_reduction <add>, %157, %cst_57 [1] : vector<8x8xf32> to vector<8xf32>
    %159 = vector.shape_cast %158 : vector<8xf32> to vector<8x1xf32>
    %cst_58 = arith.constant 8.000000e+00 : f32
    %160 = vector.broadcast %cst_58 : f32 to vector<8x1xf32>
    %161 = arith.divf %159, %160 : vector<8x1xf32>
    %162 = vector.broadcast %161 : vector<8x1xf32> to vector<8x8xf32>
    %163 = arith.subf %157, %162 : vector<8x8xf32>
    %164 = arith.mulf %163, %163 : vector<8x8xf32>
    %cst_59 = arith.constant dense<0.000000e+00> : vector<8xf32>
    %165 = vector.multi_reduction <add>, %164, %cst_59 [1] : vector<8x8xf32> to vector<8xf32>
    %166 = vector.shape_cast %165 : vector<8xf32> to vector<8x1xf32>
    %cst_60 = arith.constant 8.000000e+00 : f32
    %167 = vector.broadcast %cst_60 : f32 to vector<8x1xf32>
    %168 = arith.divf %166, %167 : vector<8x1xf32>
    %cst_61 = arith.constant 9.99999974E-6 : f32
    %169 = vector.broadcast %cst_61 : f32 to vector<8x1xf32>
    %170 = arith.addf %168, %169 : vector<8x1xf32>
    %171 = math.rsqrt %170 : vector<8x1xf32>
    %172 = vector.broadcast %171 : vector<8x1xf32> to vector<8x8xf32>
    %173 = arith.mulf %163, %172 : vector<8x8xf32>
    %174 = vector.broadcast %30 : vector<1x8xf32> to vector<8x8xf32>
    %175 = arith.mulf %173, %174 : vector<8x8xf32>
    %176 = vector.broadcast %31 : vector<1x8xf32> to vector<8x8xf32>
    %177 = arith.addf %175, %176 : vector<8x8xf32>
    %178 = arith.truncf %177 : vector<8x8xf32> to vector<8x8xbf16>
    %c0_62 = arith.constant 0 : index
    %c0_63 = arith.constant 0 : index
    %c16_64 = arith.constant 16 : index
    %179 = vector.load %arg10[%c0_62, %c0_63, %c16_64] : memref<1x8x64xbf16, #tpu.memory_space<vmem>>, vector<1x8x8xbf16>
    %180 = vector.shape_cast %179 : vector<1x8x8xbf16> to vector<8x8xbf16>
    %181 = vector.shape_cast %178 : vector<8x8xbf16> to vector<1x8x8xbf16>
    tpu.vector_store %arg10[%c0_62, %c0_63, %c16_64], %181 {strides = array<i32>} : memref<1x8x64xbf16, #tpu.memory_space<vmem>>, vector<1x8x8xbf16>,
    %182 = vector.extract_strided_slice %29 {offsets = [0, 24], sizes = [8, 8], strides = [1, 1]} : vector<8x96xf32> to vector<8x8xf32>
    %cst_65 = arith.constant dense<0.000000e+00> : vector<8xf32>
    %183 = vector.multi_reduction <add>, %182, %cst_65 [1] : vector<8x8xf32> to vector<8xf32>
    %184 = vector.shape_cast %183 : vector<8xf32> to vector<8x1xf32>
    %cst_66 = arith.constant 8.000000e+00 : f32
    %185 = vector.broadcast %cst_66 : f32 to vector<8x1xf32>
    %186 = arith.divf %184, %185 : vector<8x1xf32>
    %187 = vector.broadcast %186 : vector<8x1xf32> to vector<8x8xf32>
    %188 = arith.subf %182, %187 : vector<8x8xf32>
    %189 = arith.mulf %188, %188 : vector<8x8xf32>
    %cst_67 = arith.constant dense<0.000000e+00> : vector<8xf32>
    %190 = vector.multi_reduction <add>, %189, %cst_67 [1] : vector<8x8xf32> to vector<8xf32>
    %191 = vector.shape_cast %190 : vector<8xf32> to vector<8x1xf32>
    %cst_68 = arith.constant 8.000000e+00 : f32
    %192 = vector.broadcast %cst_68 : f32 to vector<8x1xf32>
    %193 = arith.divf %191, %192 : vector<8x1xf32>
    %cst_69 = arith.constant 9.99999974E-6 : f32
    %194 = vector.broadcast %cst_69 : f32 to vector<8x1xf32>
    %195 = arith.addf %193, %194 : vector<8x1xf32>
    %196 = math.rsqrt %195 : vector<8x1xf32>
    %197 = vector.broadcast %196 : vector<8x1xf32> to vector<8x8xf32>
    %198 = arith.mulf %188, %197 : vector<8x8xf32>
    %199 = vector.broadcast %30 : vector<1x8xf32> to vector<8x8xf32>
    %200 = arith.mulf %198, %199 : vector<8x8xf32>
    %201 = vector.broadcast %31 : vector<1x8xf32> to vector<8x8xf32>
    %202 = arith.addf %200, %201 : vector<8x8xf32>
    %203 = arith.truncf %202 : vector<8x8xf32> to vector<8x8xbf16>
    %c0_70 = arith.constant 0 : index
    %c0_71 = arith.constant 0 : index
    %c24 = arith.constant 24 : index
    %204 = vector.load %arg9[%c0_70, %c0_71, %c24] : memref<1x8x32xbf16, #tpu.memory_space<vmem>>, vector<1x8x8xbf16>
    %205 = vector.shape_cast %204 : vector<1x8x8xbf16> to vector<8x8xbf16>
    %206 = vector.shape_cast %203 : vector<8x8xbf16> to vector<1x8x8xbf16>
    tpu.vector_store %arg9[%c0_70, %c0_71, %c24], %206 {strides = array<i32>} : memref<1x8x32xbf16, #tpu.memory_space<vmem>>, vector<1x8x8xbf16>,
    %207 = vector.extract_strided_slice %29 {offsets = [0, 56], sizes = [8, 8], strides = [1, 1]} : vector<8x96xf32> to vector<8x8xf32>
    %cst_72 = arith.constant dense<0.000000e+00> : vector<8xf32>
    %208 = vector.multi_reduction <add>, %207, %cst_72 [1] : vector<8x8xf32> to vector<8xf32>
    %209 = vector.shape_cast %208 : vector<8xf32> to vector<8x1xf32>
    %cst_73 = arith.constant 8.000000e+00 : f32
    %210 = vector.broadcast %cst_73 : f32 to vector<8x1xf32>
    %211 = arith.divf %209, %210 : vector<8x1xf32>
    %212 = vector.broadcast %211 : vector<8x1xf32> to vector<8x8xf32>
    %213 = arith.subf %207, %212 : vector<8x8xf32>
    %214 = arith.mulf %213, %213 : vector<8x8xf32>
    %cst_74 = arith.constant dense<0.000000e+00> : vector<8xf32>
    %215 = vector.multi_reduction <add>, %214, %cst_74 [1] : vector<8x8xf32> to vector<8xf32>
    %216 = vector.shape_cast %215 : vector<8xf32> to vector<8x1xf32>
    %cst_75 = arith.constant 8.000000e+00 : f32
    %217 = vector.broadcast %cst_75 : f32 to vector<8x1xf32>
    %218 = arith.divf %216, %217 : vector<8x1xf32>
    %cst_76 = arith.constant 9.99999974E-6 : f32
    %219 = vector.broadcast %cst_76 : f32 to vector<8x1xf32>
    %220 = arith.addf %218, %219 : vector<8x1xf32>
    %221 = math.rsqrt %220 : vector<8x1xf32>
    %222 = vector.broadcast %221 : vector<8x1xf32> to vector<8x8xf32>
    %223 = arith.mulf %213, %222 : vector<8x8xf32>
    %224 = vector.broadcast %30 : vector<1x8xf32> to vector<8x8xf32>
    %225 = arith.mulf %223, %224 : vector<8x8xf32>
    %226 = vector.broadcast %31 : vector<1x8xf32> to vector<8x8xf32>
    %227 = arith.addf %225, %226 : vector<8x8xf32>
    %228 = arith.truncf %227 : vector<8x8xf32> to vector<8x8xbf16>
    %c0_77 = arith.constant 0 : index
    %c0_78 = arith.constant 0 : index
    %c24_79 = arith.constant 24 : index
    %229 = vector.load %arg10[%c0_77, %c0_78, %c24_79] : memref<1x8x64xbf16, #tpu.memory_space<vmem>>, vector<1x8x8xbf16>
    %230 = vector.shape_cast %229 : vector<1x8x8xbf16> to vector<8x8xbf16>
    %231 = vector.shape_cast %228 : vector<8x8xbf16> to vector<1x8x8xbf16>
    tpu.vector_store %arg10[%c0_77, %c0_78, %c24_79], %231 {strides = array<i32>} : memref<1x8x64xbf16, #tpu.memory_space<vmem>>, vector<1x8x8xbf16>,
    %232 = vector.extract_strided_slice %29 {offsets = [0, 64], sizes = [8, 32], strides = [1, 1]} : vector<8x96xf32> to vector<8x32xf32>
    %233 = arith.truncf %232 : vector<8x32xf32> to vector<8x32xbf16>
    %c0_80 = arith.constant 0 : index
    %c0_81 = arith.constant 0 : index
    %c32 = arith.constant 32 : index
    %234 = vector.load %arg10[%c0_80, %c0_81, %c32] : memref<1x8x64xbf16, #tpu.memory_space<vmem>>, vector<1x8x32xbf16>
    %235 = vector.shape_cast %234 : vector<1x8x32xbf16> to vector<8x32xbf16>
    %236 = vector.shape_cast %233 : vector<8x32xbf16> to vector<1x8x32xbf16>
    tpu.vector_store %arg10[%c0_80, %c0_81, %c32], %236 {strides = array<i32>} : memref<1x8x64xbf16, #tpu.memory_space<vmem>>, vector<1x8x32xbf16>,
    return
  }
  func.func @transform_0(%arg0: i32, %arg1: i32) -> (i32, i32, i32) {
    %c0_i32 = arith.constant 0 : i32
    %c0_i32_0 = arith.constant 0 : i32
    return %arg0, %arg1, %c0_i32 : i32, i32, i32
  }
  func.func @transform_1(%arg0: i32, %arg1: i32) -> (i32, i32) {
    %c0_i32 = arith.constant 0 : i32
    %c0_i32_0 = arith.constant 0 : i32
    %c0_i32_1 = arith.constant 0 : i32
    return %c0_i32, %c0_i32_0 : i32, i32
  }
  func.func @transform_2(%arg0: i32, %arg1: i32) -> (i32, i32) {
    %c0_i32 = arith.constant 0 : i32
    %c0_i32_0 = arith.constant 0 : i32
    %c0_i32_1 = arith.constant 0 : i32
    return %c0_i32, %c0_i32_0 : i32, i32
  }
  func.func @transform_3(%arg0: i32, %arg1: i32) -> (i32, i32) {
    %c0_i32 = arith.constant 0 : i32
    %c0_i32_0 = arith.constant 0 : i32
    %c0_i32_1 = arith.constant 0 : i32
    return %c0_i32, %c0_i32_0 : i32, i32
  }
  func.func @transform_4(%arg0: i32, %arg1: i32) -> (i32, i32) {
    %c0_i32 = arith.constant 0 : i32
    %c0_i32_0 = arith.constant 0 : i32
    %c0_i32_1 = arith.constant 0 : i32
    return %c0_i32, %c0_i32_0 : i32, i32
  }
  func.func @transform_5(%arg0: i32, %arg1: i32) -> (i32, i32) {
    %c0_i32 = arith.constant 0 : i32
    %c0_i32_0 = arith.constant 0 : i32
    %c0_i32_1 = arith.constant 0 : i32
    return %c0_i32, %c0_i32_0 : i32, i32
  }
  func.func @transform_6(%arg0: i32, %arg1: i32) -> (i32, i32) {
    %c0_i32 = arith.constant 0 : i32
    %c0_i32_0 = arith.constant 0 : i32
    %c0_i32_1 = arith.constant 0 : i32
    return %c0_i32, %c0_i32_0 : i32, i32
  }
  func.func @transform_7(%arg0: i32, %arg1: i32) -> (i32, i32, i32) {
    %c0_i32 = arith.constant 0 : i32
    %c0_i32_0 = arith.constant 0 : i32
    return %arg0, %arg1, %c0_i32 : i32, i32, i32
  }
  func.func @transform_8(%arg0: i32, %arg1: i32) -> (i32, i32, i32) {
    %c0_i32 = arith.constant 0 : i32
    %c0_i32_0 = arith.constant 0 : i32
    return %arg0, %arg1, %c0_i32 : i32, i32, i32
  }
}

module attributes {stable_mosaic.version = 11 : i64} {
  func.func @_attn_mlp_kernel(%arg0: i32, %arg1: i32, %arg2: memref<1x8x32xf32, #tpu.memory_space<vmem>>, %arg3: memref<1x8x32xbf16, #tpu.memory_space<vmem>>, %arg4: memref<1x8x64xbf16, #tpu.memory_space<vmem>>, %arg5: memref<4x2x8xbf16, #tpu.memory_space<vmem>>, %arg6: memref<4x2xf32, #tpu.memory_space<smem>>, %arg7: memref<4x2xf32, #tpu.memory_space<smem>>, %arg8: memref<4x2xf32, #tpu.memory_space<smem>>, %arg9: memref<4x2xf32, #tpu.memory_space<smem>>, %arg10: memref<32x32xbf16, #tpu.memory_space<vmem>>, %arg11: memref<1x32xf32, #tpu.memory_space<vmem>>, %arg12: memref<1x32xf32, #tpu.memory_space<vmem>>, %arg13: memref<1x32xf32, #tpu.memory_space<vmem>>, %arg14: memref<32x128xbf16, #tpu.memory_space<vmem>>, %arg15: memref<1x128xf32, #tpu.memory_space<vmem>>, %arg16: memref<128x32xbf16, #tpu.memory_space<vmem>>, %arg17: memref<1x32xf32, #tpu.memory_space<vmem>>, %arg18: memref<1x8x32xf32, #tpu.memory_space<vmem>>, %arg19: memref<8x32xf32, #tpu.memory_space<vmem>>) attributes {dimension_semantics = [#tpu.dimension_semantics<parallel>, #tpu.dimension_semantics<parallel>], iteration_bounds = array<i64: 2, 1>, scalar_prefetch = 0 : i64, scratch_operands = 1 : i64, tpu.core_type = #tpu.core_type<tc>, window_params = [{transform_indices = @transform_0, window_bounds = array<i64: 1, 8, 32>}, {transform_indices = @transform_1, window_bounds = array<i64: 1, 8, 32>}, {transform_indices = @transform_2, window_bounds = array<i64: 1, 8, 64>}, {pipeline_mode = #tpu.pipeline_mode<synchronous>, transform_indices = @transform_3, window_bounds = array<i64: 4, 2, 8>}, {transform_indices = @transform_4, window_bounds = array<i64: 4, 2>}, {transform_indices = @transform_5, window_bounds = array<i64: 4, 2>}, {transform_indices = @transform_6, window_bounds = array<i64: 4, 2>}, {transform_indices = @transform_7, window_bounds = array<i64: 4, 2>}, {pipeline_mode = #tpu.pipeline_mode<synchronous>, transform_indices = @transform_8, window_bounds = array<i64: 32, 32>}, {pipeline_mode = #tpu.pipeline_mode<synchronous>, transform_indices = @transform_9, window_bounds = array<i64: 1, 32>}, {pipeline_mode = #tpu.pipeline_mode<synchronous>, transform_indices = @transform_10, window_bounds = array<i64: 1, 32>}, {pipeline_mode = #tpu.pipeline_mode<synchronous>, transform_indices = @transform_11, window_bounds = array<i64: 1, 32>}, {pipeline_mode = #tpu.pipeline_mode<synchronous>, transform_indices = @transform_12, window_bounds = array<i64: 32, 128>}, {pipeline_mode = #tpu.pipeline_mode<synchronous>, transform_indices = @transform_13, window_bounds = array<i64: 1, 128>}, {pipeline_mode = #tpu.pipeline_mode<synchronous>, transform_indices = @transform_14, window_bounds = array<i64: 128, 32>}, {pipeline_mode = #tpu.pipeline_mode<synchronous>, transform_indices = @transform_15, window_bounds = array<i64: 1, 32>}, {transform_indices = @transform_16, window_bounds = array<i64: 1, 8, 32>}]} {
    %c0 = arith.constant 0 : index
    %c0_0 = arith.constant 0 : index
    %c0_1 = arith.constant 0 : index
    %0 = vector.load %arg2[%c0, %c0_0, %c0_1] : memref<1x8x32xf32, #tpu.memory_space<vmem>>, vector<1x8x32xf32>
    %1 = vector.shape_cast %0 : vector<1x8x32xf32> to vector<8x32xf32>
    %c8_i32 = arith.constant 8 : i32
    %2 = arith.muli %arg1, %c8_i32 : i32
    %3 = tpu.iota {dimensions = array<i32: 0>} : vector<8x8xi32>
    %4 = vector.broadcast %2 : i32 to vector<8x8xi32>
    %5 = arith.addi %4, %3 : vector<8x8xi32>
    %6 = tpu.iota {dimensions = array<i32: 1>} : vector<8x8xi32>
    %7 = arith.cmpi eq, %5, %6 : vector<8x8xi32>
    %c0_2 = arith.constant 0 : index
    %c0_3 = arith.constant 0 : index
    %c0_4 = arith.constant 0 : index
    %8 = vector.load %arg3[%c0_2, %c0_3, %c0_4] : memref<1x8x32xbf16, #tpu.memory_space<vmem>>, vector<1x8x8xbf16>
    %9 = vector.shape_cast %8 : vector<1x8x8xbf16> to vector<8x8xbf16>
    %c0_5 = arith.constant 0 : index
    %c0_6 = arith.constant 0 : index
    %c0_7 = arith.constant 0 : index
    %10 = vector.load %arg4[%c0_5, %c0_6, %c0_7] : memref<1x8x64xbf16, #tpu.memory_space<vmem>>, vector<1x8x8xbf16>
    %11 = vector.shape_cast %10 : vector<1x8x8xbf16> to vector<8x8xbf16>
    %c0_8 = arith.constant 0 : index
    %c0_9 = arith.constant 0 : index
    %c32 = arith.constant 32 : index
    %12 = vector.load %arg4[%c0_8, %c0_9, %c32] : memref<1x8x64xbf16, #tpu.memory_space<vmem>>, vector<1x8x8xbf16>
    %13 = vector.shape_cast %12 : vector<1x8x8xbf16> to vector<8x8xbf16>
    %c0_10 = arith.constant 0 : index
    %c0_11 = arith.constant 0 : index
    %c0_12 = arith.constant 0 : index
    %14 = vector.load %arg5[%c0_10, %c0_11, %c0_12] : memref<4x2x8xbf16, #tpu.memory_space<vmem>>, vector<1x2x8xbf16>
    %15 = vector.shape_cast %14 : vector<1x2x8xbf16> to vector<2x8xbf16>
    %cst = arith.constant dense<0.000000e+00> : vector<8x8xf32>
    %16 = tpu.matmul %9, %11, %cst {dimension_numbers = #tpu.dot_dimension_numbers<[1], [1], [0], [0], [0, 0, 1, 0], [], []>} : vector<8x8xbf16>, vector<8x8xbf16>, vector<8x8xf32> -> vector<8x8xf32>
    %cst_13 = arith.constant dense<0.000000e+00> : vector<8x2xf32>
    %17 = tpu.matmul %9, %15, %cst_13 {dimension_numbers = #tpu.dot_dimension_numbers<[1], [1], [0], [0], [0, 0, 1, 0], [], []>} : vector<8x8xbf16>, vector<2x8xbf16>, vector<8x2xf32> -> vector<8x2xf32>
    %cst_14 = arith.constant dense<0.000000e+00> : vector<2x8xf32>
    %18 = tpu.matmul %15, %11, %cst_14 {dimension_numbers = #tpu.dot_dimension_numbers<[1], [1], [0], [0], [0, 0, 1, 0], [], []>} : vector<2x8xbf16>, vector<8x8xbf16>, vector<2x8xf32> -> vector<2x8xf32>
    %cst_15 = arith.constant 0.000000e+00 : f32
    %19 = vector.broadcast %cst_15 : f32 to vector<8x8xf32>
    %c0_16 = arith.constant 0 : index
    %c0_17 = arith.constant 0 : index
    %20 = memref.load %arg6[%c0_16, %c0_17] : memref<4x2xf32, #tpu.memory_space<smem>>
    %c0_18 = arith.constant 0 : index
    %c0_19 = arith.constant 0 : index
    %21 = memref.load %arg7[%c0_18, %c0_19] : memref<4x2xf32, #tpu.memory_space<smem>>
    %c0_20 = arith.constant 0 : index
    %c0_21 = arith.constant 0 : index
    %22 = memref.load %arg8[%c0_20, %c0_21] : memref<4x2xf32, #tpu.memory_space<smem>>
    %c0_22 = arith.constant 0 : index
    %c0_23 = arith.constant 0 : index
    %23 = memref.load %arg9[%c0_22, %c0_23] : memref<4x2xf32, #tpu.memory_space<smem>>
    %24 = vector.extract_strided_slice %17 {offsets = [0, 0], sizes = [8, 1], strides = [1, 1]} : vector<8x2xf32> to vector<8x1xf32>
    %25 = vector.broadcast %24 : vector<8x1xf32> to vector<8x8xf32>
    %26 = arith.subf %16, %25 : vector<8x8xf32>
    %27 = vector.extract_strided_slice %18 {offsets = [0, 0], sizes = [1, 8], strides = [1, 1]} : vector<2x8xf32> to vector<1x8xf32>
    %28 = vector.broadcast %27 : vector<1x8xf32> to vector<8x8xf32>
    %29 = arith.subf %26, %28 : vector<8x8xf32>
    %30 = vector.broadcast %23 : f32 to vector<8x8xf32>
    %31 = arith.addf %29, %30 : vector<8x8xf32>
    %32 = vector.broadcast %20 : f32 to vector<8x8xf32>
    %33 = arith.mulf %32, %31 : vector<8x8xf32>
    %34 = vector.broadcast %21 : f32 to vector<8x8xf32>
    %35 = arith.addf %33, %34 : vector<8x8xf32>
    %36 = arith.select %7, %35, %33 : vector<8x8xi1>, vector<8x8xf32>
    %cst_24 = arith.constant dense<0xFF800000> : vector<8xf32>
    %37 = vector.multi_reduction <maximumf>, %36, %cst_24 [1] : vector<8x8xf32> to vector<8xf32>
    %38 = vector.shape_cast %37 : vector<8xf32> to vector<8x1xf32>
    %39 = vector.broadcast %38 : vector<8x1xf32> to vector<8x8xf32>
    %40 = arith.subf %36, %39 : vector<8x8xf32>
    %41 = math.exp %40 : vector<8x8xf32>
    %cst_25 = arith.constant dense<0.000000e+00> : vector<8xf32>
    %42 = vector.multi_reduction <add>, %41, %cst_25 [1] : vector<8x8xf32> to vector<8xf32>
    %43 = vector.shape_cast %42 : vector<8xf32> to vector<8x1xf32>
    %44 = tpu.reciprocal %43 {approx = true} : vector<8x1xf32> -> vector<8x1xf32>
    %45 = vector.broadcast %22 : f32 to vector<8x1xf32>
    %46 = arith.mulf %45, %44 : vector<8x1xf32>
    %47 = arith.truncf %41 : vector<8x8xf32> to vector<8x8xbf16>
    %cst_26 = arith.constant dense<0.000000e+00> : vector<8x8xf32>
    %48 = tpu.matmul %47, %13, %cst_26 {dimension_numbers = #tpu.dot_dimension_numbers<[1], [0], [0], [1], [0, 0, 1, 1], [], []>} : vector<8x8xbf16>, vector<8x8xbf16>, vector<8x8xf32> -> vector<8x8xf32>
    %49 = vector.broadcast %46 : vector<8x1xf32> to vector<8x8xf32>
    %50 = arith.mulf %49, %48 : vector<8x8xf32>
    %51 = arith.addf %19, %50 : vector<8x8xf32>
    %c0_27 = arith.constant 0 : index
    %c1 = arith.constant 1 : index
    %52 = memref.load %arg6[%c0_27, %c1] : memref<4x2xf32, #tpu.memory_space<smem>>
    %c0_28 = arith.constant 0 : index
    %c1_29 = arith.constant 1 : index
    %53 = memref.load %arg7[%c0_28, %c1_29] : memref<4x2xf32, #tpu.memory_space<smem>>
    %c0_30 = arith.constant 0 : index
    %c1_31 = arith.constant 1 : index
    %54 = memref.load %arg8[%c0_30, %c1_31] : memref<4x2xf32, #tpu.memory_space<smem>>
    %c0_32 = arith.constant 0 : index
    %c1_33 = arith.constant 1 : index
    %55 = memref.load %arg9[%c0_32, %c1_33] : memref<4x2xf32, #tpu.memory_space<smem>>
    %56 = vector.extract_strided_slice %17 {offsets = [0, 1], sizes = [8, 1], strides = [1, 1]} : vector<8x2xf32> to vector<8x1xf32>
    %57 = vector.broadcast %56 : vector<8x1xf32> to vector<8x8xf32>
    %58 = arith.subf %16, %57 : vector<8x8xf32>
    %59 = vector.extract_strided_slice %18 {offsets = [1, 0], sizes = [1, 8], strides = [1, 1]} : vector<2x8xf32> to vector<1x8xf32>
    %60 = vector.broadcast %59 : vector<1x8xf32> to vector<8x8xf32>
    %61 = arith.subf %58, %60 : vector<8x8xf32>
    %62 = vector.broadcast %55 : f32 to vector<8x8xf32>
    %63 = arith.addf %61, %62 : vector<8x8xf32>
    %64 = vector.broadcast %52 : f32 to vector<8x8xf32>
    %65 = arith.mulf %64, %63 : vector<8x8xf32>
    %66 = vector.broadcast %53 : f32 to vector<8x8xf32>
    %67 = arith.addf %65, %66 : vector<8x8xf32>
    %68 = arith.select %7, %67, %65 : vector<8x8xi1>, vector<8x8xf32>
    %cst_34 = arith.constant dense<0xFF800000> : vector<8xf32>
    %69 = vector.multi_reduction <maximumf>, %68, %cst_34 [1] : vector<8x8xf32> to vector<8xf32>
    %70 = vector.shape_cast %69 : vector<8xf32> to vector<8x1xf32>
    %71 = vector.broadcast %70 : vector<8x1xf32> to vector<8x8xf32>
    %72 = arith.subf %68, %71 : vector<8x8xf32>
    %73 = math.exp %72 : vector<8x8xf32>
    %cst_35 = arith.constant dense<0.000000e+00> : vector<8xf32>
    %74 = vector.multi_reduction <add>, %73, %cst_35 [1] : vector<8x8xf32> to vector<8xf32>
    %75 = vector.shape_cast %74 : vector<8xf32> to vector<8x1xf32>
    %76 = tpu.reciprocal %75 {approx = true} : vector<8x1xf32> -> vector<8x1xf32>
    %77 = vector.broadcast %54 : f32 to vector<8x1xf32>
    %78 = arith.mulf %77, %76 : vector<8x1xf32>
    %79 = arith.truncf %73 : vector<8x8xf32> to vector<8x8xbf16>
    %cst_36 = arith.constant dense<0.000000e+00> : vector<8x8xf32>
    %80 = tpu.matmul %79, %13, %cst_36 {dimension_numbers = #tpu.dot_dimension_numbers<[1], [0], [0], [1], [0, 0, 1, 1], [], []>} : vector<8x8xbf16>, vector<8x8xbf16>, vector<8x8xf32> -> vector<8x8xf32>
    %81 = vector.broadcast %78 : vector<8x1xf32> to vector<8x8xf32>
    %82 = arith.mulf %81, %80 : vector<8x8xf32>
    %83 = arith.addf %51, %82 : vector<8x8xf32>
    %c0_37 = arith.constant 0 : index
    %c0_38 = arith.constant 0 : index
    %84 = vector.load %arg19[%c0_37, %c0_38] : memref<8x32xf32, #tpu.memory_space<vmem>>, vector<8x8xf32>
    tpu.vector_store %arg19[%c0_37, %c0_38], %83 {strides = array<i32>} : memref<8x32xf32, #tpu.memory_space<vmem>>, vector<8x8xf32>,
    %c0_39 = arith.constant 0 : index
    %c0_40 = arith.constant 0 : index
    %c8 = arith.constant 8 : index
    %85 = vector.load %arg3[%c0_39, %c0_40, %c8] : memref<1x8x32xbf16, #tpu.memory_space<vmem>>, vector<1x8x8xbf16>
    %86 = vector.shape_cast %85 : vector<1x8x8xbf16> to vector<8x8xbf16>
    %c0_41 = arith.constant 0 : index
    %c0_42 = arith.constant 0 : index
    %c8_43 = arith.constant 8 : index
    %87 = vector.load %arg4[%c0_41, %c0_42, %c8_43] : memref<1x8x64xbf16, #tpu.memory_space<vmem>>, vector<1x8x8xbf16>
    %88 = vector.shape_cast %87 : vector<1x8x8xbf16> to vector<8x8xbf16>
    %c0_44 = arith.constant 0 : index
    %c0_45 = arith.constant 0 : index
    %c40 = arith.constant 40 : index
    %89 = vector.load %arg4[%c0_44, %c0_45, %c40] : memref<1x8x64xbf16, #tpu.memory_space<vmem>>, vector<1x8x8xbf16>
    %90 = vector.shape_cast %89 : vector<1x8x8xbf16> to vector<8x8xbf16>
    %c1_46 = arith.constant 1 : index
    %c0_47 = arith.constant 0 : index
    %c0_48 = arith.constant 0 : index
    %91 = vector.load %arg5[%c1_46, %c0_47, %c0_48] : memref<4x2x8xbf16, #tpu.memory_space<vmem>>, vector<1x2x8xbf16>
    %92 = vector.shape_cast %91 : vector<1x2x8xbf16> to vector<2x8xbf16>
    %cst_49 = arith.constant dense<0.000000e+00> : vector<8x8xf32>
    %93 = tpu.matmul %86, %88, %cst_49 {dimension_numbers = #tpu.dot_dimension_numbers<[1], [1], [0], [0], [0, 0, 1, 0], [], []>} : vector<8x8xbf16>, vector<8x8xbf16>, vector<8x8xf32> -> vector<8x8xf32>
    %cst_50 = arith.constant dense<0.000000e+00> : vector<8x2xf32>
    %94 = tpu.matmul %86, %92, %cst_50 {dimension_numbers = #tpu.dot_dimension_numbers<[1], [1], [0], [0], [0, 0, 1, 0], [], []>} : vector<8x8xbf16>, vector<2x8xbf16>, vector<8x2xf32> -> vector<8x2xf32>
    %cst_51 = arith.constant dense<0.000000e+00> : vector<2x8xf32>
    %95 = tpu.matmul %92, %88, %cst_51 {dimension_numbers = #tpu.dot_dimension_numbers<[1], [1], [0], [0], [0, 0, 1, 0], [], []>} : vector<2x8xbf16>, vector<8x8xbf16>, vector<2x8xf32> -> vector<2x8xf32>
    %cst_52 = arith.constant 0.000000e+00 : f32
    %96 = vector.broadcast %cst_52 : f32 to vector<8x8xf32>
    %c1_53 = arith.constant 1 : index
    %c0_54 = arith.constant 0 : index
    %97 = memref.load %arg6[%c1_53, %c0_54] : memref<4x2xf32, #tpu.memory_space<smem>>
    %c1_55 = arith.constant 1 : index
    %c0_56 = arith.constant 0 : index
    %98 = memref.load %arg7[%c1_55, %c0_56] : memref<4x2xf32, #tpu.memory_space<smem>>
    %c1_57 = arith.constant 1 : index
    %c0_58 = arith.constant 0 : index
    %99 = memref.load %arg8[%c1_57, %c0_58] : memref<4x2xf32, #tpu.memory_space<smem>>
    %c1_59 = arith.constant 1 : index
    %c0_60 = arith.constant 0 : index
    %100 = memref.load %arg9[%c1_59, %c0_60] : memref<4x2xf32, #tpu.memory_space<smem>>
    %101 = vector.extract_strided_slice %94 {offsets = [0, 0], sizes = [8, 1], strides = [1, 1]} : vector<8x2xf32> to vector<8x1xf32>
    %102 = vector.broadcast %101 : vector<8x1xf32> to vector<8x8xf32>
    %103 = arith.subf %93, %102 : vector<8x8xf32>
    %104 = vector.extract_strided_slice %95 {offsets = [0, 0], sizes = [1, 8], strides = [1, 1]} : vector<2x8xf32> to vector<1x8xf32>
    %105 = vector.broadcast %104 : vector<1x8xf32> to vector<8x8xf32>
    %106 = arith.subf %103, %105 : vector<8x8xf32>
    %107 = vector.broadcast %100 : f32 to vector<8x8xf32>
    %108 = arith.addf %106, %107 : vector<8x8xf32>
    %109 = vector.broadcast %97 : f32 to vector<8x8xf32>
    %110 = arith.mulf %109, %108 : vector<8x8xf32>
    %111 = vector.broadcast %98 : f32 to vector<8x8xf32>
    %112 = arith.addf %110, %111 : vector<8x8xf32>
    %113 = arith.select %7, %112, %110 : vector<8x8xi1>, vector<8x8xf32>
    %cst_61 = arith.constant dense<0xFF800000> : vector<8xf32>
    %114 = vector.multi_reduction <maximumf>, %113, %cst_61 [1] : vector<8x8xf32> to vector<8xf32>
    %115 = vector.shape_cast %114 : vector<8xf32> to vector<8x1xf32>
    %116 = vector.broadcast %115 : vector<8x1xf32> to vector<8x8xf32>
    %117 = arith.subf %113, %116 : vector<8x8xf32>
    %118 = math.exp %117 : vector<8x8xf32>
    %cst_62 = arith.constant dense<0.000000e+00> : vector<8xf32>
    %119 = vector.multi_reduction <add>, %118, %cst_62 [1] : vector<8x8xf32> to vector<8xf32>
    %120 = vector.shape_cast %119 : vector<8xf32> to vector<8x1xf32>
    %121 = tpu.reciprocal %120 {approx = true} : vector<8x1xf32> -> vector<8x1xf32>
    %122 = vector.broadcast %99 : f32 to vector<8x1xf32>
    %123 = arith.mulf %122, %121 : vector<8x1xf32>
    %124 = arith.truncf %118 : vector<8x8xf32> to vector<8x8xbf16>
    %cst_63 = arith.constant dense<0.000000e+00> : vector<8x8xf32>
    %125 = tpu.matmul %124, %90, %cst_63 {dimension_numbers = #tpu.dot_dimension_numbers<[1], [0], [0], [1], [0, 0, 1, 1], [], []>} : vector<8x8xbf16>, vector<8x8xbf16>, vector<8x8xf32> -> vector<8x8xf32>
    %126 = vector.broadcast %123 : vector<8x1xf32> to vector<8x8xf32>
    %127 = arith.mulf %126, %125 : vector<8x8xf32>
    %128 = arith.addf %96, %127 : vector<8x8xf32>
    %c1_64 = arith.constant 1 : index
    %c1_65 = arith.constant 1 : index
    %129 = memref.load %arg6[%c1_64, %c1_65] : memref<4x2xf32, #tpu.memory_space<smem>>
    %c1_66 = arith.constant 1 : index
    %c1_67 = arith.constant 1 : index
    %130 = memref.load %arg7[%c1_66, %c1_67] : memref<4x2xf32, #tpu.memory_space<smem>>
    %c1_68 = arith.constant 1 : index
    %c1_69 = arith.constant 1 : index
    %131 = memref.load %arg8[%c1_68, %c1_69] : memref<4x2xf32, #tpu.memory_space<smem>>
    %c1_70 = arith.constant 1 : index
    %c1_71 = arith.constant 1 : index
    %132 = memref.load %arg9[%c1_70, %c1_71] : memref<4x2xf32, #tpu.memory_space<smem>>
    %133 = vector.extract_strided_slice %94 {offsets = [0, 1], sizes = [8, 1], strides = [1, 1]} : vector<8x2xf32> to vector<8x1xf32>
    %134 = vector.broadcast %133 : vector<8x1xf32> to vector<8x8xf32>
    %135 = arith.subf %93, %134 : vector<8x8xf32>
    %136 = vector.extract_strided_slice %95 {offsets = [1, 0], sizes = [1, 8], strides = [1, 1]} : vector<2x8xf32> to vector<1x8xf32>
    %137 = vector.broadcast %136 : vector<1x8xf32> to vector<8x8xf32>
    %138 = arith.subf %135, %137 : vector<8x8xf32>
    %139 = vector.broadcast %132 : f32 to vector<8x8xf32>
    %140 = arith.addf %138, %139 : vector<8x8xf32>
    %141 = vector.broadcast %129 : f32 to vector<8x8xf32>
    %142 = arith.mulf %141, %140 : vector<8x8xf32>
    %143 = vector.broadcast %130 : f32 to vector<8x8xf32>
    %144 = arith.addf %142, %143 : vector<8x8xf32>
    %145 = arith.select %7, %144, %142 : vector<8x8xi1>, vector<8x8xf32>
    %cst_72 = arith.constant dense<0xFF800000> : vector<8xf32>
    %146 = vector.multi_reduction <maximumf>, %145, %cst_72 [1] : vector<8x8xf32> to vector<8xf32>
    %147 = vector.shape_cast %146 : vector<8xf32> to vector<8x1xf32>
    %148 = vector.broadcast %147 : vector<8x1xf32> to vector<8x8xf32>
    %149 = arith.subf %145, %148 : vector<8x8xf32>
    %150 = math.exp %149 : vector<8x8xf32>
    %cst_73 = arith.constant dense<0.000000e+00> : vector<8xf32>
    %151 = vector.multi_reduction <add>, %150, %cst_73 [1] : vector<8x8xf32> to vector<8xf32>
    %152 = vector.shape_cast %151 : vector<8xf32> to vector<8x1xf32>
    %153 = tpu.reciprocal %152 {approx = true} : vector<8x1xf32> -> vector<8x1xf32>
    %154 = vector.broadcast %131 : f32 to vector<8x1xf32>
    %155 = arith.mulf %154, %153 : vector<8x1xf32>
    %156 = arith.truncf %150 : vector<8x8xf32> to vector<8x8xbf16>
    %cst_74 = arith.constant dense<0.000000e+00> : vector<8x8xf32>
    %157 = tpu.matmul %156, %90, %cst_74 {dimension_numbers = #tpu.dot_dimension_numbers<[1], [0], [0], [1], [0, 0, 1, 1], [], []>} : vector<8x8xbf16>, vector<8x8xbf16>, vector<8x8xf32> -> vector<8x8xf32>
    %158 = vector.broadcast %155 : vector<8x1xf32> to vector<8x8xf32>
    %159 = arith.mulf %158, %157 : vector<8x8xf32>
    %160 = arith.addf %128, %159 : vector<8x8xf32>
    %c0_75 = arith.constant 0 : index
    %c8_76 = arith.constant 8 : index
    %161 = vector.load %arg19[%c0_75, %c8_76] : memref<8x32xf32, #tpu.memory_space<vmem>>, vector<8x8xf32>
    tpu.vector_store %arg19[%c0_75, %c8_76], %160 {strides = array<i32>} : memref<8x32xf32, #tpu.memory_space<vmem>>, vector<8x8xf32>,
    %c0_77 = arith.constant 0 : index
    %c0_78 = arith.constant 0 : index
    %c16 = arith.constant 16 : index
    %162 = vector.load %arg3[%c0_77, %c0_78, %c16] : memref<1x8x32xbf16, #tpu.memory_space<vmem>>, vector<1x8x8xbf16>
    %163 = vector.shape_cast %162 : vector<1x8x8xbf16> to vector<8x8xbf16>
    %c0_79 = arith.constant 0 : index
    %c0_80 = arith.constant 0 : index
    %c16_81 = arith.constant 16 : index
    %164 = vector.load %arg4[%c0_79, %c0_80, %c16_81] : memref<1x8x64xbf16, #tpu.memory_space<vmem>>, vector<1x8x8xbf16>
    %165 = vector.shape_cast %164 : vector<1x8x8xbf16> to vector<8x8xbf16>
    %c0_82 = arith.constant 0 : index
    %c0_83 = arith.constant 0 : index
    %c48 = arith.constant 48 : index
    %166 = vector.load %arg4[%c0_82, %c0_83, %c48] : memref<1x8x64xbf16, #tpu.memory_space<vmem>>, vector<1x8x8xbf16>
    %167 = vector.shape_cast %166 : vector<1x8x8xbf16> to vector<8x8xbf16>
    %c2 = arith.constant 2 : index
    %c0_84 = arith.constant 0 : index
    %c0_85 = arith.constant 0 : index
    %168 = vector.load %arg5[%c2, %c0_84, %c0_85] : memref<4x2x8xbf16, #tpu.memory_space<vmem>>, vector<1x2x8xbf16>
    %169 = vector.shape_cast %168 : vector<1x2x8xbf16> to vector<2x8xbf16>
    %cst_86 = arith.constant dense<0.000000e+00> : vector<8x8xf32>
    %170 = tpu.matmul %163, %165, %cst_86 {dimension_numbers = #tpu.dot_dimension_numbers<[1], [1], [0], [0], [0, 0, 1, 0], [], []>} : vector<8x8xbf16>, vector<8x8xbf16>, vector<8x8xf32> -> vector<8x8xf32>
    %cst_87 = arith.constant dense<0.000000e+00> : vector<8x2xf32>
    %171 = tpu.matmul %163, %169, %cst_87 {dimension_numbers = #tpu.dot_dimension_numbers<[1], [1], [0], [0], [0, 0, 1, 0], [], []>} : vector<8x8xbf16>, vector<2x8xbf16>, vector<8x2xf32> -> vector<8x2xf32>
    %cst_88 = arith.constant dense<0.000000e+00> : vector<2x8xf32>
    %172 = tpu.matmul %169, %165, %cst_88 {dimension_numbers = #tpu.dot_dimension_numbers<[1], [1], [0], [0], [0, 0, 1, 0], [], []>} : vector<2x8xbf16>, vector<8x8xbf16>, vector<2x8xf32> -> vector<2x8xf32>
    %cst_89 = arith.constant 0.000000e+00 : f32
    %173 = vector.broadcast %cst_89 : f32 to vector<8x8xf32>
    %c2_90 = arith.constant 2 : index
    %c0_91 = arith.constant 0 : index
    %174 = memref.load %arg6[%c2_90, %c0_91] : memref<4x2xf32, #tpu.memory_space<smem>>
    %c2_92 = arith.constant 2 : index
    %c0_93 = arith.constant 0 : index
    %175 = memref.load %arg7[%c2_92, %c0_93] : memref<4x2xf32, #tpu.memory_space<smem>>
    %c2_94 = arith.constant 2 : index
    %c0_95 = arith.constant 0 : index
    %176 = memref.load %arg8[%c2_94, %c0_95] : memref<4x2xf32, #tpu.memory_space<smem>>
    %c2_96 = arith.constant 2 : index
    %c0_97 = arith.constant 0 : index
    %177 = memref.load %arg9[%c2_96, %c0_97] : memref<4x2xf32, #tpu.memory_space<smem>>
    %178 = vector.extract_strided_slice %171 {offsets = [0, 0], sizes = [8, 1], strides = [1, 1]} : vector<8x2xf32> to vector<8x1xf32>
    %179 = vector.broadcast %178 : vector<8x1xf32> to vector<8x8xf32>
    %180 = arith.subf %170, %179 : vector<8x8xf32>
    %181 = vector.extract_strided_slice %172 {offsets = [0, 0], sizes = [1, 8], strides = [1, 1]} : vector<2x8xf32> to vector<1x8xf32>
    %182 = vector.broadcast %181 : vector<1x8xf32> to vector<8x8xf32>
    %183 = arith.subf %180, %182 : vector<8x8xf32>
    %184 = vector.broadcast %177 : f32 to vector<8x8xf32>
    %185 = arith.addf %183, %184 : vector<8x8xf32>
    %186 = vector.broadcast %174 : f32 to vector<8x8xf32>
    %187 = arith.mulf %186, %185 : vector<8x8xf32>
    %188 = vector.broadcast %175 : f32 to vector<8x8xf32>
    %189 = arith.addf %187, %188 : vector<8x8xf32>
    %190 = arith.select %7, %189, %187 : vector<8x8xi1>, vector<8x8xf32>
    %cst_98 = arith.constant dense<0xFF800000> : vector<8xf32>
    %191 = vector.multi_reduction <maximumf>, %190, %cst_98 [1] : vector<8x8xf32> to vector<8xf32>
    %192 = vector.shape_cast %191 : vector<8xf32> to vector<8x1xf32>
    %193 = vector.broadcast %192 : vector<8x1xf32> to vector<8x8xf32>
    %194 = arith.subf %190, %193 : vector<8x8xf32>
    %195 = math.exp %194 : vector<8x8xf32>
    %cst_99 = arith.constant dense<0.000000e+00> : vector<8xf32>
    %196 = vector.multi_reduction <add>, %195, %cst_99 [1] : vector<8x8xf32> to vector<8xf32>
    %197 = vector.shape_cast %196 : vector<8xf32> to vector<8x1xf32>
    %198 = tpu.reciprocal %197 {approx = true} : vector<8x1xf32> -> vector<8x1xf32>
    %199 = vector.broadcast %176 : f32 to vector<8x1xf32>
    %200 = arith.mulf %199, %198 : vector<8x1xf32>
    %201 = arith.truncf %195 : vector<8x8xf32> to vector<8x8xbf16>
    %cst_100 = arith.constant dense<0.000000e+00> : vector<8x8xf32>
    %202 = tpu.matmul %201, %167, %cst_100 {dimension_numbers = #tpu.dot_dimension_numbers<[1], [0], [0], [1], [0, 0, 1, 1], [], []>} : vector<8x8xbf16>, vector<8x8xbf16>, vector<8x8xf32> -> vector<8x8xf32>
    %203 = vector.broadcast %200 : vector<8x1xf32> to vector<8x8xf32>
    %204 = arith.mulf %203, %202 : vector<8x8xf32>
    %205 = arith.addf %173, %204 : vector<8x8xf32>
    %c2_101 = arith.constant 2 : index
    %c1_102 = arith.constant 1 : index
    %206 = memref.load %arg6[%c2_101, %c1_102] : memref<4x2xf32, #tpu.memory_space<smem>>
    %c2_103 = arith.constant 2 : index
    %c1_104 = arith.constant 1 : index
    %207 = memref.load %arg7[%c2_103, %c1_104] : memref<4x2xf32, #tpu.memory_space<smem>>
    %c2_105 = arith.constant 2 : index
    %c1_106 = arith.constant 1 : index
    %208 = memref.load %arg8[%c2_105, %c1_106] : memref<4x2xf32, #tpu.memory_space<smem>>
    %c2_107 = arith.constant 2 : index
    %c1_108 = arith.constant 1 : index
    %209 = memref.load %arg9[%c2_107, %c1_108] : memref<4x2xf32, #tpu.memory_space<smem>>
    %210 = vector.extract_strided_slice %171 {offsets = [0, 1], sizes = [8, 1], strides = [1, 1]} : vector<8x2xf32> to vector<8x1xf32>
    %211 = vector.broadcast %210 : vector<8x1xf32> to vector<8x8xf32>
    %212 = arith.subf %170, %211 : vector<8x8xf32>
    %213 = vector.extract_strided_slice %172 {offsets = [1, 0], sizes = [1, 8], strides = [1, 1]} : vector<2x8xf32> to vector<1x8xf32>
    %214 = vector.broadcast %213 : vector<1x8xf32> to vector<8x8xf32>
    %215 = arith.subf %212, %214 : vector<8x8xf32>
    %216 = vector.broadcast %209 : f32 to vector<8x8xf32>
    %217 = arith.addf %215, %216 : vector<8x8xf32>
    %218 = vector.broadcast %206 : f32 to vector<8x8xf32>
    %219 = arith.mulf %218, %217 : vector<8x8xf32>
    %220 = vector.broadcast %207 : f32 to vector<8x8xf32>
    %221 = arith.addf %219, %220 : vector<8x8xf32>
    %222 = arith.select %7, %221, %219 : vector<8x8xi1>, vector<8x8xf32>
    %cst_109 = arith.constant dense<0xFF800000> : vector<8xf32>
    %223 = vector.multi_reduction <maximumf>, %222, %cst_109 [1] : vector<8x8xf32> to vector<8xf32>
    %224 = vector.shape_cast %223 : vector<8xf32> to vector<8x1xf32>
    %225 = vector.broadcast %224 : vector<8x1xf32> to vector<8x8xf32>
    %226 = arith.subf %222, %225 : vector<8x8xf32>
    %227 = math.exp %226 : vector<8x8xf32>
    %cst_110 = arith.constant dense<0.000000e+00> : vector<8xf32>
    %228 = vector.multi_reduction <add>, %227, %cst_110 [1] : vector<8x8xf32> to vector<8xf32>
    %229 = vector.shape_cast %228 : vector<8xf32> to vector<8x1xf32>
    %230 = tpu.reciprocal %229 {approx = true} : vector<8x1xf32> -> vector<8x1xf32>
    %231 = vector.broadcast %208 : f32 to vector<8x1xf32>
    %232 = arith.mulf %231, %230 : vector<8x1xf32>
    %233 = arith.truncf %227 : vector<8x8xf32> to vector<8x8xbf16>
    %cst_111 = arith.constant dense<0.000000e+00> : vector<8x8xf32>
    %234 = tpu.matmul %233, %167, %cst_111 {dimension_numbers = #tpu.dot_dimension_numbers<[1], [0], [0], [1], [0, 0, 1, 1], [], []>} : vector<8x8xbf16>, vector<8x8xbf16>, vector<8x8xf32> -> vector<8x8xf32>
    %235 = vector.broadcast %232 : vector<8x1xf32> to vector<8x8xf32>
    %236 = arith.mulf %235, %234 : vector<8x8xf32>
    %237 = arith.addf %205, %236 : vector<8x8xf32>
    %c0_112 = arith.constant 0 : index
    %c16_113 = arith.constant 16 : index
    %238 = vector.load %arg19[%c0_112, %c16_113] : memref<8x32xf32, #tpu.memory_space<vmem>>, vector<8x8xf32>
    tpu.vector_store %arg19[%c0_112, %c16_113], %237 {strides = array<i32>} : memref<8x32xf32, #tpu.memory_space<vmem>>, vector<8x8xf32>,
    %c0_114 = arith.constant 0 : index
    %c0_115 = arith.constant 0 : index
    %c24 = arith.constant 24 : index
    %239 = vector.load %arg3[%c0_114, %c0_115, %c24] : memref<1x8x32xbf16, #tpu.memory_space<vmem>>, vector<1x8x8xbf16>
    %240 = vector.shape_cast %239 : vector<1x8x8xbf16> to vector<8x8xbf16>
    %c0_116 = arith.constant 0 : index
    %c0_117 = arith.constant 0 : index
    %c24_118 = arith.constant 24 : index
    %241 = vector.load %arg4[%c0_116, %c0_117, %c24_118] : memref<1x8x64xbf16, #tpu.memory_space<vmem>>, vector<1x8x8xbf16>
    %242 = vector.shape_cast %241 : vector<1x8x8xbf16> to vector<8x8xbf16>
    %c0_119 = arith.constant 0 : index
    %c0_120 = arith.constant 0 : index
    %c56 = arith.constant 56 : index
    %243 = vector.load %arg4[%c0_119, %c0_120, %c56] : memref<1x8x64xbf16, #tpu.memory_space<vmem>>, vector<1x8x8xbf16>
    %244 = vector.shape_cast %243 : vector<1x8x8xbf16> to vector<8x8xbf16>
    %c3 = arith.constant 3 : index
    %c0_121 = arith.constant 0 : index
    %c0_122 = arith.constant 0 : index
    %245 = vector.load %arg5[%c3, %c0_121, %c0_122] : memref<4x2x8xbf16, #tpu.memory_space<vmem>>, vector<1x2x8xbf16>
    %246 = vector.shape_cast %245 : vector<1x2x8xbf16> to vector<2x8xbf16>
    %cst_123 = arith.constant dense<0.000000e+00> : vector<8x8xf32>
    %247 = tpu.matmul %240, %242, %cst_123 {dimension_numbers = #tpu.dot_dimension_numbers<[1], [1], [0], [0], [0, 0, 1, 0], [], []>} : vector<8x8xbf16>, vector<8x8xbf16>, vector<8x8xf32> -> vector<8x8xf32>
    %cst_124 = arith.constant dense<0.000000e+00> : vector<8x2xf32>
    %248 = tpu.matmul %240, %246, %cst_124 {dimension_numbers = #tpu.dot_dimension_numbers<[1], [1], [0], [0], [0, 0, 1, 0], [], []>} : vector<8x8xbf16>, vector<2x8xbf16>, vector<8x2xf32> -> vector<8x2xf32>
    %cst_125 = arith.constant dense<0.000000e+00> : vector<2x8xf32>
    %249 = tpu.matmul %246, %242, %cst_125 {dimension_numbers = #tpu.dot_dimension_numbers<[1], [1], [0], [0], [0, 0, 1, 0], [], []>} : vector<2x8xbf16>, vector<8x8xbf16>, vector<2x8xf32> -> vector<2x8xf32>
    %cst_126 = arith.constant 0.000000e+00 : f32
    %250 = vector.broadcast %cst_126 : f32 to vector<8x8xf32>
    %c3_127 = arith.constant 3 : index
    %c0_128 = arith.constant 0 : index
    %251 = memref.load %arg6[%c3_127, %c0_128] : memref<4x2xf32, #tpu.memory_space<smem>>
    %c3_129 = arith.constant 3 : index
    %c0_130 = arith.constant 0 : index
    %252 = memref.load %arg7[%c3_129, %c0_130] : memref<4x2xf32, #tpu.memory_space<smem>>
    %c3_131 = arith.constant 3 : index
    %c0_132 = arith.constant 0 : index
    %253 = memref.load %arg8[%c3_131, %c0_132] : memref<4x2xf32, #tpu.memory_space<smem>>
    %c3_133 = arith.constant 3 : index
    %c0_134 = arith.constant 0 : index
    %254 = memref.load %arg9[%c3_133, %c0_134] : memref<4x2xf32, #tpu.memory_space<smem>>
    %255 = vector.extract_strided_slice %248 {offsets = [0, 0], sizes = [8, 1], strides = [1, 1]} : vector<8x2xf32> to vector<8x1xf32>
    %256 = vector.broadcast %255 : vector<8x1xf32> to vector<8x8xf32>
    %257 = arith.subf %247, %256 : vector<8x8xf32>
    %258 = vector.extract_strided_slice %249 {offsets = [0, 0], sizes = [1, 8], strides = [1, 1]} : vector<2x8xf32> to vector<1x8xf32>
    %259 = vector.broadcast %258 : vector<1x8xf32> to vector<8x8xf32>
    %260 = arith.subf %257, %259 : vector<8x8xf32>
    %261 = vector.broadcast %254 : f32 to vector<8x8xf32>
    %262 = arith.addf %260, %261 : vector<8x8xf32>
    %263 = vector.broadcast %251 : f32 to vector<8x8xf32>
    %264 = arith.mulf %263, %262 : vector<8x8xf32>
    %265 = vector.broadcast %252 : f32 to vector<8x8xf32>
    %266 = arith.addf %264, %265 : vector<8x8xf32>
    %267 = arith.select %7, %266, %264 : vector<8x8xi1>, vector<8x8xf32>
    %cst_135 = arith.constant dense<0xFF800000> : vector<8xf32>
    %268 = vector.multi_reduction <maximumf>, %267, %cst_135 [1] : vector<8x8xf32> to vector<8xf32>
    %269 = vector.shape_cast %268 : vector<8xf32> to vector<8x1xf32>
    %270 = vector.broadcast %269 : vector<8x1xf32> to vector<8x8xf32>
    %271 = arith.subf %267, %270 : vector<8x8xf32>
    %272 = math.exp %271 : vector<8x8xf32>
    %cst_136 = arith.constant dense<0.000000e+00> : vector<8xf32>
    %273 = vector.multi_reduction <add>, %272, %cst_136 [1] : vector<8x8xf32> to vector<8xf32>
    %274 = vector.shape_cast %273 : vector<8xf32> to vector<8x1xf32>
    %275 = tpu.reciprocal %274 {approx = true} : vector<8x1xf32> -> vector<8x1xf32>
    %276 = vector.broadcast %253 : f32 to vector<8x1xf32>
    %277 = arith.mulf %276, %275 : vector<8x1xf32>
    %278 = arith.truncf %272 : vector<8x8xf32> to vector<8x8xbf16>
    %cst_137 = arith.constant dense<0.000000e+00> : vector<8x8xf32>
    %279 = tpu.matmul %278, %244, %cst_137 {dimension_numbers = #tpu.dot_dimension_numbers<[1], [0], [0], [1], [0, 0, 1, 1], [], []>} : vector<8x8xbf16>, vector<8x8xbf16>, vector<8x8xf32> -> vector<8x8xf32>
    %280 = vector.broadcast %277 : vector<8x1xf32> to vector<8x8xf32>
    %281 = arith.mulf %280, %279 : vector<8x8xf32>
    %282 = arith.addf %250, %281 : vector<8x8xf32>
    %c3_138 = arith.constant 3 : index
    %c1_139 = arith.constant 1 : index
    %283 = memref.load %arg6[%c3_138, %c1_139] : memref<4x2xf32, #tpu.memory_space<smem>>
    %c3_140 = arith.constant 3 : index
    %c1_141 = arith.constant 1 : index
    %284 = memref.load %arg7[%c3_140, %c1_141] : memref<4x2xf32, #tpu.memory_space<smem>>
    %c3_142 = arith.constant 3 : index
    %c1_143 = arith.constant 1 : index
    %285 = memref.load %arg8[%c3_142, %c1_143] : memref<4x2xf32, #tpu.memory_space<smem>>
    %c3_144 = arith.constant 3 : index
    %c1_145 = arith.constant 1 : index
    %286 = memref.load %arg9[%c3_144, %c1_145] : memref<4x2xf32, #tpu.memory_space<smem>>
    %287 = vector.extract_strided_slice %248 {offsets = [0, 1], sizes = [8, 1], strides = [1, 1]} : vector<8x2xf32> to vector<8x1xf32>
    %288 = vector.broadcast %287 : vector<8x1xf32> to vector<8x8xf32>
    %289 = arith.subf %247, %288 : vector<8x8xf32>
    %290 = vector.extract_strided_slice %249 {offsets = [1, 0], sizes = [1, 8], strides = [1, 1]} : vector<2x8xf32> to vector<1x8xf32>
    %291 = vector.broadcast %290 : vector<1x8xf32> to vector<8x8xf32>
    %292 = arith.subf %289, %291 : vector<8x8xf32>
    %293 = vector.broadcast %286 : f32 to vector<8x8xf32>
    %294 = arith.addf %292, %293 : vector<8x8xf32>
    %295 = vector.broadcast %283 : f32 to vector<8x8xf32>
    %296 = arith.mulf %295, %294 : vector<8x8xf32>
    %297 = vector.broadcast %284 : f32 to vector<8x8xf32>
    %298 = arith.addf %296, %297 : vector<8x8xf32>
    %299 = arith.select %7, %298, %296 : vector<8x8xi1>, vector<8x8xf32>
    %cst_146 = arith.constant dense<0xFF800000> : vector<8xf32>
    %300 = vector.multi_reduction <maximumf>, %299, %cst_146 [1] : vector<8x8xf32> to vector<8xf32>
    %301 = vector.shape_cast %300 : vector<8xf32> to vector<8x1xf32>
    %302 = vector.broadcast %301 : vector<8x1xf32> to vector<8x8xf32>
    %303 = arith.subf %299, %302 : vector<8x8xf32>
    %304 = math.exp %303 : vector<8x8xf32>
    %cst_147 = arith.constant dense<0.000000e+00> : vector<8xf32>
    %305 = vector.multi_reduction <add>, %304, %cst_147 [1] : vector<8x8xf32> to vector<8xf32>
    %306 = vector.shape_cast %305 : vector<8xf32> to vector<8x1xf32>
    %307 = tpu.reciprocal %306 {approx = true} : vector<8x1xf32> -> vector<8x1xf32>
    %308 = vector.broadcast %285 : f32 to vector<8x1xf32>
    %309 = arith.mulf %308, %307 : vector<8x1xf32>
    %310 = arith.truncf %304 : vector<8x8xf32> to vector<8x8xbf16>
    %cst_148 = arith.constant dense<0.000000e+00> : vector<8x8xf32>
    %311 = tpu.matmul %310, %244, %cst_148 {dimension_numbers = #tpu.dot_dimension_numbers<[1], [0], [0], [1], [0, 0, 1, 1], [], []>} : vector<8x8xbf16>, vector<8x8xbf16>, vector<8x8xf32> -> vector<8x8xf32>
    %312 = vector.broadcast %309 : vector<8x1xf32> to vector<8x8xf32>
    %313 = arith.mulf %312, %311 : vector<8x8xf32>
    %314 = arith.addf %282, %313 : vector<8x8xf32>
    %c0_149 = arith.constant 0 : index
    %c24_150 = arith.constant 24 : index
    %315 = vector.load %arg19[%c0_149, %c24_150] : memref<8x32xf32, #tpu.memory_space<vmem>>, vector<8x8xf32>
    tpu.vector_store %arg19[%c0_149, %c24_150], %314 {strides = array<i32>} : memref<8x32xf32, #tpu.memory_space<vmem>>, vector<8x8xf32>,
    %c0_151 = arith.constant 0 : index
    %c0_152 = arith.constant 0 : index
    %316 = vector.load %arg19[%c0_151, %c0_152] : memref<8x32xf32, #tpu.memory_space<vmem>>, vector<8x32xf32>
    %317 = arith.truncf %316 : vector<8x32xf32> to vector<8x32xbf16>
    %c0_153 = arith.constant 0 : index
    %c0_154 = arith.constant 0 : index
    %318 = vector.load %arg10[%c0_153, %c0_154] : memref<32x32xbf16, #tpu.memory_space<vmem>>, vector<32x32xbf16>
    %cst_155 = arith.constant dense<0.000000e+00> : vector<8x32xf32>
    %319 = tpu.matmul %317, %318, %cst_155 {dimension_numbers = #tpu.dot_dimension_numbers<[1], [0], [0], [1], [0, 0, 1, 1], [], []>} : vector<8x32xbf16>, vector<32x32xbf16>, vector<8x32xf32> -> vector<8x32xf32>
    %c0_156 = arith.constant 0 : index
    %c0_157 = arith.constant 0 : index
    %320 = vector.load %arg11[%c0_156, %c0_157] : memref<1x32xf32, #tpu.memory_space<vmem>>, vector<1x32xf32>
    %321 = vector.broadcast %320 : vector<1x32xf32> to vector<8x32xf32>
    %322 = arith.addf %319, %321 : vector<8x32xf32>
    %323 = arith.addf %1, %322 : vector<8x32xf32>
    %cst_158 = arith.constant dense<0.000000e+00> : vector<8xf32>
    %324 = vector.multi_reduction <add>, %323, %cst_158 [1] : vector<8x32xf32> to vector<8xf32>
    %325 = vector.shape_cast %324 : vector<8xf32> to vector<8x1xf32>
    %cst_159 = arith.constant 3.200000e+01 : f32
    %326 = vector.broadcast %cst_159 : f32 to vector<8x1xf32>
    %327 = arith.divf %325, %326 : vector<8x1xf32>
    %328 = vector.broadcast %327 : vector<8x1xf32> to vector<8x32xf32>
    %329 = arith.subf %323, %328 : vector<8x32xf32>
    %330 = arith.mulf %329, %329 : vector<8x32xf32>
    %cst_160 = arith.constant dense<0.000000e+00> : vector<8xf32>
    %331 = vector.multi_reduction <add>, %330, %cst_160 [1] : vector<8x32xf32> to vector<8xf32>
    %332 = vector.shape_cast %331 : vector<8xf32> to vector<8x1xf32>
    %cst_161 = arith.constant 3.200000e+01 : f32
    %333 = vector.broadcast %cst_161 : f32 to vector<8x1xf32>
    %334 = arith.divf %332, %333 : vector<8x1xf32>
    %cst_162 = arith.constant 9.99999974E-6 : f32
    %335 = vector.broadcast %cst_162 : f32 to vector<8x1xf32>
    %336 = arith.addf %334, %335 : vector<8x1xf32>
    %337 = math.rsqrt %336 : vector<8x1xf32>
    %338 = vector.broadcast %337 : vector<8x1xf32> to vector<8x32xf32>
    %339 = arith.mulf %329, %338 : vector<8x32xf32>
    %c0_163 = arith.constant 0 : index
    %c0_164 = arith.constant 0 : index
    %340 = vector.load %arg12[%c0_163, %c0_164] : memref<1x32xf32, #tpu.memory_space<vmem>>, vector<1x32xf32>
    %341 = vector.broadcast %340 : vector<1x32xf32> to vector<8x32xf32>
    %342 = arith.mulf %339, %341 : vector<8x32xf32>
    %c0_165 = arith.constant 0 : index
    %c0_166 = arith.constant 0 : index
    %343 = vector.load %arg13[%c0_165, %c0_166] : memref<1x32xf32, #tpu.memory_space<vmem>>, vector<1x32xf32>
    %344 = vector.broadcast %343 : vector<1x32xf32> to vector<8x32xf32>
    %345 = arith.addf %342, %344 : vector<8x32xf32>
    %346 = arith.truncf %345 : vector<8x32xf32> to vector<8x32xbf16>
    %c0_167 = arith.constant 0 : index
    %c0_168 = arith.constant 0 : index
    %347 = vector.load %arg14[%c0_167, %c0_168] : memref<32x128xbf16, #tpu.memory_space<vmem>>, vector<32x128xbf16>
    %cst_169 = arith.constant dense<0.000000e+00> : vector<8x128xf32>
    %348 = tpu.matmul %346, %347, %cst_169 {dimension_numbers = #tpu.dot_dimension_numbers<[1], [0], [0], [1], [0, 0, 1, 1], [], []>} : vector<8x32xbf16>, vector<32x128xbf16>, vector<8x128xf32> -> vector<8x128xf32>
    %c0_170 = arith.constant 0 : index
    %c0_171 = arith.constant 0 : index
    %349 = vector.load %arg15[%c0_170, %c0_171] : memref<1x128xf32, #tpu.memory_space<vmem>>, vector<1x128xf32>
    %350 = vector.broadcast %349 : vector<1x128xf32> to vector<8x128xf32>
    %351 = arith.addf %348, %350 : vector<8x128xf32>
    %cst_172 = arith.constant 5.000000e-01 : f32
    %352 = vector.broadcast %cst_172 : f32 to vector<8x128xf32>
    %353 = arith.mulf %352, %351 : vector<8x128xf32>
    %cst_173 = arith.constant 4.471500e-02 : f32
    %354 = vector.broadcast %cst_173 : f32 to vector<8x128xf32>
    %355 = arith.mulf %354, %351 : vector<8x128xf32>
    %356 = arith.mulf %355, %351 : vector<8x128xf32>
    %357 = arith.mulf %356, %351 : vector<8x128xf32>
    %358 = arith.addf %351, %357 : vector<8x128xf32>
    %cst_174 = arith.constant 0.797884583 : f32
    %359 = vector.broadcast %cst_174 : f32 to vector<8x128xf32>
    %360 = arith.mulf %359, %358 : vector<8x128xf32>
    %361 = math.tanh %360 : vector<8x128xf32>
    %cst_175 = arith.constant 1.000000e+00 : f32
    %362 = vector.broadcast %cst_175 : f32 to vector<8x128xf32>
    %363 = arith.addf %362, %361 : vector<8x128xf32>
    %364 = arith.mulf %353, %363 : vector<8x128xf32>
    %365 = arith.truncf %364 : vector<8x128xf32> to vector<8x128xbf16>
    %c0_176 = arith.constant 0 : index
    %c0_177 = arith.constant 0 : index
    %366 = vector.load %arg16[%c0_176, %c0_177] : memref<128x32xbf16, #tpu.memory_space<vmem>>, vector<128x32xbf16>
    %cst_178 = arith.constant dense<0.000000e+00> : vector<8x32xf32>
    %367 = tpu.matmul %365, %366, %cst_178 {dimension_numbers = #tpu.dot_dimension_numbers<[1], [0], [0], [1], [0, 0, 1, 1], [], []>} : vector<8x128xbf16>, vector<128x32xbf16>, vector<8x32xf32> -> vector<8x32xf32>
    %c0_179 = arith.constant 0 : index
    %c0_180 = arith.constant 0 : index
    %368 = vector.load %arg17[%c0_179, %c0_180] : memref<1x32xf32, #tpu.memory_space<vmem>>, vector<1x32xf32>
    %369 = vector.broadcast %368 : vector<1x32xf32> to vector<8x32xf32>
    %370 = arith.addf %367, %369 : vector<8x32xf32>
    %371 = arith.addf %323, %370 : vector<8x32xf32>
    %c0_181 = arith.constant 0 : index
    %c0_182 = arith.constant 0 : index
    %c0_183 = arith.constant 0 : index
    %372 = vector.load %arg18[%c0_181, %c0_182, %c0_183] : memref<1x8x32xf32, #tpu.memory_space<vmem>>, vector<1x8x32xf32>
    %373 = vector.shape_cast %372 : vector<1x8x32xf32> to vector<8x32xf32>
    %374 = vector.shape_cast %371 : vector<8x32xf32> to vector<1x8x32xf32>
    tpu.vector_store %arg18[%c0_181, %c0_182, %c0_183], %374 {strides = array<i32>} : memref<1x8x32xf32, #tpu.memory_space<vmem>>, vector<1x8x32xf32>,
    return
  }
  func.func @transform_0(%arg0: i32, %arg1: i32) -> (i32, i32, i32) {
    %c0_i32 = arith.constant 0 : i32
    %c0_i32_0 = arith.constant 0 : i32
    return %arg0, %arg1, %c0_i32 : i32, i32, i32
  }
  func.func @transform_1(%arg0: i32, %arg1: i32) -> (i32, i32, i32) {
    %c0_i32 = arith.constant 0 : i32
    %c0_i32_0 = arith.constant 0 : i32
    return %arg0, %arg1, %c0_i32 : i32, i32, i32
  }
  func.func @transform_2(%arg0: i32, %arg1: i32) -> (i32, i32, i32) {
    %c0_i32 = arith.constant 0 : i32
    %c0_i32_0 = arith.constant 0 : i32
    %c0_i32_1 = arith.constant 0 : i32
    return %arg0, %c0_i32, %c0_i32_0 : i32, i32, i32
  }
  func.func @transform_3(%arg0: i32, %arg1: i32) -> (i32, i32, i32) {
    %c0_i32 = arith.constant 0 : i32
    %c0_i32_0 = arith.constant 0 : i32
    %c0_i32_1 = arith.constant 0 : i32
    %c0_i32_2 = arith.constant 0 : i32
    return %c0_i32, %c0_i32_0, %c0_i32_1 : i32, i32, i32
  }
  func.func @transform_4(%arg0: i32, %arg1: i32) -> (i32, i32) {
    %c0_i32 = arith.constant 0 : i32
    %c0_i32_0 = arith.constant 0 : i32
    %c0_i32_1 = arith.constant 0 : i32
    return %c0_i32, %c0_i32_0 : i32, i32
  }
  func.func @transform_5(%arg0: i32, %arg1: i32) -> (i32, i32) {
    %c0_i32 = arith.constant 0 : i32
    %c0_i32_0 = arith.constant 0 : i32
    %c0_i32_1 = arith.constant 0 : i32
    return %c0_i32, %c0_i32_0 : i32, i32
  }
  func.func @transform_6(%arg0: i32, %arg1: i32) -> (i32, i32) {
    %c0_i32 = arith.constant 0 : i32
    %c0_i32_0 = arith.constant 0 : i32
    %c0_i32_1 = arith.constant 0 : i32
    return %c0_i32, %c0_i32_0 : i32, i32
  }
  func.func @transform_7(%arg0: i32, %arg1: i32) -> (i32, i32) {
    %c0_i32 = arith.constant 0 : i32
    %c0_i32_0 = arith.constant 0 : i32
    %c0_i32_1 = arith.constant 0 : i32
    return %c0_i32, %c0_i32_0 : i32, i32
  }
  func.func @transform_8(%arg0: i32, %arg1: i32) -> (i32, i32) {
    %c0_i32 = arith.constant 0 : i32
    %c0_i32_0 = arith.constant 0 : i32
    %c0_i32_1 = arith.constant 0 : i32
    return %c0_i32, %c0_i32_0 : i32, i32
  }
  func.func @transform_9(%arg0: i32, %arg1: i32) -> (i32, i32) {
    %c0_i32 = arith.constant 0 : i32
    %c0_i32_0 = arith.constant 0 : i32
    %c0_i32_1 = arith.constant 0 : i32
    return %c0_i32, %c0_i32_0 : i32, i32
  }
  func.func @transform_10(%arg0: i32, %arg1: i32) -> (i32, i32) {
    %c0_i32 = arith.constant 0 : i32
    %c0_i32_0 = arith.constant 0 : i32
    %c0_i32_1 = arith.constant 0 : i32
    return %c0_i32, %c0_i32_0 : i32, i32
  }
  func.func @transform_11(%arg0: i32, %arg1: i32) -> (i32, i32) {
    %c0_i32 = arith.constant 0 : i32
    %c0_i32_0 = arith.constant 0 : i32
    %c0_i32_1 = arith.constant 0 : i32
    return %c0_i32, %c0_i32_0 : i32, i32
  }
  func.func @transform_12(%arg0: i32, %arg1: i32) -> (i32, i32) {
    %c0_i32 = arith.constant 0 : i32
    %c0_i32_0 = arith.constant 0 : i32
    %c0_i32_1 = arith.constant 0 : i32
    return %c0_i32, %c0_i32_0 : i32, i32
  }
  func.func @transform_13(%arg0: i32, %arg1: i32) -> (i32, i32) {
    %c0_i32 = arith.constant 0 : i32
    %c0_i32_0 = arith.constant 0 : i32
    %c0_i32_1 = arith.constant 0 : i32
    return %c0_i32, %c0_i32_0 : i32, i32
  }
  func.func @transform_14(%arg0: i32, %arg1: i32) -> (i32, i32) {
    %c0_i32 = arith.constant 0 : i32
    %c0_i32_0 = arith.constant 0 : i32
    %c0_i32_1 = arith.constant 0 : i32
    return %c0_i32, %c0_i32_0 : i32, i32
  }
  func.func @transform_15(%arg0: i32, %arg1: i32) -> (i32, i32) {
    %c0_i32 = arith.constant 0 : i32
    %c0_i32_0 = arith.constant 0 : i32
    %c0_i32_1 = arith.constant 0 : i32
    return %c0_i32, %c0_i32_0 : i32, i32
  }
  func.func @transform_16(%arg0: i32, %arg1: i32) -> (i32, i32, i32) {
    %c0_i32 = arith.constant 0 : i32
    %c0_i32_0 = arith.constant 0 : i32
    return %arg0, %arg1, %c0_i32 : i32, i32, i32
  }
}

</mosaic_0001>

<llo_original>
// kernel: gsa_transformer_block.2
$region0: #{gsa_transformer_block.2}
  #allocation0 [shape = 'u32[]', space=smem, size = 0x4, offset = 0x4, fixed_abs, tag = 'smem constant byte address 0x4 - core index']
  #allocation1 [shape = 'u32[144,128]{1,0:T(1,128)}', space=vmem, size = 0x12000, scoped, tag = 'internal scratch']
  %s0 = inlined_call_operand.vmem [shape: f32[2,8,32], index: 0, kind: input, shape index: {}]
  %s1 = inlined_call_operand.vmem [shape: f32[1,32], index: 1, kind: input, shape index: {}]
  %s2 = inlined_call_operand.vmem [shape: f32[1,32], index: 2, kind: input, shape index: {}]
  %s3 = inlined_call_operand.vmem [shape: bf16[32,96], index: 3, kind: input, shape index: {}]
  %s4 = inlined_call_operand.vmem [shape: f32[1,96], index: 4, kind: input, shape index: {}]
  %s5 = inlined_call_operand.vmem [shape: f32[1,8], index: 5, kind: input, shape index: {}]
  %s6 = inlined_call_operand.vmem [shape: f32[1,8], index: 6, kind: input, shape index: {}]
  %s7 = inlined_call_operand.vmem [shape: bf16[2,8,32], index: 7, kind: output, shape index: {0}]
  %s8 = inlined_call_operand.vmem [shape: bf16[2,8,64], index: 8, kind: output, shape index: {1}]
  %9 = xla_tuple %s7, %s8
  %s10 = sld [smem:[#allocation0]]
  $region69: #{gsa_transformer_block.2} parent=0
    _
  %s12 = ssub.s32 1, %s10
  %s13 = scalar_select 0, %s12, %s10
  loop: start=0, step=1, limit=4
  $region2: #{gsa_transformer_block.2} parent=0 // loop_pre_header
    _
  $region3: #{gsa_transformer_block.2} parent=0 // loop_header
    %s15 = sphi 0, %s19
    %p16 = scmp.ge.s32.totalorder %s15, 4
    %s22 = sphi 0, %s34
    %s23 = sphi 0, %s30
    %s24 = sphi 0, %s22
    %s25 = sphi 0, %s23
    %s26 = sphi 0, %s24
    %s27 = sphi 0, %s25
    %s39 = sphi 0, %s41
    %s42 = sphi 0, %s39
    %s43 = sphi 0, %s42
    %s59 = sphi 0, %s43
    %s63 = sphi 0, %s63
    %s65 = sphi 0, %s63
    %s66 = sphi 0, %s65
    %s80 = sphi 0, %s66
    %s84 = sphi 0, %s84
    %s86 = sphi 0, %s84
    %s87 = sphi 0, %s86
    %s101 = sphi 0, %s87
    %s105 = sphi 0, %s105
    %s107 = sphi 0, %s105
    %s108 = sphi 0, %s107
    %s122 = sphi 0, %s108
    %s126 = sphi 0, %s126
    %s128 = sphi 0, %s126
    %s129 = sphi 0, %s128
    %s143 = sphi 0, %s129
    %s147 = sphi 0, %s147
    %s149 = sphi 0, %s147
    %s150 = sphi 0, %s149
    %s164 = sphi 0, %s150
    %s168 = sphi 0, %s168
    %s170 = sphi 0, %s168
    %s171 = sphi 0, %s170
    %s185 = sphi 0, %s171
    %s193 = sphi 0, %s195
    %s196 = sphi 0, %s193
    %s197 = sphi 0, %s196
    %s213 = sphi 0, %s197
    %s221 = sphi 0, %s223
    %s224 = sphi 0, %s221
    %s225 = sphi 0, %s224
    %s241 = sphi 0, %s225
  $region4: #{gsa_transformer_block.2} parent=0 // loop_header_branch
    %18 = sbr.rel (%p16) target = $region8
  $region5: #{gsa_transformer_block.2} parent=0 // loop_body
    %s20 = ssub.s32 %s15, 1
    %s21 = ssub.s32 %s15, 2
    %s28 = sadd.s32 1, %s23
    %p29 = scmp.ge.s32.totalorder %s28, 1
    %s30 = scalar_select %p29, 0, %s28
    %s31 = sadd.s32 1, %s22
    %s32 = scalar_select %p29, %s31, %s22
    %p33 = scmp.ge.s32.totalorder %s32, 2
    %s34 = scalar_select %p33, 0, %s32
    %s35 = ssub.s32 %s22, %s34
    %s36 = ssub.s32 %s23, %s30
    %s37 = sor.u32 %s35, %s36
    %p38 = scmp.eq.s32.totalorder %s37, 0
    %s40 = sadd.s32 %s39, 1
    %s41 = scalar_select %p38, %s39, %s40
    %p44 = pneg %p38
    %p45 = scmp.eq.s32.totalorder %s15, 1
    %p46 = por %p44, %p45
    %p47 = scmp.ne.s32.totalorder %s39, %s42
    %p48 = scmp.eq.s32.totalorder %s15, 0
    %p49 = por %p47, %p48
    %p50 = scmp.ne.s32.totalorder %s39, %s42
    %p51 = scmp.eq.s32.totalorder %s20, 1
    %p52 = por %p50, %p51
    %p53 = scmp.ne.s32.totalorder %s42, %s43
    %p54 = scmp.eq.s32.totalorder %s20, 0
    %p55 = por %p53, %p54
    %p56 = scmp.ne.s32.totalorder %s42, %s43
    %p57 = scmp.eq.s32.totalorder %s21, 1
    %p58 = por %p56, %p57
    %p60 = scmp.ne.s32.totalorder %s43, %s59
    %p61 = scmp.eq.s32.totalorder %s21, 0
    %p62 = por %p60, %p61
    %s64 = sadd.s32 %s63, 1
    %p67 = scmp.eq.s32.totalorder %s15, 1
    %p68 = scmp.ne.s32.totalorder %s63, %s65
    %p69 = scmp.eq.s32.totalorder %s15, 0
    %p70 = por %p68, %p69
    %p71 = scmp.ne.s32.totalorder %s63, %s65
    %p72 = scmp.eq.s32.totalorder %s20, 1
    %p73 = por %p71, %p72
    %p74 = scmp.ne.s32.totalorder %s65, %s66
    %p75 = scmp.eq.s32.totalorder %s20, 0
    %p76 = por %p74, %p75
    %p77 = scmp.ne.s32.totalorder %s65, %s66
    %p78 = scmp.eq.s32.totalorder %s21, 1
    %p79 = por %p77, %p78
    %p81 = scmp.ne.s32.totalorder %s66, %s80
    %p82 = scmp.eq.s32.totalorder %s21, 0
    %p83 = por %p81, %p82
    %s85 = sadd.s32 %s84, 1
    %p88 = scmp.eq.s32.totalorder %s15, 1
    %p89 = scmp.ne.s32.totalorder %s84, %s86
    %p90 = scmp.eq.s32.totalorder %s15, 0
    %p91 = por %p89, %p90
    %p92 = scmp.ne.s32.totalorder %s84, %s86
    %p93 = scmp.eq.s32.totalorder %s20, 1
    %p94 = por %p92, %p93
    %p95 = scmp.ne.s32.totalorder %s86, %s87
    %p96 = scmp.eq.s32.totalorder %s20, 0
    %p97 = por %p95, %p96
    %p98 = scmp.ne.s32.totalorder %s86, %s87
    %p99 = scmp.eq.s32.totalorder %s21, 1
    %p100 = por %p98, %p99
    %p102 = scmp.ne.s32.totalorder %s87, %s101
    %p103 = scmp.eq.s32.totalorder %s21, 0
    %p104 = por %p102, %p103
    %s106 = sadd.s32 %s105, 1
    %p109 = scmp.eq.s32.totalorder %s15, 1
    %p110 = scmp.ne.s32.totalorder %s105, %s107
    %p111 = scmp.eq.s32.totalorder %s15, 0
    %p112 = por %p110, %p111
    %p113 = scmp.ne.s32.totalorder %s105, %s107
    %p114 = scmp.eq.s32.totalorder %s20, 1
    %p115 = por %p113, %p114
    %p116 = scmp.ne.s32.totalorder %s107, %s108
    %p117 = scmp.eq.s32.totalorder %s20, 0
    %p118 = por %p116, %p117
    %p119 = scmp.ne.s32.totalorder %s107, %s108
    %p120 = scmp.eq.s32.totalorder %s21, 1
    %p121 = por %p119, %p120
    %p123 = scmp.ne.s32.totalorder %s108, %s122
    %p124 = scmp.eq.s32.totalorder %s21, 0
    %p125 = por %p123, %p124
    %s127 = sadd.s32 %s126, 1
    %p130 = scmp.eq.s32.totalorder %s15, 1
    %p131 = scmp.ne.s32.totalorder %s126, %s128
    %p132 = scmp.eq.s32.totalorder %s15, 0
    %p133 = por %p131, %p132
    %p134 = scmp.ne.s32.totalorder %s126, %s128
    %p135 = scmp.eq.s32.totalorder %s20, 1
    %p136 = por %p134, %p135
    %p137 = scmp.ne.s32.totalorder %s128, %s129
    %p138 = scmp.eq.s32.totalorder %s20, 0
    %p139 = por %p137, %p138
    %p140 = scmp.ne.s32.totalorder %s128, %s129
    %p141 = scmp.eq.s32.totalorder %s21, 1
    %p142 = por %p140, %p141
    %p144 = scmp.ne.s32.totalorder %s129, %s143
    %p145 = scmp.eq.s32.totalorder %s21, 0
    %p146 = por %p144, %p145
    %s148 = sadd.s32 %s147, 1
    %p151 = scmp.eq.s32.totalorder %s15, 1
    %p152 = scmp.ne.s32.totalorder %s147, %s149
    %p153 = scmp.eq.s32.totalorder %s15, 0
    %p154 = por %p152, %p153
    %p155 = scmp.ne.s32.totalorder %s147, %s149
    %p156 = scmp.eq.s32.totalorder %s20, 1
    %p157 = por %p155, %p156
    %p158 = scmp.ne.s32.totalorder %s149, %s150
    %p159 = scmp.eq.s32.totalorder %s20, 0
    %p160 = por %p158, %p159
    %p161 = scmp.ne.s32.totalorder %s149, %s150
    %p162 = scmp.eq.s32.totalorder %s21, 1
    %p163 = por %p161, %p162
    %p165 = scmp.ne.s32.totalorder %s150, %s164
    %p166 = scmp.eq.s32.totalorder %s21, 0
    %p167 = por %p165, %p166
    %s169 = sadd.s32 %s168, 1
    %p172 = scmp.eq.s32.totalorder %s15, 1
    %p173 = scmp.ne.s32.totalorder %s168, %s170
    %p174 = scmp.eq.s32.totalorder %s15, 0
    %p175 = por %p173, %p174
    %p176 = scmp.ne.s32.totalorder %s168, %s170
    %p177 = scmp.eq.s32.totalorder %s20, 1
    %p178 = por %p176, %p177
    %p179 = scmp.ne.s32.totalorder %s170, %s171
    %p180 = scmp.eq.s32.totalorder %s20, 0
    %p181 = por %p179, %p180
    %p182 = scmp.ne.s32.totalorder %s170, %s171
    %p183 = scmp.eq.s32.totalorder %s21, 1
    %p184 = por %p182, %p183
    %p186 = scmp.ne.s32.totalorder %s171, %s185
    %p187 = scmp.eq.s32.totalorder %s21, 0
    %p188 = por %p186, %p187
    %s189 = ssub.s32 %s22, %s34
    %s190 = ssub.s32 %s23, %s30
    %s191 = sor.u32 %s189, %s190
    %p192 = scmp.eq.s32.totalorder %s191, 0
    %s194 = sadd.s32 %s193, 1
    %s195 = scalar_select %p192, %s193, %s194
    %p198 = pneg %p192
    %p199 = scmp.eq.s32.totalorder %s15, 1
    %p200 = por %p198, %p199
    %p201 = scmp.ne.s32.totalorder %s193, %s196
    %p202 = scmp.eq.s32.totalorder %s15, 0
    %p203 = por %p201, %p202
    %p204 = scmp.ne.s32.totalorder %s193, %s196
    %p205 = scmp.eq.s32.totalorder %s20, 1
    %p206 = por %p204, %p205
    %p207 = scmp.ne.s32.totalorder %s196, %s197
    %p208 = scmp.eq.s32.totalorder %s20, 0
    %p209 = por %p207, %p208
    %p210 = scmp.ne.s32.totalorder %s196, %s197
    %p211 = scmp.eq.s32.totalorder %s21, 1
    %p212 = por %p210, %p211
    %p214 = scmp.ne.s32.totalorder %s197, %s213
    %p215 = scmp.eq.s32.totalorder %s21, 0
    %p216 = por %p214, %p215
    %s217 = ssub.s32 %s22, %s34
    %s218 = ssub.s32 %s23, %s30
    %s219 = sor.u32 %s217, %s218
    %p220 = scmp.eq.s32.totalorder %s219, 0
    %s222 = sadd.s32 %s221, 1
    %s223 = scalar_select %p220, %s221, %s222
    %p226 = pneg %p220
    %p227 = scmp.eq.s32.totalorder %s15, 1
    %p228 = por %p226, %p227
    %p229 = scmp.ne.s32.totalorder %s221, %s224
    %p230 = scmp.eq.s32.totalorder %s15, 0
    %p231 = por %p229, %p230
    %p232 = scmp.ne.s32.totalorder %s221, %s224
    %p233 = scmp.eq.s32.totalorder %s20, 1
    %p234 = por %p232, %p233
    %p235 = scmp.ne.s32.totalorder %s224, %s225
    %p236 = scmp.eq.s32.totalorder %s20, 0
    %p237 = por %p235, %p236
    %p238 = scmp.ne.s32.totalorder %s224, %s225
    %p239 = scmp.eq.s32.totalorder %s21, 1
    %p240 = por %p238, %p239
    %p242 = scmp.ne.s32.totalorder %s225, %s241
    %p243 = scmp.eq.s32.totalorder %s21, 0
    %p244 = por %p242, %p243
    %p245 = scmp.le.s32.totalorder 1, %s15
    %p246 = scmp.lt.s32.totalorder %s15, 3
    %p247 = pnand %p245, %p246
    %p248 = pneg %p247
    // Predicated region
    $region9: #{gsa_transformer_block.2} parent=5 // pred_check
      _
    $region10: #{gsa_transformer_block.2} parent=5 // pred_check_branch
      %250 = sbr.rel (%p247) target = $region12
    $region11: #{gsa_transformer_block.2} parent=5 // pred_region
      %s251 = ssub.s32 %s15, 1
      // Predicated region
      $region13: #{gsa_transformer_block.2} parent=11 // pred_check
        %p252 = pneg %p76
      $region14: #{gsa_transformer_block.2} parent=11 // pred_check_branch
        %254 = sbr.rel (%p252) target = $region16
      $region15: #{gsa_transformer_block.2} parent=11 // pred_region
        _
      $region16: #{gsa_transformer_block.2} parent=11 // pred_fallthru
        _
      // Predicated region
      $region17: #{gsa_transformer_block.2} parent=11 // pred_check
        %p255 = pneg %p97
      $region18: #{gsa_transformer_block.2} parent=11 // pred_check_branch
        %257 = sbr.rel (%p255) target = $region20
      $region19: #{gsa_transformer_block.2} parent=11 // pred_region
        _
      $region20: #{gsa_transformer_block.2} parent=11 // pred_fallthru
        _
      // Predicated region
      $region21: #{gsa_transformer_block.2} parent=11 // pred_check
        %p258 = pneg %p118
      $region22: #{gsa_transformer_block.2} parent=11 // pred_check_branch
        %260 = sbr.rel (%p258) target = $region24
      $region23: #{gsa_transformer_block.2} parent=11 // pred_region
        _
      $region24: #{gsa_transformer_block.2} parent=11 // pred_fallthru
        _
      // Predicated region
      $region25: #{gsa_transformer_block.2} parent=11 // pred_check
        %p261 = pneg %p139
      $region26: #{gsa_transformer_block.2} parent=11 // pred_check_branch
        %263 = sbr.rel (%p261) target = $region28
      $region27: #{gsa_transformer_block.2} parent=11 // pred_region
        _
      $region28: #{gsa_transformer_block.2} parent=11 // pred_fallthru
        _
      // Predicated region
      $region29: #{gsa_transformer_block.2} parent=11 // pred_check
        %p264 = pneg %p160
      $region30: #{gsa_transformer_block.2} parent=11 // pred_check_branch
        %266 = sbr.rel (%p264) target = $region32
      $region31: #{gsa_transformer_block.2} parent=11 // pred_region
        _
      $region32: #{gsa_transformer_block.2} parent=11 // pred_fallthru
        _
      // Predicated region
      $region33: #{gsa_transformer_block.2} parent=11 // pred_check
        %p267 = pneg %p181
      $region34: #{gsa_transformer_block.2} parent=11 // pred_check_branch
        %269 = sbr.rel (%p267) target = $region36
      $region35: #{gsa_transformer_block.2} parent=11 // pred_region
        _
      $region36: #{gsa_transformer_block.2} parent=11 // pred_fallthru
        _
    $region12: #{gsa_transformer_block.2} parent=5 // pred_fallthru
      _
    %p270 = scmp.lt.s32.totalorder %s15, 2
    // Predicated region
    $region37: #{gsa_transformer_block.2} parent=5 // pred_check
      %p271 = pneg %p270
    $region38: #{gsa_transformer_block.2} parent=5 // pred_check_branch
      %273 = sbr.rel (%p271) target = $region40
    $region39: #{gsa_transformer_block.2} parent=5 // pred_region
      // Predicated region
      $region41: #{gsa_transformer_block.2} parent=39 // pred_check
        %p274 = pneg %p49
      $region42: #{gsa_transformer_block.2} parent=39 // pred_check_branch
        %276 = sbr.rel (%p274) target = $region44
      $region43: #{gsa_transformer_block.2} parent=39 // pred_region
        %p277 = scmp.lt.s32.totalorder %s22, 1
        %s278 = scalar_select %p277, %s22, 1
        %p279 = scmp.lt.s32.totalorder %s23, 0
        %s280 = scalar_select %p279, %s23, 0
        %s281 = sadd.s32 %s280, %s278
        %s282 = smul.addr %s281, 8
        %s283 = scalar_lea.vmem %s0, %s282
      $region44: #{gsa_transformer_block.2} parent=39 // pred_fallthru
        _
    $region40: #{gsa_transformer_block.2} parent=5 // pred_fallthru
      _
    %p284 = scmp.le.s32.totalorder 1, %s15
    %p285 = scmp.lt.s32.totalorder %s15, 3
    %p286 = pnand %p284, %p285
    %p287 = pneg %p286
    // Predicated region
    $region45: #{gsa_transformer_block.2} parent=5 // pred_check
      _
    $region46: #{gsa_transformer_block.2} parent=5 // pred_check_branch
      %289 = sbr.rel (%p286) target = $region48
    $region47: #{gsa_transformer_block.2} parent=5 // pred_region
      %s290 = ssub.s32 %s15, 1
      %p291 = scmp.lt.s32.totalorder %s24, 1
      %s292 = scalar_select %p291, %s24, 1
      %p293 = scmp.lt.s32.totalorder %s25, 0
      %s294 = scalar_select %p293, %s25, 0
      %s295 = sadd.s32 %s294, %s292
      %s296 = smul.addr %s295, 8
      %s297 = scalar_lea.vmem %s0, %s296
      %p298 = pneg %p55
      %p299 = pneg %p52
      %p300 = pneg %p76
      %p301 = pneg %p73
      %p302 = pneg %p97
      %p303 = pneg %p94
      %p304 = pneg %p118
      %p305 = pneg %p115
      %p306 = pneg %p139
      %p307 = pneg %p136
      %p308 = pneg %p160
      %p309 = pneg %p157
      %p310 = pneg %p181
      %p311 = pneg %p178
      %p312 = pneg %p209
      %p313 = pneg %p206
      %p314 = scmp.lt.s32.totalorder %s24, 1
      %s315 = scalar_select %p314, %s24, 1
      %p316 = scmp.lt.s32.totalorder %s25, 0
      %s317 = scalar_select %p316, %s25, 0
      %s318 = sadd.s32 %s317, %s315
      %s319 = smul.addr %s318, 4
      %s320 = scalar_lea.vmem %s7, %s319
      %p321 = pneg %p237
      %p322 = pneg %p234
      %p323 = scmp.lt.s32.totalorder %s24, 1
      %s324 = scalar_select %p323, %s24, 1
      %p325 = scmp.lt.s32.totalorder %s25, 0
      %s326 = scalar_select %p325, %s25, 0
      %s327 = sadd.s32 %s326, %s324
      %s328 = smul.addr %s327, 4
      %s329 = scalar_lea.vmem %s8, %s328
      %p330 = scmp.lt.s32.totalorder %s24, 1
      %s331 = scalar_select %p330, %s24, 1
      %p332 = scmp.lt.s32.totalorder %s25, 0
      %s333 = scalar_select %p332, %s25, 0
      %s334 = sadd.s32 %s333, %s331
      %s335 = smul.addr %s334, 8
      %s336 = scalar_lea.vmem %s0, %s335
      %p337 = scmp.lt.s32.totalorder %s24, 1
      %s338 = scalar_select %p337, %s24, 1
      %p339 = scmp.lt.s32.totalorder %s25, 0
      %s340 = scalar_select %p339, %s25, 0
      %s341 = sadd.s32 %s340, %s338
      %s342 = smul.addr %s341, 4
      %s343 = scalar_lea.vmem %s7, %s342
      %p344 = scmp.lt.s32.totalorder %s24, 1
      %s345 = scalar_select %p344, %s24, 1
      %p346 = scmp.lt.s32.totalorder %s25, 0
      %s347 = scalar_select %p346, %s25, 0
      %s348 = sadd.s32 %s347, %s345
      %s349 = smul.addr %s348, 4
      %s350 = scalar_lea.vmem %s8, %s349
      %v352 = vld [vmem:[%s336] sm:$0xff]
      %vm353 = vcmask 261120
      %v354 = vsel %vm353, %v352, 0.0
      %355 = vadd.xlane.f32.xlu0 %v354
      %v356 = vpop.xlane.xlu0 %355
      %v357 = vrcp.pop 32.0
      %v358 = vmul.f32 %v356, %v357
      %v359 = vsub.f32 %v352, %v358
      %v360 = vmul.f32 %v359, %v359
      %v361 = vsel %vm353, %v360, 0.0
      %362 = vadd.xlane.f32.xlu0 %v361
      %v363 = vpop.xlane.xlu0 %362
      %v364 = vmul.f32 %v363, %v357
      %v365 = vadd.f32 %v364, 1e-05
      %v366 = vrsqrt.pop %v365
      %v367 = vmul.f32 %v359, %v366
      %v368 = vld [vmem:[%s1] sm:$0x1]
      %v370 = vlaneseq
      %v371 = vshrl.u32 %v370, 7
      %v372 = vsub.s32 0, %v371
      %v373 = vrot.slane %v368, %v372
      %v375 = vmul.f32 %v367, %v373
      %v376 = vld [vmem:[%s2] sm:$0x1]
      %v378 = vlaneseq
      %v379 = vshrl.u32 %v378, 7
      %v380 = vsub.s32 0, %v379
      %v381 = vrot.slane %v376, %v380
      %v383 = vadd.f32 %v375, %v381
      %v384 = vpack.c.bf16 %v383, %v383
      %v385 = vld [vmem:[%s3] sm:$0xf]
      %v386 = vld [vmem:[%s3 + $0x4] sm:$0xf]
      %v387 = vld [vmem:[%s3 + $0x8] sm:$0xf]
      %v388 = vld [vmem:[%s3 + $0xc] sm:$0xf]
      %v389 = vld [vmem:[%s4] sm:$0x1]
      %v391 = vlaneseq
      %v392 = vshrl.u32 %v391, 7
      %v393 = vsub.s32 0, %v392
      %v394 = vrot.slane %v389, %v393
      %v400 = vunpack.c.l.b16 %v385
      %v401 = vunpack.c.l.b16 %v386
      %v402 = vunpack.c.l.b16 %v387
      %v403 = vunpack.c.l.b16 %v388
      %v404 = vpack.c.b16 %v401, %v400
      %v405 = vpack.c.b16 %v403, %v402
      %v409 = vsel %vm353, %v384, 0
      %411 = vmatprep.subr.bf16.mxu0 0
      %412 = vmatpush1.bf16.msra.mxu0 %v404
      %413 = vmatprep.subr.bf16.mxu0 0
      %414 = vmatpush1.bf16.msra.mxu0 %v405
      %415 = vmatprep.subr.bf16.mxu0 0
      %416 = vmatpush1.bf16.msra.mxu0 0
      %417 = vmatprep.subr.bf16.mxu0 0
      %418 = vmatpush1.bf16.msra.mxu0 0
      %419 = vmatprep.subr.bf16.mxu0 0
      %420 = vmatpush1.bf16.msra.mxu0 0
      %421 = vmatprep.subr.bf16.mxu0 0
      %422 = vmatpush1.bf16.msra.mxu0 0
      %423 = vmatprep.subr.bf16.mxu0 0
      %424 = vmatpush1.bf16.msra.mxu0 0
      %425 = vmatprep.subr.bf16.mxu0 0
      %426 = vmatpush1.bf16.msra.mxu0 0
      %427 = vmatprep.subr.bf16.mxu0 0
      %428 = vmatpush1.bf16.msra.mxu0 0
      %429 = vmatprep.subr.bf16.mxu0 0
      %430 = vmatpush1.bf16.msra.mxu0 0
      %431 = vmatprep.subr.bf16.mxu0 0
      %432 = vmatpush1.bf16.msra.mxu0 0
      %433 = vmatprep.subr.bf16.mxu0 0
      %434 = vmatpush1.bf16.msra.mxu0 0
      %435 = vmatprep.subr.bf16.mxu0 0
      %436 = vmatpush1.bf16.msra.mxu0 0
      %437 = vmatprep.subr.bf16.mxu0 0
      %438 = vmatpush1.bf16.msra.mxu0 0
      %439 = vmatprep.subr.bf16.mxu0 0
      %440 = vmatpush1.bf16.msra.mxu0 0
      %441 = vmatprep.subr.bf16.mxu0 0
      %442 = vmatpush1.bf16.msra.mxu0 0
      %443 = vmatprep.mubr.bf16.mxu0 0
      %444 = vmatmul.mubr.bf16.gmra.mrb[0].mxu0 %v409
      %v445 = vpop.f32.mrb[0].mxu0
      %v446 = vadd.f32 %v394, %v445
      %v447 = vpop.f32.mrb[0].mxu0
      %v448 = vpop.f32.mrb[0].mxu0
      %v449 = vpop.f32.mrb[0].mxu0
      %450 = vdwg.mxu0
      %v451 = vld [vmem:[%s5] sm:$0x1]
      %v452 = vld [vmem:[%s6] sm:$0x1]
      %vm453 = vcmask 64512
      %v454 = vsel %vm453, %v446, 0.0
      %455 = vadd.xlane.f32.xlu0 %v454
      %v456 = vpop.xlane.xlu0 %455
      %v457 = vrcp.pop 8.0
      %v458 = vmul.f32 %v456, %v457
      %v459 = vsub.f32 %v446, %v458
      %v460 = vmul.f32 %v459, %v459
      %v461 = vsel %vm453, %v460, 0.0
      %462 = vadd.xlane.f32.xlu0 %v461
      %v463 = vpop.xlane.xlu0 %462
      %v464 = vmul.f32 %v463, %v457
      %v465 = vadd.f32 %v464, 1e-05
      %v466 = vrsqrt.pop %v465
      %v467 = vmul.f32 %v459, %v466
      %v469 = vlaneseq
      %v470 = vshrl.u32 %v469, 7
      %v471 = vsub.s32 0, %v470
      %v472 = vrot.slane %v451, %v471
      %v474 = vmul.f32 %v467, %v472
      %v476 = vlaneseq
      %v477 = vshrl.u32 %v476, 7
      %v478 = vsub.s32 0, %v477
      %v479 = vrot.slane %v452, %v478
      %v481 = vadd.f32 %v474, %v479
      %v482 = vpack.c.bf16 %v481, %v481
      %vm483 = vcmask 60416
      %484 = vst.msk [vmem:[%s343] sm:$0xf] %vm483, %v482
      %486 = vrot.lane.b32.xlu0 %v446, 96
      %v487 = vpop.permute.xlu0 %486
      %v489 = vsel %vm453, %v487, 0.0
      %490 = vadd.xlane.f32.xlu0 %v489
      %v491 = vpop.xlane.xlu0 %490
      %v492 = vmul.f32 %v491, %v457
      %v493 = vsub.f32 %v446, %v492
      %v494 = vmul.f32 %v493, %v493
      %496 = vrot.lane.b32.xlu0 %v494, 96
      %v497 = vpop.permute.xlu0 %496
      %v499 = vsel %vm453, %v497, 0.0
      %500 = vadd.xlane.f32.xlu0 %v499
      %v501 = vpop.xlane.xlu0 %500
      %v502 = vmul.f32 %v501, %v457
      %v503 = vadd.f32 %v502, 1e-05
      %v504 = vrsqrt.pop %v503
      %v505 = vmul.f32 %v493, %v504
      %506 = vrot.lane.b32.xlu0 %v472, 32
      %v507 = vpop.permute.xlu0 %506
      %v509 = vmul.f32 %v505, %v507
      %510 = vrot.lane.b32.xlu0 %v479, 32
      %v511 = vpop.permute.xlu0 %510
      %v513 = vadd.f32 %v509, %v511
      %v514 = vpack.c.bf16 %v513, %v513
      %v516 = vunpack.c.l.b16 %v514
      %v517 = vpack.c.b16 %v516, %v516
      %518 = vrot.lane.b32.xlu0 %v517, 96
      %v519 = vpop.permute.xlu0 %518
      %521 = vst.msk [vmem:[%s350] sm:$0xf] %vm483, %v519
      %522 = vrot.lane.b32.xlu0 %v446, 120
      %v523 = vpop.permute.xlu0 %522
      %v525 = vsel %vm453, %v523, 0.0
      %526 = vadd.xlane.f32.xlu0 %v525
      %v527 = vpop.xlane.xlu0 %526
      %v528 = vmul.f32 %v527, %v457
      %v529 = vsub.f32 %v446, %v528
      %v530 = vmul.f32 %v529, %v529
      %532 = vrot.lane.b32.xlu0 %v530, 120
      %v533 = vpop.permute.xlu0 %532
      %v535 = vsel %vm453, %v533, 0.0
      %536 = vadd.xlane.f32.xlu0 %v535
      %v537 = vpop.xlane.xlu0 %536
      %v538 = vmul.f32 %v537, %v457
      %v539 = vadd.f32 %v538, 1e-05
      %v540 = vrsqrt.pop %v539
      %v541 = vmul.f32 %v529, %v540
      %542 = vrot.lane.b32.xlu0 %v472, 8
      %v543 = vpop.permute.xlu0 %542
      %v545 = vmul.f32 %v541, %v543
      %546 = vrot.lane.b32.xlu0 %v479, 8
      %v547 = vpop.permute.xlu0 %546
      %v549 = vadd.f32 %v545, %v547
      %v550 = vpack.c.bf16 %v549, %v549
      %vm551 = vcmask 126016
      %552 = vst.msk [vmem:[%s343] sm:$0xf] %vm551, %v550
      %553 = vrot.lane.b32.xlu0 %v446, 88
      %v554 = vpop.permute.xlu0 %553
      %v556 = vsel %vm453, %v554, 0.0
      %557 = vadd.xlane.f32.xlu0 %v556
      %v558 = vpop.xlane.xlu0 %557
      %v559 = vmul.f32 %v558, %v457
      %v560 = vsub.f32 %v446, %v559
      %v561 = vmul.f32 %v560, %v560
      %563 = vrot.lane.b32.xlu0 %v561, 88
      %v564 = vpop.permute.xlu0 %563
      %v566 = vsel %vm453, %v564, 0.0
      %567 = vadd.xlane.f32.xlu0 %v566
      %v568 = vpop.xlane.xlu0 %567
      %v569 = vmul.f32 %v568, %v457
      %v570 = vadd.f32 %v569, 1e-05
      %v571 = vrsqrt.pop %v570
      %v572 = vmul.f32 %v560, %v571
      %573 = vrot.lane.b32.xlu0 %v472, 40
      %v574 = vpop.permute.xlu0 %573
      %v576 = vmul.f32 %v572, %v574
      %577 = vrot.lane.b32.xlu0 %v479, 40
      %v578 = vpop.permute.xlu0 %577
      %v580 = vadd.f32 %v576, %v578
      %v581 = vpack.c.bf16 %v580, %v580
      %v583 = vunpack.c.l.b16 %v581
      %v584 = vpack.c.b16 %v583, %v583
      %585 = vrot.lane.b32.xlu0 %v584, 96
      %v586 = vpop.permute.xlu0 %585
      %588 = vst.msk [vmem:[%s350] sm:$0xf] %vm551, %v586
      %589 = vrot.lane.b32.xlu0 %v446, 112
      %v590 = vpop.permute.xlu0 %589
      %v592 = vsel %vm453, %v590, 0.0
      %593 = vadd.xlane.f32.xlu0 %v592
      %v594 = vpop.xlane.xlu0 %593
      %v595 = vmul.f32 %v594, %v457
      %v596 = vsub.f32 %v446, %v595
      %v597 = vmul.f32 %v596, %v596
      %599 = vrot.lane.b32.xlu0 %v597, 112
      %v600 = vpop.permute.xlu0 %599
      %v602 = vsel %vm453, %v600, 0.0
      %603 = vadd.xlane.f32.xlu0 %v602
      %v604 = vpop.xlane.xlu0 %603
      %v605 = vmul.f32 %v604, %v457
      %v606 = vadd.f32 %v605, 1e-05
      %v607 = vrsqrt.pop %v606
      %v608 = vmul.f32 %v596, %v607
      %609 = vrot.lane.b32.xlu0 %v472, 16
      %v610 = vpop.permute.xlu0 %609
      %v612 = vmul.f32 %v608, %v610
      %613 = vrot.lane.b32.xlu0 %v479, 16
      %v614 = vpop.permute.xlu0 %613
      %v616 = vadd.f32 %v612, %v614
      %v617 = vpack.c.bf16 %v616, %v616
      %vm618 = vcmask 191616
      %619 = vst.msk [vmem:[%s343] sm:$0xf] %vm618, %v617
      %620 = vrot.lane.b32.xlu0 %v446, 80
      %v621 = vpop.permute.xlu0 %620
      %v623 = vsel %vm453, %v621, 0.0
      %624 = vadd.xlane.f32.xlu0 %v623
      %v625 = vpop.xlane.xlu0 %624
      %v626 = vmul.f32 %v625, %v457
      %v627 = vsub.f32 %v446, %v626
      %v628 = vmul.f32 %v627, %v627
      %630 = vrot.lane.b32.xlu0 %v628, 80
      %v631 = vpop.permute.xlu0 %630
      %v633 = vsel %vm453, %v631, 0.0
      %634 = vadd.xlane.f32.xlu0 %v633
      %v635 = vpop.xlane.xlu0 %634
      %v636 = vmul.f32 %v635, %v457
      %v637 = vadd.f32 %v636, 1e-05
      %v638 = vrsqrt.pop %v637
      %v639 = vmul.f32 %v627, %v638
      %640 = vrot.lane.b32.xlu0 %v472, 48
      %v641 = vpop.permute.xlu0 %640
      %v643 = vmul.f32 %v639, %v641
      %644 = vrot.lane.b32.xlu0 %v479, 48
      %v645 = vpop.permute.xlu0 %644
      %v647 = vadd.f32 %v643, %v645
      %v648 = vpack.c.bf16 %v647, %v647
      %v650 = vunpack.c.l.b16 %v648
      %v651 = vpack.c.b16 %v650, %v650
      %652 = vrot.lane.b32.xlu0 %v651, 96
      %v653 = vpop.permute.xlu0 %652
      %655 = vst.msk [vmem:[%s350] sm:$0xf] %vm618, %v653
      %656 = vrot.lane.b32.xlu0 %v446, 104
      %v657 = vpop.permute.xlu0 %656
      %v659 = vsel %vm453, %v657, 0.0
      %660 = vadd.xlane.f32.xlu0 %v659
      %v661 = vpop.xlane.xlu0 %660
      %v662 = vmul.f32 %v661, %v457
      %v663 = vsub.f32 %v446, %v662
      %v664 = vmul.f32 %v663, %v663
      %666 = vrot.lane.b32.xlu0 %v664, 104
      %v667 = vpop.permute.xlu0 %666
      %v669 = vsel %vm453, %v667, 0.0
      %670 = vadd.xlane.f32.xlu0 %v669
      %v671 = vpop.xlane.xlu0 %670
      %v672 = vmul.f32 %v671, %v457
      %v673 = vadd.f32 %v672, 1e-05
      %v674 = vrsqrt.pop %v673
      %v675 = vmul.f32 %v663, %v674
      %676 = vrot.lane.b32.xlu0 %v472, 24
      %v677 = vpop.permute.xlu0 %676
      %v679 = vmul.f32 %v675, %v677
      %680 = vrot.lane.b32.xlu0 %v479, 24
      %v681 = vpop.permute.xlu0 %680
      %v683 = vadd.f32 %v679, %v681
      %v684 = vpack.c.bf16 %v683, %v683
      %vm685 = vcmask 257216
      %686 = vst.msk [vmem:[%s343] sm:$0xf] %vm685, %v684
      %687 = vrot.lane.b32.xlu0 %v446, 72
      %v688 = vpop.permute.xlu0 %687
      %v690 = vsel %vm453, %v688, 0.0
      %691 = vadd.xlane.f32.xlu0 %v690
      %v692 = vpop.xlane.xlu0 %691
      %v693 = vmul.f32 %v692, %v457
      %v694 = vsub.f32 %v446, %v693
      %v695 = vmul.f32 %v694, %v694
      %697 = vrot.lane.b32.xlu0 %v695, 72
      %v698 = vpop.permute.xlu0 %697
      %v700 = vsel %vm453, %v698, 0.0
      %701 = vadd.xlane.f32.xlu0 %v700
      %v702 = vpop.xlane.xlu0 %701
      %v703 = vmul.f32 %v702, %v457
      %v704 = vadd.f32 %v703, 1e-05
      %v705 = vrsqrt.pop %v704
      %v706 = vmul.f32 %v694, %v705
      %707 = vrot.lane.b32.xlu0 %v472, 56
      %v708 = vpop.permute.xlu0 %707
      %v710 = vmul.f32 %v706, %v708
      %711 = vrot.lane.b32.xlu0 %v479, 56
      %v712 = vpop.permute.xlu0 %711
      %v714 = vadd.f32 %v710, %v712
      %v715 = vpack.c.bf16 %v714, %v714
      %v717 = vunpack.c.l.b16 %v715
      %v718 = vpack.c.b16 %v717, %v717
      %719 = vrot.lane.b32.xlu0 %v718, 96
      %v720 = vpop.permute.xlu0 %719
      %722 = vst.msk [vmem:[%s350] sm:$0xf] %vm685, %v720
      %v723 = vpack.c.bf16 %v446, %v446
      %v725 = vunpack.c.l.b16 %v723
      %v726 = vpack.c.b16 %v725, %v725
      %727 = vrot.lane.b32.xlu0 %v726, 96
      %v728 = vpop.permute.xlu0 %727
      %vm730 = vcmask 519424
      %731 = vst.msk [vmem:[%s350] sm:$0xf] %vm730, %v728
      %p732 = scmp.lt.s32.totalorder %s24, 1
      %s733 = scalar_select %p732, %s24, 1
      %p734 = scmp.lt.s32.totalorder %s25, 0
      %s735 = scalar_select %p734, %s25, 0
      %s736 = sadd.s32 %s735, %s733
      %s737 = smul.addr %s736, 4
      %s738 = scalar_lea.vmem %s7, %s737
      %p739 = scmp.lt.s32.totalorder %s24, 1
      %s740 = scalar_select %p739, %s24, 1
      %p741 = scmp.lt.s32.totalorder %s25, 0
      %s742 = scalar_select %p741, %s25, 0
      %s743 = sadd.s32 %s742, %s740
      %s744 = smul.addr %s743, 4
      %s745 = scalar_lea.vmem %s8, %s744
      // Predicated region
      $region49: #{gsa_transformer_block.2} parent=47 // pred_check
        %p746 = pneg %p206
      $region50: #{gsa_transformer_block.2} parent=47 // pred_check_branch
        %748 = sbr.rel (%p746) target = $region52
      $region51: #{gsa_transformer_block.2} parent=47 // pred_region
        _
      $region52: #{gsa_transformer_block.2} parent=47 // pred_fallthru
        _
      // Predicated region
      $region53: #{gsa_transformer_block.2} parent=47 // pred_check
        %p749 = pneg %p234
      $region54: #{gsa_transformer_block.2} parent=47 // pred_check_branch
        %751 = sbr.rel (%p749) target = $region56
      $region55: #{gsa_transformer_block.2} parent=47 // pred_region
        _
      $region56: #{gsa_transformer_block.2} parent=47 // pred_fallthru
        _
    $region48: #{gsa_transformer_block.2} parent=5 // pred_fallthru
      _
    %p752 = scmp.le.s32.totalorder 2, %s15
    // Predicated region
    $region57: #{gsa_transformer_block.2} parent=5 // pred_check
      %p753 = pneg %p752
    $region58: #{gsa_transformer_block.2} parent=5 // pred_check_branch
      %755 = sbr.rel (%p753) target = $region60
    $region59: #{gsa_transformer_block.2} parent=5 // pred_region
      %s756 = ssub.s32 %s15, 2
      // Predicated region
      $region61: #{gsa_transformer_block.2} parent=59 // pred_check
        %p757 = pneg %p212
      $region62: #{gsa_transformer_block.2} parent=59 // pred_check_branch
        %759 = sbr.rel (%p757) target = $region64
      $region63: #{gsa_transformer_block.2} parent=59 // pred_region
        %p760 = scmp.lt.s32.totalorder %s26, 1
        %s761 = scalar_select %p760, %s26, 1
        %p762 = scmp.lt.s32.totalorder %s27, 0
        %s763 = scalar_select %p762, %s27, 0
        %s764 = sadd.s32 %s763, %s761
        %s765 = smul.addr %s764, 4
        %s766 = scalar_lea.vmem %s7, %s765
      $region64: #{gsa_transformer_block.2} parent=59 // pred_fallthru
        _
      // Predicated region
      $region65: #{gsa_transformer_block.2} parent=59 // pred_check
        %p767 = pneg %p240
      $region66: #{gsa_transformer_block.2} parent=59 // pred_check_branch
        %769 = sbr.rel (%p767) target = $region68
      $region67: #{gsa_transformer_block.2} parent=59 // pred_region
        %p770 = scmp.lt.s32.totalorder %s26, 1
        %s771 = scalar_select %p770, %s26, 1
        %p772 = scmp.lt.s32.totalorder %s27, 0
        %s773 = scalar_select %p772, %s27, 0
        %s774 = sadd.s32 %s773, %s771
        %s775 = smul.addr %s774, 4
        %s776 = scalar_lea.vmem %s8, %s775
      $region68: #{gsa_transformer_block.2} parent=59 // pred_fallthru
        _
    $region60: #{gsa_transformer_block.2} parent=5 // pred_fallthru
      _
  $region6: #{gsa_transformer_block.2} parent=0 // loop_footer
    %s19 = sadd.s32 1, %s15
  $region7: #{gsa_transformer_block.2} parent=0 // loop_footer_branch
    %14 = sbr.rel target = $region3
  $region8: #{gsa_transformer_block.2} parent=0 // loop_exit
    _

// kernel: gsa_transformer_block.3
$region0: #{gsa_transformer_block.3}
  #allocation0 [shape = 'u32[]', space=smem, size = 0x4, offset = 0x4, fixed_abs, tag = 'smem constant byte address 0x4 - core index']
  #allocation1 [shape = 'u32[144,128]{1,0:T(1,128)}', space=vmem, size = 0x12000, scoped, tag = 'internal scratch']
  #allocation2 [shape = 'f32[8,32]{1,0:T(8,128)}', space=vmem, size = 0x1000, scoped, tag = 'scratch operand']
  %s0 = inlined_call_operand.vmem [shape: f32[2,8,32], index: 0, kind: input, shape index: {}]
  %s1 = inlined_call_operand.vmem [shape: bf16[2,8,32], index: 1, kind: input, shape index: {}]
  %s2 = inlined_call_operand.vmem [shape: bf16[2,8,64], index: 2, kind: input, shape index: {}]
  %s3 = inlined_call_operand.vmem [shape: bf16[4,2,8], index: 3, kind: input, shape index: {}]
  %s4 = inlined_call_operand.vmem [shape: f32[4,2], index: 4, kind: input, shape index: {}]
  %s5 = inlined_call_operand.vmem [shape: f32[4,2], index: 5, kind: input, shape index: {}]
  %s6 = inlined_call_operand.vmem [shape: f32[4,2], index: 6, kind: input, shape index: {}]
  %s7 = inlined_call_operand.vmem [shape: f32[4,2], index: 7, kind: input, shape index: {}]
  %s8 = inlined_call_operand.vmem [shape: bf16[32,32], index: 8, kind: input, shape index: {}]
  %s9 = inlined_call_operand.vmem [shape: f32[1,32], index: 9, kind: input, shape index: {}]
  %s10 = inlined_call_operand.vmem [shape: f32[1,32], index: 10, kind: input, shape index: {}]
  %s11 = inlined_call_operand.vmem [shape: f32[1,32], index: 11, kind: input, shape index: {}]
  %s12 = inlined_call_operand.vmem [shape: bf16[32,128], index: 12, kind: input, shape index: {}]
  %s13 = inlined_call_operand.vmem [shape: f32[1,128], index: 13, kind: input, shape index: {}]
  %s14 = inlined_call_operand.vmem [shape: bf16[128,32], index: 14, kind: input, shape index: {}]
  %s15 = inlined_call_operand.vmem [shape: f32[1,32], index: 15, kind: input, shape index: {}]
  %s16 = inlined_call_operand.hbm [shape: f32[2,8,32], index: 16, kind: output, shape index: {}]
  %s17 = sld [smem:[#allocation0]]
  $region113: #{gsa_transformer_block.3} parent=0
    _
  %s19 = ssub.s32 1, %s17
  %s20 = scalar_select 0, %s19, %s17
  $region1: #{gsa_transformer_block.3} parent=0
    #allocation3 [shape = 'u8[2048]{0}', space=smem, size = 0x800, scoped, tag = 'input window, operand 4, single buffered']
    #allocation4 [shape = 's32[2]{0}', space=sflag, size = 0x8, scoped, tag = 'scoped memory for gsa_transformer_block.3']
    #allocation5 [shape = 's32[2]{0}', space=sflag, size = 0x8, scoped, tag = 'scoped memory for gsa_transformer_block.3']
    #allocation6 [shape = 'u8[2048]{0}', space=smem, size = 0x800, scoped, tag = 'input window, operand 5, single buffered']
    #allocation7 [shape = 's32[1]{0}', space=sflag, size = 0x4, scoped, tag = 'scoped memory for gsa_transformer_block.3']
    #allocation8 [shape = 'u8[2048]{0}', space=smem, size = 0x800, scoped, tag = 'input window, operand 6, single buffered']
    #allocation9 [shape = 'u8[2048]{0}', space=smem, size = 0x800, scoped, tag = 'input window, operand 7, single buffered']
    #allocation10 [shape = 's32[1]{0}', space=sflag, size = 0x4, scoped, tag = 'scoped memory for gsa_transformer_block.3']
    #allocation11 [shape = 'u8[8192]{0}', space=vmem, size = 0x2000, scoped, tag = 'output window, operand 0']
    %21 = vsyncpa [#allocation5], 0
    %22 = vsyncpa [#allocation7], 0
    %23 = vsyncpa [#allocation10], 0
    %24 = vsyncpa [#allocation4], 0
    %s25 = scalar_lea.sflag [#allocation4], 1
    %26 = vsyncpa %s25, 0
    loop: start=0, step=1, limit=4
    $region2: #{gsa_transformer_block.3} parent=1 // loop_pre_header
      _
    $region3: #{gsa_transformer_block.3} parent=1 // loop_header
      %s28 = sphi 0, %s32
      %p29 = scmp.ge.s32.totalorder %s28, 4
      %s35 = sphi 0, %s47
      %s36 = sphi 0, %s43
      %s37 = sphi 0, %s35
      %s38 = sphi 0, %s36
      %s39 = sphi 0, %s37
      %s40 = sphi 0, %s38
      %s52 = sphi 0, %s54
      %s55 = sphi 0, %s52
      %s56 = sphi 0, %s55
      %s72 = sphi 0, %s56
      %s80 = sphi 0, %s82
      %s83 = sphi 0, %s80
      %s84 = sphi 0, %s83
      %s100 = sphi 0, %s84
      %s106 = sphi 0, %s108
      %s109 = sphi 0, %s106
      %s110 = sphi 0, %s109
      %s126 = sphi 0, %s110
      %s130 = sphi 0, %s130
      %s132 = sphi 0, %s130
      %s133 = sphi 0, %s132
      %s147 = sphi 0, %s133
      %s151 = sphi 0, %s151
      %s153 = sphi 0, %s151
      %s154 = sphi 0, %s153
      %s168 = sphi 0, %s154
      %s172 = sphi 0, %s172
      %s174 = sphi 0, %s172
      %s175 = sphi 0, %s174
      %s189 = sphi 0, %s175
      %s193 = sphi 0, %s193
      %s195 = sphi 0, %s193
      %s196 = sphi 0, %s195
      %s210 = sphi 0, %s196
      %s214 = sphi 0, %s214
      %s216 = sphi 0, %s214
      %s217 = sphi 0, %s216
      %s231 = sphi 0, %s217
      %s235 = sphi 0, %s235
      %s237 = sphi 0, %s235
      %s238 = sphi 0, %s237
      %s252 = sphi 0, %s238
      %s256 = sphi 0, %s256
      %s258 = sphi 0, %s256
      %s259 = sphi 0, %s258
      %s273 = sphi 0, %s259
      %s277 = sphi 0, %s277
      %s279 = sphi 0, %s277
      %s280 = sphi 0, %s279
      %s294 = sphi 0, %s280
      %s298 = sphi 0, %s298
      %s300 = sphi 0, %s298
      %s301 = sphi 0, %s300
      %s315 = sphi 0, %s301
      %s319 = sphi 0, %s319
      %s321 = sphi 0, %s319
      %s322 = sphi 0, %s321
      %s336 = sphi 0, %s322
      %s340 = sphi 0, %s340
      %s342 = sphi 0, %s340
      %s343 = sphi 0, %s342
      %s357 = sphi 0, %s343
      %s361 = sphi 0, %s361
      %s363 = sphi 0, %s361
      %s364 = sphi 0, %s363
      %s378 = sphi 0, %s364
      %s382 = sphi 0, %s382
      %s384 = sphi 0, %s382
      %s385 = sphi 0, %s384
      %s399 = sphi 0, %s385
      %s407 = sphi 0, %s409
      %s410 = sphi 0, %s407
      %s411 = sphi 0, %s410
      %s427 = sphi 0, %s411
    $region4: #{gsa_transformer_block.3} parent=1 // loop_header_branch
      %31 = sbr.rel (%p29) target = $region8
    $region5: #{gsa_transformer_block.3} parent=1 // loop_body
      %s33 = ssub.s32 %s28, 1
      %s34 = ssub.s32 %s28, 2
      %s41 = sadd.s32 1, %s36
      %p42 = scmp.ge.s32.totalorder %s41, 1
      %s43 = scalar_select %p42, 0, %s41
      %s44 = sadd.s32 1, %s35
      %s45 = scalar_select %p42, %s44, %s35
      %p46 = scmp.ge.s32.totalorder %s45, 2
      %s47 = scalar_select %p46, 0, %s45
      %s48 = ssub.s32 %s35, %s47
      %s49 = ssub.s32 %s36, %s43
      %s50 = sor.u32 %s48, %s49
      %p51 = scmp.eq.s32.totalorder %s50, 0
      %s53 = sadd.s32 %s52, 1
      %s54 = scalar_select %p51, %s52, %s53
      %p57 = pneg %p51
      %p58 = scmp.eq.s32.totalorder %s28, 1
      %p59 = por %p57, %p58
      %p60 = scmp.ne.s32.totalorder %s52, %s55
      %p61 = scmp.eq.s32.totalorder %s28, 0
      %p62 = por %p60, %p61
      %p63 = scmp.ne.s32.totalorder %s52, %s55
      %p64 = scmp.eq.s32.totalorder %s33, 1
      %p65 = por %p63, %p64
      %p66 = scmp.ne.s32.totalorder %s55, %s56
      %p67 = scmp.eq.s32.totalorder %s33, 0
      %p68 = por %p66, %p67
      %p69 = scmp.ne.s32.totalorder %s55, %s56
      %p70 = scmp.eq.s32.totalorder %s34, 1
      %p71 = por %p69, %p70
      %p73 = scmp.ne.s32.totalorder %s56, %s72
      %p74 = scmp.eq.s32.totalorder %s34, 0
      %p75 = por %p73, %p74
      %s76 = ssub.s32 %s35, %s47
      %s77 = ssub.s32 %s36, %s43
      %s78 = sor.u32 %s76, %s77
      %p79 = scmp.eq.s32.totalorder %s78, 0
      %s81 = sadd.s32 %s80, 1
      %s82 = scalar_select %p79, %s80, %s81
      %p85 = pneg %p79
      %p86 = scmp.eq.s32.totalorder %s28, 1
      %p87 = por %p85, %p86
      %p88 = scmp.ne.s32.totalorder %s80, %s83
      %p89 = scmp.eq.s32.totalorder %s28, 0
      %p90 = por %p88, %p89
      %p91 = scmp.ne.s32.totalorder %s80, %s83
      %p92 = scmp.eq.s32.totalorder %s33, 1
      %p93 = por %p91, %p92
      %p94 = scmp.ne.s32.totalorder %s83, %s84
      %p95 = scmp.eq.s32.totalorder %s33, 0
      %p96 = por %p94, %p95
      %p97 = scmp.ne.s32.totalorder %s83, %s84
      %p98 = scmp.eq.s32.totalorder %s34, 1
      %p99 = por %p97, %p98
      %p101 = scmp.ne.s32.totalorder %s84, %s100
      %p102 = scmp.eq.s32.totalorder %s34, 0
      %p103 = por %p101, %p102
      %s104 = ssub.s32 %s35, %s47
      %p105 = scmp.eq.s32.totalorder %s104, 0
      %s107 = sadd.s32 %s106, 1
      %s108 = scalar_select %p105, %s106, %s107
      %p111 = pneg %p105
      %p112 = scmp.eq.s32.totalorder %s28, 1
      %p113 = por %p111, %p112
      %p114 = scmp.ne.s32.totalorder %s106, %s109
      %p115 = scmp.eq.s32.totalorder %s28, 0
      %p116 = por %p114, %p115
      %p117 = scmp.ne.s32.totalorder %s106, %s109
      %p118 = scmp.eq.s32.totalorder %s33, 1
      %p119 = por %p117, %p118
      %p120 = scmp.ne.s32.totalorder %s109, %s110
      %p121 = scmp.eq.s32.totalorder %s33, 0
      %p122 = por %p120, %p121
      %p123 = scmp.ne.s32.totalorder %s109, %s110
      %p124 = scmp.eq.s32.totalorder %s34, 1
      %p125 = por %p123, %p124
      %p127 = scmp.ne.s32.totalorder %s110, %s126
      %p128 = scmp.eq.s32.totalorder %s34, 0
      %p129 = por %p127, %p128
      %s131 = sadd.s32 %s130, 1
      %p134 = scmp.eq.s32.totalorder %s28, 1
      %p135 = scmp.ne.s32.totalorder %s130, %s132
      %p136 = scmp.eq.s32.totalorder %s28, 0
      %p137 = por %p135, %p136
      %p138 = scmp.ne.s32.totalorder %s130, %s132
      %p139 = scmp.eq.s32.totalorder %s33, 1
      %p140 = por %p138, %p139
      %p141 = scmp.ne.s32.totalorder %s132, %s133
      %p142 = scmp.eq.s32.totalorder %s33, 0
      %p143 = por %p141, %p142
      %p144 = scmp.ne.s32.totalorder %s132, %s133
      %p145 = scmp.eq.s32.totalorder %s34, 1
      %p146 = por %p144, %p145
      %p148 = scmp.ne.s32.totalorder %s133, %s147
      %p149 = scmp.eq.s32.totalorder %s34, 0
      %p150 = por %p148, %p149
      %s152 = sadd.s32 %s151, 1
      %p155 = scmp.eq.s32.totalorder %s28, 1
      %p156 = scmp.ne.s32.totalorder %s151, %s153
      %p157 = scmp.eq.s32.totalorder %s28, 0
      %p158 = por %p156, %p157
      %p159 = scmp.ne.s32.totalorder %s151, %s153
      %p160 = scmp.eq.s32.totalorder %s33, 1
      %p161 = por %p159, %p160
      %p162 = scmp.ne.s32.totalorder %s153, %s154
      %p163 = scmp.eq.s32.totalorder %s33, 0
      %p164 = por %p162, %p163
      %p165 = scmp.ne.s32.totalorder %s153, %s154
      %p166 = scmp.eq.s32.totalorder %s34, 1
      %p167 = por %p165, %p166
      %p169 = scmp.ne.s32.totalorder %s154, %s168
      %p170 = scmp.eq.s32.totalorder %s34, 0
      %p171 = por %p169, %p170
      %s173 = sadd.s32 %s172, 1
      %p176 = scmp.eq.s32.totalorder %s28, 1
      %p177 = scmp.ne.s32.totalorder %s172, %s174
      %p178 = scmp.eq.s32.totalorder %s28, 0
      %p179 = por %p177, %p178
      %p180 = scmp.ne.s32.totalorder %s172, %s174
      %p181 = scmp.eq.s32.totalorder %s33, 1
      %p182 = por %p180, %p181
      %p183 = scmp.ne.s32.totalorder %s174, %s175
      %p184 = scmp.eq.s32.totalorder %s33, 0
      %p185 = por %p183, %p184
      %p186 = scmp.ne.s32.totalorder %s174, %s175
      %p187 = scmp.eq.s32.totalorder %s34, 1
      %p188 = por %p186, %p187
      %p190 = scmp.ne.s32.totalorder %s175, %s189
      %p191 = scmp.eq.s32.totalorder %s34, 0
      %p192 = por %p190, %p191
      %s194 = sadd.s32 %s193, 1
      %p197 = scmp.eq.s32.totalorder %s28, 1
      %p198 = scmp.ne.s32.totalorder %s193, %s195
      %p199 = scmp.eq.s32.totalorder %s28, 0
      %p200 = por %p198, %p199
      %p201 = scmp.ne.s32.totalorder %s193, %s195
      %p202 = scmp.eq.s32.totalorder %s33, 1
      %p203 = por %p201, %p202
      %p204 = scmp.ne.s32.totalorder %s195, %s196
      %p205 = scmp.eq.s32.totalorder %s33, 0
      %p206 = por %p204, %p205
      %p207 = scmp.ne.s32.totalorder %s195, %s196
      %p208 = scmp.eq.s32.totalorder %s34, 1
      %p209 = por %p207, %p208
      %p211 = scmp.ne.s32.totalorder %s196, %s210
      %p212 = scmp.eq.s32.totalorder %s34, 0
      %p213 = por %p211, %p212
      %s215 = sadd.s32 %s214, 1
      %p218 = scmp.eq.s32.totalorder %s28, 1
      %p219 = scmp.ne.s32.totalorder %s214, %s216
      %p220 = scmp.eq.s32.totalorder %s28, 0
      %p221 = por %p219, %p220
      %p222 = scmp.ne.s32.totalorder %s214, %s216
      %p223 = scmp.eq.s32.totalorder %s33, 1
      %p224 = por %p222, %p223
      %p225 = scmp.ne.s32.totalorder %s216, %s217
      %p226 = scmp.eq.s32.totalorder %s33, 0
      %p227 = por %p225, %p226
      %p228 = scmp.ne.s32.totalorder %s216, %s217
      %p229 = scmp.eq.s32.totalorder %s34, 1
      %p230 = por %p228, %p229
      %p232 = scmp.ne.s32.totalorder %s217, %s231
      %p233 = scmp.eq.s32.totalorder %s34, 0
      %p234 = por %p232, %p233
      %s236 = sadd.s32 %s235, 1
      %p239 = scmp.eq.s32.totalorder %s28, 1
      %p240 = scmp.ne.s32.totalorder %s235, %s237
      %p241 = scmp.eq.s32.totalorder %s28, 0
      %p242 = por %p240, %p241
      %p243 = scmp.ne.s32.totalorder %s235, %s237
      %p244 = scmp.eq.s32.totalorder %s33, 1
      %p245 = por %p243, %p244
      %p246 = scmp.ne.s32.totalorder %s237, %s238
      %p247 = scmp.eq.s32.totalorder %s33, 0
      %p248 = por %p246, %p247
      %p249 = scmp.ne.s32.totalorder %s237, %s238
      %p250 = scmp.eq.s32.totalorder %s34, 1
      %p251 = por %p249, %p250
      %p253 = scmp.ne.s32.totalorder %s238, %s252
      %p254 = scmp.eq.s32.totalorder %s34, 0
      %p255 = por %p253, %p254
      %s257 = sadd.s32 %s256, 1
      %p260 = scmp.eq.s32.totalorder %s28, 1
      %p261 = scmp.ne.s32.totalorder %s256, %s258
      %p262 = scmp.eq.s32.totalorder %s28, 0
      %p263 = por %p261, %p262
      %p264 = scmp.ne.s32.totalorder %s256, %s258
      %p265 = scmp.eq.s32.totalorder %s33, 1
      %p266 = por %p264, %p265
      %p267 = scmp.ne.s32.totalorder %s258, %s259
      %p268 = scmp.eq.s32.totalorder %s33, 0
      %p269 = por %p267, %p268
      %p270 = scmp.ne.s32.totalorder %s258, %s259
      %p271 = scmp.eq.s32.totalorder %s34, 1
      %p272 = por %p270, %p271
      %p274 = scmp.ne.s32.totalorder %s259, %s273
      %p275 = scmp.eq.s32.totalorder %s34, 0
      %p276 = por %p274, %p275
      %s278 = sadd.s32 %s277, 1
      %p281 = scmp.eq.s32.totalorder %s28, 1
      %p282 = scmp.ne.s32.totalorder %s277, %s279
      %p283 = scmp.eq.s32.totalorder %s28, 0
      %p284 = por %p282, %p283
      %p285 = scmp.ne.s32.totalorder %s277, %s279
      %p286 = scmp.eq.s32.totalorder %s33, 1
      %p287 = por %p285, %p286
      %p288 = scmp.ne.s32.totalorder %s279, %s280
      %p289 = scmp.eq.s32.totalorder %s33, 0
      %p290 = por %p288, %p289
      %p291 = scmp.ne.s32.totalorder %s279, %s280
      %p292 = scmp.eq.s32.totalorder %s34, 1
      %p293 = por %p291, %p292
      %p295 = scmp.ne.s32.totalorder %s280, %s294
      %p296 = scmp.eq.s32.totalorder %s34, 0
      %p297 = por %p295, %p296
      %s299 = sadd.s32 %s298, 1
      %p302 = scmp.eq.s32.totalorder %s28, 1
      %p303 = scmp.ne.s32.totalorder %s298, %s300
      %p304 = scmp.eq.s32.totalorder %s28, 0
      %p305 = por %p303, %p304
      %p306 = scmp.ne.s32.totalorder %s298, %s300
      %p307 = scmp.eq.s32.totalorder %s33, 1
      %p308 = por %p306, %p307
      %p309 = scmp.ne.s32.totalorder %s300, %s301
      %p310 = scmp.eq.s32.totalorder %s33, 0
      %p311 = por %p309, %p310
      %p312 = scmp.ne.s32.totalorder %s300, %s301
      %p313 = scmp.eq.s32.totalorder %s34, 1
      %p314 = por %p312, %p313
      %p316 = scmp.ne.s32.totalorder %s301, %s315
      %p317 = scmp.eq.s32.totalorder %s34, 0
      %p318 = por %p316, %p317
      %s320 = sadd.s32 %s319, 1
      %p323 = scmp.eq.s32.totalorder %s28, 1
      %p324 = scmp.ne.s32.totalorder %s319, %s321
      %p325 = scmp.eq.s32.totalorder %s28, 0
      %p326 = por %p324, %p325
      %p327 = scmp.ne.s32.totalorder %s319, %s321
      %p328 = scmp.eq.s32.totalorder %s33, 1
      %p329 = por %p327, %p328
      %p330 = scmp.ne.s32.totalorder %s321, %s322
      %p331 = scmp.eq.s32.totalorder %s33, 0
      %p332 = por %p330, %p331
      %p333 = scmp.ne.s32.totalorder %s321, %s322
      %p334 = scmp.eq.s32.totalorder %s34, 1
      %p335 = por %p333, %p334
      %p337 = scmp.ne.s32.totalorder %s322, %s336
      %p338 = scmp.eq.s32.totalorder %s34, 0
      %p339 = por %p337, %p338
      %s341 = sadd.s32 %s340, 1
      %p344 = scmp.eq.s32.totalorder %s28, 1
      %p345 = scmp.ne.s32.totalorder %s340, %s342
      %p346 = scmp.eq.s32.totalorder %s28, 0
      %p347 = por %p345, %p346
      %p348 = scmp.ne.s32.totalorder %s340, %s342
      %p349 = scmp.eq.s32.totalorder %s33, 1
      %p350 = por %p348, %p349
      %p351 = scmp.ne.s32.totalorder %s342, %s343
      %p352 = scmp.eq.s32.totalorder %s33, 0
      %p353 = por %p351, %p352
      %p354 = scmp.ne.s32.totalorder %s342, %s343
      %p355 = scmp.eq.s32.totalorder %s34, 1
      %p356 = por %p354, %p355
      %p358 = scmp.ne.s32.totalorder %s343, %s357
      %p359 = scmp.eq.s32.totalorder %s34, 0
      %p360 = por %p358, %p359
      %s362 = sadd.s32 %s361, 1
      %p365 = scmp.eq.s32.totalorder %s28, 1
      %p366 = scmp.ne.s32.totalorder %s361, %s363
      %p367 = scmp.eq.s32.totalorder %s28, 0
      %p368 = por %p366, %p367
      %p369 = scmp.ne.s32.totalorder %s361, %s363
      %p370 = scmp.eq.s32.totalorder %s33, 1
      %p371 = por %p369, %p370
      %p372 = scmp.ne.s32.totalorder %s363, %s364
      %p373 = scmp.eq.s32.totalorder %s33, 0
      %p374 = por %p372, %p373
      %p375 = scmp.ne.s32.totalorder %s363, %s364
      %p376 = scmp.eq.s32.totalorder %s34, 1
      %p377 = por %p375, %p376
      %p379 = scmp.ne.s32.totalorder %s364, %s378
      %p380 = scmp.eq.s32.totalorder %s34, 0
      %p381 = por %p379, %p380
      %s383 = sadd.s32 %s382, 1
      %p386 = scmp.eq.s32.totalorder %s28, 1
      %p387 = scmp.ne.s32.totalorder %s382, %s384
      %p388 = scmp.eq.s32.totalorder %s28, 0
      %p389 = por %p387, %p388
      %p390 = scmp.ne.s32.totalorder %s382, %s384
      %p391 = scmp.eq.s32.totalorder %s33, 1
      %p392 = por %p390, %p391
      %p393 = scmp.ne.s32.totalorder %s384, %s385
      %p394 = scmp.eq.s32.totalorder %s33, 0
      %p395 = por %p393, %p394
      %p396 = scmp.ne.s32.totalorder %s384, %s385
      %p397 = scmp.eq.s32.totalorder %s34, 1
      %p398 = por %p396, %p397
      %p400 = scmp.ne.s32.totalorder %s385, %s399
      %p401 = scmp.eq.s32.totalorder %s34, 0
      %p402 = por %p400, %p401
      %s403 = ssub.s32 %s35, %s47
      %s404 = ssub.s32 %s36, %s43
      %s405 = sor.u32 %s403, %s404
      %p406 = scmp.eq.s32.totalorder %s405, 0
      %s408 = sadd.s32 %s407, 1
      %s409 = scalar_select %p406, %s407, %s408
      %p412 = pneg %p406
      %p413 = scmp.eq.s32.totalorder %s28, 1
      %p414 = por %p412, %p413
      %p415 = scmp.ne.s32.totalorder %s407, %s410
      %p416 = scmp.eq.s32.totalorder %s28, 0
      %p417 = por %p415, %p416
      %p418 = scmp.ne.s32.totalorder %s407, %s410
      %p419 = scmp.eq.s32.totalorder %s33, 1
      %p420 = por %p418, %p419
      %p421 = scmp.ne.s32.totalorder %s410, %s411
      %p422 = scmp.eq.s32.totalorder %s33, 0
      %p423 = por %p421, %p422
      %p424 = scmp.ne.s32.totalorder %s410, %s411
      %p425 = scmp.eq.s32.totalorder %s34, 1
      %p426 = por %p424, %p425
      %p428 = scmp.ne.s32.totalorder %s411, %s427
      %p429 = scmp.eq.s32.totalorder %s34, 0
      %p430 = por %p428, %p429
      %p431 = scmp.le.s32.totalorder 1, %s28
      %p432 = scmp.lt.s32.totalorder %s28, 3
      %p433 = pnand %p431, %p432
      %p434 = pneg %p433
      // Predicated region
      $region9: #{gsa_transformer_block.3} parent=5 // pred_check
        _
      $region10: #{gsa_transformer_block.3} parent=5 // pred_check_branch
        %436 = sbr.rel (%p433) target = $region12
      $region11: #{gsa_transformer_block.3} parent=5 // pred_region
        %s437 = ssub.s32 %s28, 1
        // Predicated region
        $region13: #{gsa_transformer_block.3} parent=11 // pred_check
          %p438 = pneg %p143
        $region14: #{gsa_transformer_block.3} parent=11 // pred_check_branch
          %440 = sbr.rel (%p438) target = $region16
        $region15: #{gsa_transformer_block.3} parent=11 // pred_region
          _
        $region16: #{gsa_transformer_block.3} parent=11 // pred_fallthru
          _
        // Predicated region
        $region17: #{gsa_transformer_block.3} parent=11 // pred_check
          %p441 = pneg %p164
        $region18: #{gsa_transformer_block.3} parent=11 // pred_check_branch
          %443 = sbr.rel (%p441) target = $region20
        $region19: #{gsa_transformer_block.3} parent=11 // pred_region
          %s445 = ssub.s32 64, 64
          %446 = vsyncadd [#allocation5], %s445
          %s448 = sshll.u32 %s4, 4
          %s449 = int_to_ptr.vmem [resolvable:$true] %s448
          %451 = dma.vmem_to_smem %s449, 64, [#allocation3], [#allocation5]
        $region20: #{gsa_transformer_block.3} parent=11 // pred_fallthru
          _
        // Predicated region
        $region21: #{gsa_transformer_block.3} parent=11 // pred_check
          %p452 = pneg %p185
        $region22: #{gsa_transformer_block.3} parent=11 // pred_check_branch
          %454 = sbr.rel (%p452) target = $region24
        $region23: #{gsa_transformer_block.3} parent=11 // pred_region
          %s456 = ssub.s32 64, 64
          %457 = vsyncadd [#allocation7], %s456
          %s459 = sshll.u32 %s5, 4
          %s460 = int_to_ptr.vmem [resolvable:$true] %s459
          %462 = dma.vmem_to_smem %s460, 64, [#allocation6], [#allocation7]
        $region24: #{gsa_transformer_block.3} parent=11 // pred_fallthru
          _
        // Predicated region
        $region25: #{gsa_transformer_block.3} parent=11 // pred_check
          %p463 = pneg %p206
        $region26: #{gsa_transformer_block.3} parent=11 // pred_check_branch
          %465 = sbr.rel (%p463) target = $region28
        $region27: #{gsa_transformer_block.3} parent=11 // pred_region
          %s467 = ssub.s32 64, 64
          %468 = vsyncadd [#allocation7], %s467
          %s470 = sshll.u32 %s6, 4
          %s471 = int_to_ptr.vmem [resolvable:$true] %s470
          %473 = dma.vmem_to_smem %s471, 64, [#allocation8], [#allocation7]
        $region28: #{gsa_transformer_block.3} parent=11 // pred_fallthru
          _
        // Predicated region
        $region29: #{gsa_transformer_block.3} parent=11 // pred_check
          %p474 = pneg %p227
        $region30: #{gsa_transformer_block.3} parent=11 // pred_check_branch
          %476 = sbr.rel (%p474) target = $region32
        $region31: #{gsa_transformer_block.3} parent=11 // pred_region
          %s478 = ssub.s32 64, 64
          %479 = vsyncadd [#allocation10], %s478
          %s481 = sshll.u32 %s7, 4
          %s482 = int_to_ptr.vmem [resolvable:$true] %s481
          %484 = dma.vmem_to_smem %s482, 64, [#allocation9], [#allocation10]
        $region32: #{gsa_transformer_block.3} parent=11 // pred_fallthru
          _
        // Predicated region
        $region33: #{gsa_transformer_block.3} parent=11 // pred_check
          %p485 = pneg %p248
        $region34: #{gsa_transformer_block.3} parent=11 // pred_check_branch
          %487 = sbr.rel (%p485) target = $region36
        $region35: #{gsa_transformer_block.3} parent=11 // pred_region
          _
        $region36: #{gsa_transformer_block.3} parent=11 // pred_fallthru
          _
        // Predicated region
        $region37: #{gsa_transformer_block.3} parent=11 // pred_check
          %p488 = pneg %p269
        $region38: #{gsa_transformer_block.3} parent=11 // pred_check_branch
          %490 = sbr.rel (%p488) target = $region40
        $region39: #{gsa_transformer_block.3} parent=11 // pred_region
          _
        $region40: #{gsa_transformer_block.3} parent=11 // pred_fallthru
          _
        // Predicated region
        $region41: #{gsa_transformer_block.3} parent=11 // pred_check
          %p491 = pneg %p290
        $region42: #{gsa_transformer_block.3} parent=11 // pred_check_branch
          %493 = sbr.rel (%p491) target = $region44
        $region43: #{gsa_transformer_block.3} parent=11 // pred_region
          _
        $region44: #{gsa_transformer_block.3} parent=11 // pred_fallthru
          _
        // Predicated region
        $region45: #{gsa_transformer_block.3} parent=11 // pred_check
          %p494 = pneg %p311
        $region46: #{gsa_transformer_block.3} parent=11 // pred_check_branch
          %496 = sbr.rel (%p494) target = $region48
        $region47: #{gsa_transformer_block.3} parent=11 // pred_region
          _
        $region48: #{gsa_transformer_block.3} parent=11 // pred_fallthru
          _
        // Predicated region
        $region49: #{gsa_transformer_block.3} parent=11 // pred_check
          %p497 = pneg %p332
        $region50: #{gsa_transformer_block.3} parent=11 // pred_check_branch
          %499 = sbr.rel (%p497) target = $region52
        $region51: #{gsa_transformer_block.3} parent=11 // pred_region
          _
        $region52: #{gsa_transformer_block.3} parent=11 // pred_fallthru
          _
        // Predicated region
        $region53: #{gsa_transformer_block.3} parent=11 // pred_check
          %p500 = pneg %p353
        $region54: #{gsa_transformer_block.3} parent=11 // pred_check_branch
          %502 = sbr.rel (%p500) target = $region56
        $region55: #{gsa_transformer_block.3} parent=11 // pred_region
          _
        $region56: #{gsa_transformer_block.3} parent=11 // pred_fallthru
          _
        // Predicated region
        $region57: #{gsa_transformer_block.3} parent=11 // pred_check
          %p503 = pneg %p374
        $region58: #{gsa_transformer_block.3} parent=11 // pred_check_branch
          %505 = sbr.rel (%p503) target = $region60
        $region59: #{gsa_transformer_block.3} parent=11 // pred_region
          _
        $region60: #{gsa_transformer_block.3} parent=11 // pred_fallthru
          _
        // Predicated region
        $region61: #{gsa_transformer_block.3} parent=11 // pred_check
          %p506 = pneg %p395
        $region62: #{gsa_transformer_block.3} parent=11 // pred_check_branch
          %508 = sbr.rel (%p506) target = $region64
        $region63: #{gsa_transformer_block.3} parent=11 // pred_region
          _
        $region64: #{gsa_transformer_block.3} parent=11 // pred_fallthru
          _
      $region12: #{gsa_transformer_block.3} parent=5 // pred_fallthru
        _
      %p509 = scmp.lt.s32.totalorder %s28, 2
      // Predicated region
      $region65: #{gsa_transformer_block.3} parent=5 // pred_check
        %p510 = pneg %p509
      $region66: #{gsa_transformer_block.3} parent=5 // pred_check_branch
        %512 = sbr.rel (%p510) target = $region68
      $region67: #{gsa_transformer_block.3} parent=5 // pred_region
        // Predicated region
        $region69: #{gsa_transformer_block.3} parent=67 // pred_check
          %p513 = pneg %p62
        $region70: #{gsa_transformer_block.3} parent=67 // pred_check_branch
          %515 = sbr.rel (%p513) target = $region72
        $region71: #{gsa_transformer_block.3} parent=67 // pred_region
          %p516 = scmp.lt.s32.totalorder %s35, 1
          %s517 = scalar_select %p516, %s35, 1
          %p518 = scmp.lt.s32.totalorder %s36, 0
          %s519 = scalar_select %p518, %s36, 0
          %s520 = sadd.s32 %s519, %s517
          %s521 = smul.addr %s520, 8
          %s522 = scalar_lea.vmem %s0, %s521
        $region72: #{gsa_transformer_block.3} parent=67 // pred_fallthru
          _
        // Predicated region
        $region73: #{gsa_transformer_block.3} parent=67 // pred_check
          %p523 = pneg %p90
        $region74: #{gsa_transformer_block.3} parent=67 // pred_check_branch
          %525 = sbr.rel (%p523) target = $region76
        $region75: #{gsa_transformer_block.3} parent=67 // pred_region
          %p526 = scmp.lt.s32.totalorder %s35, 1
          %s527 = scalar_select %p526, %s35, 1
          %p528 = scmp.lt.s32.totalorder %s36, 0
          %s529 = scalar_select %p528, %s36, 0
          %s530 = sadd.s32 %s529, %s527
          %s531 = smul.addr %s530, 4
          %s532 = scalar_lea.vmem %s1, %s531
        $region76: #{gsa_transformer_block.3} parent=67 // pred_fallthru
          _
        // Predicated region
        $region77: #{gsa_transformer_block.3} parent=67 // pred_check
          %p533 = pneg %p116
        $region78: #{gsa_transformer_block.3} parent=67 // pred_check_branch
          %535 = sbr.rel (%p533) target = $region80
        $region79: #{gsa_transformer_block.3} parent=67 // pred_region
          %p536 = scmp.lt.s32.totalorder %s35, 1
          %s537 = scalar_select %p536, %s35, 1
          %s538 = smul.addr %s537, 4
          %s539 = scalar_lea.vmem %s2, %s538
        $region80: #{gsa_transformer_block.3} parent=67 // pred_fallthru
          _
      $region68: #{gsa_transformer_block.3} parent=5 // pred_fallthru
        _
      %p540 = scmp.le.s32.totalorder 1, %s28
      %p541 = scmp.lt.s32.totalorder %s28, 3
      %p542 = pnand %p540, %p541
      %p543 = pneg %p542
      // Predicated region
      $region81: #{gsa_transformer_block.3} parent=5 // pred_check
        _
      $region82: #{gsa_transformer_block.3} parent=5 // pred_check_branch
        %545 = sbr.rel (%p542) target = $region84
      $region83: #{gsa_transformer_block.3} parent=5 // pred_region
        %s546 = ssub.s32 %s28, 1
        // Predicated region
        $region85: #{gsa_transformer_block.3} parent=83 // pred_check
          %p547 = pneg %p164
        $region86: #{gsa_transformer_block.3} parent=83 // pred_check_branch
          %549 = sbr.rel (%p547) target = $region88
        $region87: #{gsa_transformer_block.3} parent=83 // pred_region
          %550 = dma.done [#allocation5], 64
        $region88: #{gsa_transformer_block.3} parent=83 // pred_fallthru
          _
        // Predicated region
        $region89: #{gsa_transformer_block.3} parent=83 // pred_check
          %p551 = pneg %p185
        $region90: #{gsa_transformer_block.3} parent=83 // pred_check_branch
          %553 = sbr.rel (%p551) target = $region92
        $region91: #{gsa_transformer_block.3} parent=83 // pred_region
          %554 = dma.done [#allocation7], 64
        $region92: #{gsa_transformer_block.3} parent=83 // pred_fallthru
          _
        // Predicated region
        $region93: #{gsa_transformer_block.3} parent=83 // pred_check
          %p555 = pneg %p206
        $region94: #{gsa_transformer_block.3} parent=83 // pred_check_branch
          %557 = sbr.rel (%p555) target = $region96
        $region95: #{gsa_transformer_block.3} parent=83 // pred_region
          %558 = dma.done [#allocation7], 64
        $region96: #{gsa_transformer_block.3} parent=83 // pred_fallthru
          _
        // Predicated region
        $region97: #{gsa_transformer_block.3} parent=83 // pred_check
          %p559 = pneg %p227
        $region98: #{gsa_transformer_block.3} parent=83 // pred_check_branch
          %561 = sbr.rel (%p559) target = $region100
        $region99: #{gsa_transformer_block.3} parent=83 // pred_region
          %562 = dma.done [#allocation10], 64
        $region100: #{gsa_transformer_block.3} parent=83 // pred_fallthru
          _
        %563 = sfence
        %p564 = scmp.lt.s32.totalorder %s37, 1
        %s565 = scalar_select %p564, %s37, 1
        %p566 = scmp.lt.s32.totalorder %s38, 0
        %s567 = scalar_select %p566, %s38, 0
        %s568 = sadd.s32 %s567, %s565
        %s569 = smul.addr %s568, 8
        %s570 = scalar_lea.vmem %s0, %s569
        %p571 = pneg %p68
        %p572 = pneg %p65
        %p573 = scmp.lt.s32.totalorder %s37, 1
        %s574 = scalar_select %p573, %s37, 1
        %p575 = scmp.lt.s32.totalorder %s38, 0
        %s576 = scalar_select %p575, %s38, 0
        %s577 = sadd.s32 %s576, %s574
        %s578 = smul.addr %s577, 4
        %s579 = scalar_lea.vmem %s1, %s578
        %p580 = pneg %p96
        %p581 = pneg %p93
        %p582 = scmp.lt.s32.totalorder %s37, 1
        %s583 = scalar_select %p582, %s37, 1
        %s584 = smul.addr %s583, 4
        %s585 = scalar_lea.vmem %s2, %s584
        %p586 = pneg %p122
        %p587 = pneg %p119
        %p588 = pneg %p143
        %p589 = pneg %p140
        %p590 = pneg %p164
        %p591 = pneg %p161
        %p592 = pneg %p185
        %p593 = pneg %p182
        %p594 = pneg %p206
        %p595 = pneg %p203
        %p596 = pneg %p227
        %p597 = pneg %p224
        %p598 = pneg %p248
        %p599 = pneg %p245
        %p600 = pneg %p269
        %p601 = pneg %p266
        %p602 = pneg %p290
        %p603 = pneg %p287
        %p604 = pneg %p311
        %p605 = pneg %p308
        %p606 = pneg %p332
        %p607 = pneg %p329
        %p608 = pneg %p353
        %p609 = pneg %p350
        %p610 = pneg %p374
        %p611 = pneg %p371
        %p612 = pneg %p395
        %p613 = pneg %p392
        %p614 = pneg %p423
        %p615 = pneg %p420
        %s616 = sand.u32 %s410, 1
        %s617 = scalar_lea.sflag [#allocation4], %s616
        %s618 = sand.u32 %s410, 1
        %s619 = smul.addr %s618, 8
        %s620 = scalar_lea.vmem [#allocation11], %s619
        %p621 = scmp.lt.s32.totalorder %s37, 1
        %s622 = scalar_select %p621, %s37, 1
        %p623 = scmp.lt.s32.totalorder %s38, 0
        %s624 = scalar_select %p623, %s38, 0
        %s625 = sadd.s32 %s624, %s622
        %s626 = smul.addr %s625, 8
        %s627 = scalar_lea.vmem %s0, %s626
        %p628 = scmp.lt.s32.totalorder %s37, 1
        %s629 = scalar_select %p628, %s37, 1
        %p630 = scmp.lt.s32.totalorder %s38, 0
        %s631 = scalar_select %p630, %s38, 0
        %s632 = sadd.s32 %s631, %s629
        %s633 = smul.addr %s632, 4
        %s634 = scalar_lea.vmem %s1, %s633
        %p635 = scmp.lt.s32.totalorder %s37, 1
        %s636 = scalar_select %p635, %s37, 1
        %s637 = smul.addr %s636, 4
        %s638 = scalar_lea.vmem %s2, %s637
        %v640 = vld [vmem:[%s627] sm:$0xff]
        %s641 = smul.u32 %s38, 8
        %v642 = vlaneseq
        %v643 = vshrl.u32 %v642, 7
        %v644 = vstv %s641
        %v645 = vadd.s32 %v644, %v643
        %v646 = vlaneseq
        %v647 = vand.u32 %v646, 127
        %vm648 = vcmp.eq.s32.totalorder %v645, %v647
        %v649 = vld [vmem:[%s634] sm:$0xf]
        %v650 = vld [vmem:[%s638] sm:$0xf]
        %v651 = vld [vmem:[%s3] sm:$0x1]
        %vm652 = vcmask 64512
        %v654 = vsel %vm652, %v649, 0
        %v657 = vsel %vm652, %v650, 0
        %659 = vmatprep.subr.bf16.mxu0 0
        %660 = vmatpush1.bf16.xpose.msra.mxu0 %v657
        %661 = vmatprep.subr.bf16.mxu0 0
        %662 = vmatpush1.bf16.xpose.msra.mxu0 0
        %663 = vmatprep.subr.bf16.mxu0 0
        %664 = vmatpush1.bf16.xpose.msra.mxu0 0
        %665 = vmatprep.subr.bf16.mxu0 0
        %666 = vmatpush1.bf16.xpose.msra.mxu0 0
        %667 = vmatprep.subr.bf16.mxu0 0
        %668 = vmatpush1.bf16.xpose.msra.mxu0 0
        %669 = vmatprep.subr.bf16.mxu0 0
        %670 = vmatpush1.bf16.xpose.msra.mxu0 0
        %671 = vmatprep.subr.bf16.mxu0 0
        %672 = vmatpush1.bf16.xpose.msra.mxu0 0
        %673 = vmatprep.subr.bf16.mxu0 0
        %674 = vmatpush1.bf16.xpose.msra.mxu0 0
        %675 = vmatprep.subr.bf16.mxu0 0
        %676 = vmatpush1.bf16.xpose.msra.mxu0 0
        %677 = vmatprep.subr.bf16.mxu0 0
        %678 = vmatpush1.bf16.xpose.msra.mxu0 0
        %679 = vmatprep.subr.bf16.mxu0 0
        %680 = vmatpush1.bf16.xpose.msra.mxu0 0
        %681 = vmatprep.subr.bf16.mxu0 0
        %682 = vmatpush1.bf16.xpose.msra.mxu0 0
        %683 = vmatprep.subr.bf16.mxu0 0
        %684 = vmatpush1.bf16.xpose.msra.mxu0 0
        %685 = vmatprep.subr.bf16.mxu0 0
        %686 = vmatpush1.bf16.xpose.msra.mxu0 0
        %687 = vmatprep.subr.bf16.mxu0 0
        %688 = vmatpush1.bf16.xpose.msra.mxu0 0
        %689 = vmatprep.subr.bf16.mxu0 0
        %690 = vmatpush1.bf16.xpose.msra.mxu0 0
        %691 = vmatprep.mubr.bf16.mxu0 0
        %692 = vmatmul.mubr.bf16.gmra.mrb[0].mxu0 %v654
        %v693 = vpop.f32.mrb[0].mxu0
        %v694 = vadd.f32 0.0, %v693
        %v695 = vpop.f32.mrb[0].mxu0
        %v696 = vpop.f32.mrb[0].mxu0
        %v697 = vpop.f32.mrb[0].mxu0
        %698 = vdwg.mxu0
        %v700 = vsel %vm652, %v651, 0
        %702 = vmatprep.subr.bf16.mxu0 0
        %703 = vmatpush1.bf16.xpose.msra.mxu0 %v700
        %704 = vmatprep.subr.bf16.mxu0 0
        %705 = vmatpush1.bf16.xpose.msra.mxu0 0
        %706 = vmatprep.subr.bf16.mxu0 0
        %707 = vmatpush1.bf16.xpose.msra.mxu0 0
        %708 = vmatprep.subr.bf16.mxu0 0
        %709 = vmatpush1.bf16.xpose.msra.mxu0 0
        %710 = vmatprep.subr.bf16.mxu0 0
        %711 = vmatpush1.bf16.xpose.msra.mxu0 0
        %712 = vmatprep.subr.bf16.mxu0 0
        %713 = vmatpush1.bf16.xpose.msra.mxu0 0
        %714 = vmatprep.subr.bf16.mxu0 0
        %715 = vmatpush1.bf16.xpose.msra.mxu0 0
        %716 = vmatprep.subr.bf16.mxu0 0
        %717 = vmatpush1.bf16.xpose.msra.mxu0 0
        %718 = vmatprep.subr.bf16.mxu0 0
        %719 = vmatpush1.bf16.xpose.msra.mxu0 0
        %720 = vmatprep.subr.bf16.mxu0 0
        %721 = vmatpush1.bf16.xpose.msra.mxu0 0
        %722 = vmatprep.subr.bf16.mxu0 0
        %723 = vmatpush1.bf16.xpose.msra.mxu0 0
        %724 = vmatprep.subr.bf16.mxu0 0
        %725 = vmatpush1.bf16.xpose.msra.mxu0 0
        %726 = vmatprep.subr.bf16.mxu0 0
        %727 = vmatpush1.bf16.xpose.msra.mxu0 0
        %728 = vmatprep.subr.bf16.mxu0 0
        %729 = vmatpush1.bf16.xpose.msra.mxu0 0
        %730 = vmatprep.subr.bf16.mxu0 0
        %731 = vmatpush1.bf16.xpose.msra.mxu0 0
        %732 = vmatprep.subr.bf16.mxu0 0
        %733 = vmatpush1.bf16.xpose.msra.mxu0 0
        %734 = vmatprep.mubr.bf16.mxu0 0
        %735 = vmatmul.mubr.bf16.gmra.mrb[0].mxu0 %v654
        %v736 = vpop.f32.mrb[0].mxu0
        %v737 = vadd.f32 0.0, %v736
        %v738 = vpop.f32.mrb[0].mxu0
        %v739 = vpop.f32.mrb[0].mxu0
        %v740 = vpop.f32.mrb[0].mxu0
        %741 = vdwg.mxu0
        %742 = vmatprep.subr.bf16.mxu0 0
        %743 = vmatpush1.bf16.xpose.msra.mxu0 %v657
        %744 = vmatprep.subr.bf16.mxu0 0
        %745 = vmatpush1.bf16.xpose.msra.mxu0 0
        %746 = vmatprep.subr.bf16.mxu0 0
        %747 = vmatpush1.bf16.xpose.msra.mxu0 0
        %748 = vmatprep.subr.bf16.mxu0 0
        %749 = vmatpush1.bf16.xpose.msra.mxu0 0
        %750 = vmatprep.subr.bf16.mxu0 0
        %751 = vmatpush1.bf16.xpose.msra.mxu0 0
        %752 = vmatprep.subr.bf16.mxu0 0
        %753 = vmatpush1.bf16.xpose.msra.mxu0 0
        %754 = vmatprep.subr.bf16.mxu0 0
        %755 = vmatpush1.bf16.xpose.msra.mxu0 0
        %756 = vmatprep.subr.bf16.mxu0 0
        %757 = vmatpush1.bf16.xpose.msra.mxu0 0
        %758 = vmatprep.subr.bf16.mxu0 0
        %759 = vmatpush1.bf16.xpose.msra.mxu0 0
        %760 = vmatprep.subr.bf16.mxu0 0
        %761 = vmatpush1.bf16.xpose.msra.mxu0 0
        %762 = vmatprep.subr.bf16.mxu0 0
        %763 = vmatpush1.bf16.xpose.msra.mxu0 0
        %764 = vmatprep.subr.bf16.mxu0 0
        %765 = vmatpush1.bf16.xpose.msra.mxu0 0
        %766 = vmatprep.subr.bf16.mxu0 0
        %767 = vmatpush1.bf16.xpose.msra.mxu0 0
        %768 = vmatprep.subr.bf16.mxu0 0
        %769 = vmatpush1.bf16.xpose.msra.mxu0 0
        %770 = vmatprep.subr.bf16.mxu0 0
        %771 = vmatpush1.bf16.xpose.msra.mxu0 0
        %772 = vmatprep.subr.bf16.mxu0 0
        %773 = vmatpush1.bf16.xpose.msra.mxu0 0
        %774 = vmatprep.mubr.bf16.mxu0 0
        %775 = vmatmul.mubr.bf16.gmra.mrb[0].mxu0 %v700
        %v776 = vpop.f32.mrb[0].mxu0
        %v777 = vadd.f32 0.0, %v776
        %v778 = vpop.f32.mrb[0].mxu0
        %v779 = vpop.f32.mrb[0].mxu0
        %v780 = vpop.f32.mrb[0].mxu0
        %781 = vdwg.mxu0
        %s782 = sld [smem:[#allocation3]]
        %s783 = sld [smem:[#allocation6]]
        %s784 = sld [smem:[#allocation8]]
        %s785 = sld [smem:[#allocation9]]
        %787 = vset.pattern.permute.xlu0 0
        %788 = vperm.xlu0 %787, %v737
        %v789 = vpop.permute.xlu0 %788
        %v791 = vsub.f32 %v694, %v789
        %v792 = vlaneseq
        %v793 = vshrl.u32 %v792, 7
        %v794 = vsub.s32 0, %v793
        %v795 = vrot.slane %v777, %v794
        %v796 = vsub.f32 %v791, %v795
        %v797 = vstv %s785
        %v798 = vadd.f32 %v796, %v797
        %v799 = vstv %s782
        %v800 = vmul.f32 %v799, %v798
        %v801 = vstv %s783
        %v802 = vadd.f32 %v800, %v801
        %v803 = vsel %vm648, %v802, %v800
        %v804 = vsel %vm652, %v803, -inf
        %805 = vmax.xlane.f32.xlu0 %v804
        %v806 = vpop.xlane.xlu0 %805
        %v807 = vsub.f32 %v803, %v806
        %v808 = vmul.f32 %v807, 1.442695
        %v809 = vpow.pop %v808
        %v810 = vsel %vm652, %v809, 0.0
        %811 = vadd.xlane.f32.xlu0 %v810
        %v812 = vpop.xlane.xlu0 %811
        %v813 = vrcp.pop %v812
        %v814 = vstv %s784
        %v815 = vmul.f32 %v814, %v813
        %v816 = vpack.c.bf16 %v809, %v809
        %v818 = vunpack.c.l.b16 %v650
        %v819 = vpack.c.b16 %v818, %v818
        %820 = vrot.lane.b32.xlu0 %v819, 96
        %v821 = vpop.permute.xlu0 %820
        %v823 = vsel %vm652, %v816, 0
        %vm825 = vcmask 1043456
        %v827 = vsel %vm825, %v821, 0
        %829 = vmatprep.subr.bf16.mxu0 0
        %830 = vmatpush1.bf16.msra.mxu0 %v827
        %831 = vmatprep.subr.bf16.mxu0 0
        %832 = vmatpush1.bf16.msra.mxu0 0
        %833 = vmatprep.subr.bf16.mxu0 0
        %834 = vmatpush1.bf16.msra.mxu0 0
        %835 = vmatprep.subr.bf16.mxu0 0
        %836 = vmatpush1.bf16.msra.mxu0 0
        %837 = vmatprep.subr.bf16.mxu0 0
        %838 = vmatpush1.bf16.msra.mxu0 0
        %839 = vmatprep.subr.bf16.mxu0 0
        %840 = vmatpush1.bf16.msra.mxu0 0
        %841 = vmatprep.subr.bf16.mxu0 0
        %842 = vmatpush1.bf16.msra.mxu0 0
        %843 = vmatprep.subr.bf16.mxu0 0
        %844 = vmatpush1.bf16.msra.mxu0 0
        %845 = vmatprep.subr.bf16.mxu0 0
        %846 = vmatpush1.bf16.msra.mxu0 0
        %847 = vmatprep.subr.bf16.mxu0 0
        %848 = vmatpush1.bf16.msra.mxu0 0
        %849 = vmatprep.subr.bf16.mxu0 0
        %850 = vmatpush1.bf16.msra.mxu0 0
        %851 = vmatprep.subr.bf16.mxu0 0
        %852 = vmatpush1.bf16.msra.mxu0 0
        %853 = vmatprep.subr.bf16.mxu0 0
        %854 = vmatpush1.bf16.msra.mxu0 0
        %855 = vmatprep.subr.bf16.mxu0 0
        %856 = vmatpush1.bf16.msra.mxu0 0
        %857 = vmatprep.subr.bf16.mxu0 0
        %858 = vmatpush1.bf16.msra.mxu0 0
        %859 = vmatprep.subr.bf16.mxu0 0
        %860 = vmatpush1.bf16.msra.mxu0 0
        %861 = vmatprep.mubr.bf16.mxu0 0
        %862 = vmatmul.mubr.bf16.gmra.mrb[0].mxu0 %v823
        %v863 = vpop.f32.mrb[0].mxu0
        %v864 = vadd.f32 0.0, %v863
        %v865 = vpop.f32.mrb[0].mxu0
        %v866 = vpop.f32.mrb[0].mxu0
        %v867 = vpop.f32.mrb[0].mxu0
        %868 = vdwg.mxu0
        %v869 = vmul.f32 %v815, %v864
        %v870 = vadd.f32 %v869, 0.0
        %s871 = sld [smem:[#allocation3 + $0x1]]
        %s872 = sld [smem:[#allocation6 + $0x1]]
        %s873 = sld [smem:[#allocation8 + $0x1]]
        %s874 = sld [smem:[#allocation9 + $0x1]]
        %875 = vset.pattern.permute.xlu0 1
        %876 = vperm.xlu0 %875, %v737
        %v877 = vpop.permute.xlu0 %876
        %v879 = vsub.f32 %v694, %v877
        %v880 = vlaneseq
        %v881 = vshrl.u32 %v880, 7
        %v882 = vsub.s32 1, %v881
        %v883 = vrot.slane %v777, %v882
        %v884 = vsub.f32 %v879, %v883
        %v885 = vstv %s874
        %v886 = vadd.f32 %v884, %v885
        %v887 = vstv %s871
        %v888 = vmul.f32 %v887, %v886
        %v889 = vstv %s872
        %v890 = vadd.f32 %v888, %v889
        %v891 = vsel %vm648, %v890, %v888
        %v892 = vsel %vm652, %v891, -inf
        %893 = vmax.xlane.f32.xlu0 %v892
        %v894 = vpop.xlane.xlu0 %893
        %v895 = vsub.f32 %v891, %v894
        %v896 = vmul.f32 %v895, 1.442695
        %v897 = vpow.pop %v896
        %v898 = vsel %vm652, %v897, 0.0
        %899 = vadd.xlane.f32.xlu0 %v898
        %v900 = vpop.xlane.xlu0 %899
        %v901 = vrcp.pop %v900
        %v902 = vstv %s873
        %v903 = vmul.f32 %v902, %v901
        %v904 = vpack.c.bf16 %v897, %v897
        %v906 = vsel %vm652, %v904, 0
        %908 = vmatprep.subr.bf16.mxu0 0
        %909 = vmatpush1.bf16.msra.mxu0 %v827
        %910 = vmatprep.subr.bf16.mxu0 0
        %911 = vmatpush1.bf16.msra.mxu0 0
        %912 = vmatprep.subr.bf16.mxu0 0
        %913 = vmatpush1.bf16.msra.mxu0 0
        %914 = vmatprep.subr.bf16.mxu0 0
        %915 = vmatpush1.bf16.msra.mxu0 0
        %916 = vmatprep.subr.bf16.mxu0 0
        %917 = vmatpush1.bf16.msra.mxu0 0
        %918 = vmatprep.subr.bf16.mxu0 0
        %919 = vmatpush1.bf16.msra.mxu0 0
        %920 = vmatprep.subr.bf16.mxu0 0
        %921 = vmatpush1.bf16.msra.mxu0 0
        %922 = vmatprep.subr.bf16.mxu0 0
        %923 = vmatpush1.bf16.msra.mxu0 0
        %924 = vmatprep.subr.bf16.mxu0 0
        %925 = vmatpush1.bf16.msra.mxu0 0
        %926 = vmatprep.subr.bf16.mxu0 0
        %927 = vmatpush1.bf16.msra.mxu0 0
        %928 = vmatprep.subr.bf16.mxu0 0
        %929 = vmatpush1.bf16.msra.mxu0 0
        %930 = vmatprep.subr.bf16.mxu0 0
        %931 = vmatpush1.bf16.msra.mxu0 0
        %932 = vmatprep.subr.bf16.mxu0 0
        %933 = vmatpush1.bf16.msra.mxu0 0
        %934 = vmatprep.subr.bf16.mxu0 0
        %935 = vmatpush1.bf16.msra.mxu0 0
        %936 = vmatprep.subr.bf16.mxu0 0
        %937 = vmatpush1.bf16.msra.mxu0 0
        %938 = vmatprep.subr.bf16.mxu0 0
        %939 = vmatpush1.bf16.msra.mxu0 0
        %940 = vmatprep.mubr.bf16.mxu0 0
        %941 = vmatmul.mubr.bf16.gmra.mrb[0].mxu0 %v906
        %v942 = vpop.f32.mrb[0].mxu0
        %v943 = vadd.f32 0.0, %v942
        %v944 = vpop.f32.mrb[0].mxu0
        %v945 = vpop.f32.mrb[0].mxu0
        %v946 = vpop.f32.mrb[0].mxu0
        %947 = vdwg.mxu0
        %v948 = vmul.f32 %v903, %v943
        %v949 = vadd.f32 %v870, %v948
        %950 = vst.msk [vmem:[#allocation2] sm:$0xff] %vm652, %v949
        %v951 = vld [vmem:[%s634] sm:$0xf]
        %v952 = vld [vmem:[%s638] sm:$0xf]
        %s953 = scalar_lea.vmem %s3, 1
        %v954 = vld [vmem:[%s953] sm:$0x1]
        %v956 = vunpack.c.l.b16 %v951
        %v957 = vpack.c.b16 %v956, %v956
        %958 = vrot.lane.b32.xlu0 %v957, 120
        %v959 = vpop.permute.xlu0 %958
        %v961 = vunpack.c.l.b16 %v952
        %v962 = vpack.c.b16 %v961, %v961
        %963 = vrot.lane.b32.xlu0 %v962, 120
        %v964 = vpop.permute.xlu0 %963
        %v966 = vsel %vm652, %v959, 0
        %v969 = vsel %vm652, %v964, 0
        %971 = vmatprep.subr.bf16.mxu0 0
        %972 = vmatpush1.bf16.xpose.msra.mxu0 %v969
        %973 = vmatprep.subr.bf16.mxu0 0
        %974 = vmatpush1.bf16.xpose.msra.mxu0 0
        %975 = vmatprep.subr.bf16.mxu0 0
        %976 = vmatpush1.bf16.xpose.msra.mxu0 0
        %977 = vmatprep.subr.bf16.mxu0 0
        %978 = vmatpush1.bf16.xpose.msra.mxu0 0
        %979 = vmatprep.subr.bf16.mxu0 0
        %980 = vmatpush1.bf16.xpose.msra.mxu0 0
        %981 = vmatprep.subr.bf16.mxu0 0
        %982 = vmatpush1.bf16.xpose.msra.mxu0 0
        %983 = vmatprep.subr.bf16.mxu0 0
        %984 = vmatpush1.bf16.xpose.msra.mxu0 0
        %985 = vmatprep.subr.bf16.mxu0 0
        %986 = vmatpush1.bf16.xpose.msra.mxu0 0
        %987 = vmatprep.subr.bf16.mxu0 0
        %988 = vmatpush1.bf16.xpose.msra.mxu0 0
        %989 = vmatprep.subr.bf16.mxu0 0
        %990 = vmatpush1.bf16.xpose.msra.mxu0 0
        %991 = vmatprep.subr.bf16.mxu0 0
        %992 = vmatpush1.bf16.xpose.msra.mxu0 0
        %993 = vmatprep.subr.bf16.mxu0 0
        %994 = vmatpush1.bf16.xpose.msra.mxu0 0
        %995 = vmatprep.subr.bf16.mxu0 0
        %996 = vmatpush1.bf16.xpose.msra.mxu0 0
        %997 = vmatprep.subr.bf16.mxu0 0
        %998 = vmatpush1.bf16.xpose.msra.mxu0 0
        %999 = vmatprep.subr.bf16.mxu0 0
        %1000 = vmatpush1.bf16.xpose.msra.mxu0 0
        %1001 = vmatprep.subr.bf16.mxu0 0
        %1002 = vmatpush1.bf16.xpose.msra.mxu0 0
        %1003 = vmatprep.mubr.bf16.mxu0 0
        %1004 = vmatmul.mubr.bf16.gmra.mrb[0].mxu0 %v966
        %v1005 = vpop.f32.mrb[0].mxu0
        %v1006 = vadd.f32 0.0, %v1005
        %v1007 = vpop.f32.mrb[0].mxu0
        %v1008 = vpop.f32.mrb[0].mxu0
        %v1009 = vpop.f32.mrb[0].mxu0
        %1010 = vdwg.mxu0
        %v1012 = vsel %vm652, %v954, 0
        %1014 = vmatprep.subr.bf16.mxu0 0
        %1015 = vmatpush1.bf16.xpose.msra.mxu0 %v1012
        %1016 = vmatprep.subr.bf16.mxu0 0
        %1017 = vmatpush1.bf16.xpose.msra.mxu0 0
        %1018 = vmatprep.subr.bf16.mxu0 0
        %1019 = vmatpush1.bf16.xpose.msra.mxu0 0
        %1020 = vmatprep.subr.bf16.mxu0 0
        %1021 = vmatpush1.bf16.xpose.msra.mxu0 0
        %1022 = vmatprep.subr.bf16.mxu0 0
        %1023 = vmatpush1.bf16.xpose.msra.mxu0 0
        %1024 = vmatprep.subr.bf16.mxu0 0
        %1025 = vmatpush1.bf16.xpose.msra.mxu0 0
        %1026 = vmatprep.subr.bf16.mxu0 0
        %1027 = vmatpush1.bf16.xpose.msra.mxu0 0
        %1028 = vmatprep.subr.bf16.mxu0 0
        %1029 = vmatpush1.bf16.xpose.msra.mxu0 0
        %1030 = vmatprep.subr.bf16.mxu0 0
        %1031 = vmatpush1.bf16.xpose.msra.mxu0 0
        %1032 = vmatprep.subr.bf16.mxu0 0
        %1033 = vmatpush1.bf16.xpose.msra.mxu0 0
        %1034 = vmatprep.subr.bf16.mxu0 0
        %1035 = vmatpush1.bf16.xpose.msra.mxu0 0
        %1036 = vmatprep.subr.bf16.mxu0 0
        %1037 = vmatpush1.bf16.xpose.msra.mxu0 0
        %1038 = vmatprep.subr.bf16.mxu0 0
        %1039 = vmatpush1.bf16.xpose.msra.mxu0 0
        %1040 = vmatprep.subr.bf16.mxu0 0
        %1041 = vmatpush1.bf16.xpose.msra.mxu0 0
        %1042 = vmatprep.subr.bf16.mxu0 0
        %1043 = vmatpush1.bf16.xpose.msra.mxu0 0
        %1044 = vmatprep.subr.bf16.mxu0 0
        %1045 = vmatpush1.bf16.xpose.msra.mxu0 0
        %1046 = vmatprep.mubr.bf16.mxu0 0
        %1047 = vmatmul.mubr.bf16.gmra.mrb[0].mxu0 %v966
        %v1048 = vpop.f32.mrb[0].mxu0
        %v1049 = vadd.f32 0.0, %v1048
        %v1050 = vpop.f32.mrb[0].mxu0
        %v1051 = vpop.f32.mrb[0].mxu0
        %v1052 = vpop.f32.mrb[0].mxu0
        %1053 = vdwg.mxu0
        %1054 = vmatprep.subr.bf16.mxu0 0
        %1055 = vmatpush1.bf16.xpose.msra.mxu0 %v969
        %1056 = vmatprep.subr.bf16.mxu0 0
        %1057 = vmatpush1.bf16.xpose.msra.mxu0 0
        %1058 = vmatprep.subr.bf16.mxu0 0
        %1059 = vmatpush1.bf16.xpose.msra.mxu0 0
        %1060 = vmatprep.subr.bf16.mxu0 0
        %1061 = vmatpush1.bf16.xpose.msra.mxu0 0
        %1062 = vmatprep.subr.bf16.mxu0 0
        %1063 = vmatpush1.bf16.xpose.msra.mxu0 0
        %1064 = vmatprep.subr.bf16.mxu0 0
        %1065 = vmatpush1.bf16.xpose.msra.mxu0 0
        %1066 = vmatprep.subr.bf16.mxu0 0
        %1067 = vmatpush1.bf16.xpose.msra.mxu0 0
        %1068 = vmatprep.subr.bf16.mxu0 0
        %1069 = vmatpush1.bf16.xpose.msra.mxu0 0
        %1070 = vmatprep.subr.bf16.mxu0 0
        %1071 = vmatpush1.bf16.xpose.msra.mxu0 0
        %1072 = vmatprep.subr.bf16.mxu0 0
        %1073 = vmatpush1.bf16.xpose.msra.mxu0 0
        %1074 = vmatprep.subr.bf16.mxu0 0
        %1075 = vmatpush1.bf16.xpose.msra.mxu0 0
        %1076 = vmatprep.subr.bf16.mxu0 0
        %1077 = vmatpush1.bf16.xpose.msra.mxu0 0
        %1078 = vmatprep.subr.bf16.mxu0 0
        %1079 = vmatpush1.bf16.xpose.msra.mxu0 0
        %1080 = vmatprep.subr.bf16.mxu0 0
        %1081 = vmatpush1.bf16.xpose.msra.mxu0 0
        %1082 = vmatprep.subr.bf16.mxu0 0
        %1083 = vmatpush1.bf16.xpose.msra.mxu0 0
        %1084 = vmatprep.subr.bf16.mxu0 0
        %1085 = vmatpush1.bf16.xpose.msra.mxu0 0
        %1086 = vmatprep.mubr.bf16.mxu0 0
        %1087 = vmatmul.mubr.bf16.gmra.mrb[0].mxu0 %v1012
        %v1088 = vpop.f32.mrb[0].mxu0
        %v1089 = vadd.f32 0.0, %v1088
        %v1090 = vpop.f32.mrb[0].mxu0
        %v1091 = vpop.f32.mrb[0].mxu0
        %v1092 = vpop.f32.mrb[0].mxu0
        %1093 = vdwg.mxu0
        %s1094 = sld [smem:[#allocation3 + $0x80]]
        %s1095 = sld [smem:[#allocation6 + $0x80]]
        %s1096 = sld [smem:[#allocation8 + $0x80]]
        %s1097 = sld [smem:[#allocation9 + $0x80]]
        %1099 = vset.pattern.permute.xlu0 0
        %1100 = vperm.xlu0 %1099, %v1049
        %v1101 = vpop.permute.xlu0 %1100
        %v1103 = vsub.f32 %v1006, %v1101
        %v1104 = vlaneseq
        %v1105 = vshrl.u32 %v1104, 7
        %v1106 = vsub.s32 0, %v1105
        %v1107 = vrot.slane %v1089, %v1106
        %v1108 = vsub.f32 %v1103, %v1107
        %v1109 = vstv %s1097
        %v1110 = vadd.f32 %v1108, %v1109
        %v1111 = vstv %s1094
        %v1112 = vmul.f32 %v1111, %v1110
        %v1113 = vstv %s1095
        %v1114 = vadd.f32 %v1112, %v1113
        %v1115 = vsel %vm648, %v1114, %v1112
        %v1116 = vsel %vm652, %v1115, -inf
        %1117 = vmax.xlane.f32.xlu0 %v1116
        %v1118 = vpop.xlane.xlu0 %1117
        %v1119 = vsub.f32 %v1115, %v1118
        %v1120 = vmul.f32 %v1119, 1.442695
        %v1121 = vpow.pop %v1120
        %v1122 = vsel %vm652, %v1121, 0.0
        %1123 = vadd.xlane.f32.xlu0 %v1122
        %v1124 = vpop.xlane.xlu0 %1123
        %v1125 = vrcp.pop %v1124
        %v1126 = vstv %s1096
        %v1127 = vmul.f32 %v1126, %v1125
        %v1128 = vpack.c.bf16 %v1121, %v1121
        %1129 = vrot.lane.b32.xlu0 %v962, 88
        %v1130 = vpop.permute.xlu0 %1129
        %v1132 = vsel %vm652, %v1128, 0
        %v1135 = vsel %vm825, %v1130, 0
        %1137 = vmatprep.subr.bf16.mxu0 0
        %1138 = vmatpush1.bf16.msra.mxu0 %v1135
        %1139 = vmatprep.subr.bf16.mxu0 0
        %1140 = vmatpush1.bf16.msra.mxu0 0
        %1141 = vmatprep.subr.bf16.mxu0 0
        %1142 = vmatpush1.bf16.msra.mxu0 0
        %1143 = vmatprep.subr.bf16.mxu0 0
        %1144 = vmatpush1.bf16.msra.mxu0 0
        %1145 = vmatprep.subr.bf16.mxu0 0
        %1146 = vmatpush1.bf16.msra.mxu0 0
        %1147 = vmatprep.subr.bf16.mxu0 0
        %1148 = vmatpush1.bf16.msra.mxu0 0
        %1149 = vmatprep.subr.bf16.mxu0 0
        %1150 = vmatpush1.bf16.msra.mxu0 0
        %1151 = vmatprep.subr.bf16.mxu0 0
        %1152 = vmatpush1.bf16.msra.mxu0 0
        %1153 = vmatprep.subr.bf16.mxu0 0
        %1154 = vmatpush1.bf16.msra.mxu0 0
        %1155 = vmatprep.subr.bf16.mxu0 0
        %1156 = vmatpush1.bf16.msra.mxu0 0
        %1157 = vmatprep.subr.bf16.mxu0 0
        %1158 = vmatpush1.bf16.msra.mxu0 0
        %1159 = vmatprep.subr.bf16.mxu0 0
        %1160 = vmatpush1.bf16.msra.mxu0 0
        %1161 = vmatprep.subr.bf16.mxu0 0
        %1162 = vmatpush1.bf16.msra.mxu0 0
        %1163 = vmatprep.subr.bf16.mxu0 0
        %1164 = vmatpush1.bf16.msra.mxu0 0
        %1165 = vmatprep.subr.bf16.mxu0 0
        %1166 = vmatpush1.bf16.msra.mxu0 0
        %1167 = vmatprep.subr.bf16.mxu0 0
        %1168 = vmatpush1.bf16.msra.mxu0 0
        %1169 = vmatprep.mubr.bf16.mxu0 0
        %1170 = vmatmul.mubr.bf16.gmra.mrb[0].mxu0 %v1132
        %v1171 = vpop.f32.mrb[0].mxu0
        %v1172 = vadd.f32 0.0, %v1171
        %v1173 = vpop.f32.mrb[0].mxu0
        %v1174 = vpop.f32.mrb[0].mxu0
        %v1175 = vpop.f32.mrb[0].mxu0
        %1176 = vdwg.mxu0
        %v1177 = vmul.f32 %v1127, %v1172
        %v1178 = vadd.f32 %v1177, 0.0
        %s1179 = sld [smem:[#allocation3 + $0x81]]
        %s1180 = sld [smem:[#allocation6 + $0x81]]
        %s1181 = sld [smem:[#allocation8 + $0x81]]
        %s1182 = sld [smem:[#allocation9 + $0x81]]
        %1183 = vset.pattern.permute.xlu0 1
        %1184 = vperm.xlu0 %1183, %v1049
        %v1185 = vpop.permute.xlu0 %1184
        %v1187 = vsub.f32 %v1006, %v1185
        %v1188 = vlaneseq
        %v1189 = vshrl.u32 %v1188, 7
        %v1190 = vsub.s32 1, %v1189
        %v1191 = vrot.slane %v1089, %v1190
        %v1192 = vsub.f32 %v1187, %v1191
        %v1193 = vstv %s1182
        %v1194 = vadd.f32 %v1192, %v1193
        %v1195 = vstv %s1179
        %v1196 = vmul.f32 %v1195, %v1194
        %v1197 = vstv %s1180
        %v1198 = vadd.f32 %v1196, %v1197
        %v1199 = vsel %vm648, %v1198, %v1196
        %v1200 = vsel %vm652, %v1199, -inf
        %1201 = vmax.xlane.f32.xlu0 %v1200
        %v1202 = vpop.xlane.xlu0 %1201
        %v1203 = vsub.f32 %v1199, %v1202
        %v1204 = vmul.f32 %v1203, 1.442695
        %v1205 = vpow.pop %v1204
        %v1206 = vsel %vm652, %v1205, 0.0
        %1207 = vadd.xlane.f32.xlu0 %v1206
        %v1208 = vpop.xlane.xlu0 %1207
        %v1209 = vrcp.pop %v1208
        %v1210 = vstv %s1181
        %v1211 = vmul.f32 %v1210, %v1209
        %v1212 = vpack.c.bf16 %v1205, %v1205
        %v1214 = vsel %vm652, %v1212, 0
        %1216 = vmatprep.subr.bf16.mxu0 0
        %1217 = vmatpush1.bf16.msra.mxu0 %v1135
        %1218 = vmatprep.subr.bf16.mxu0 0
        %1219 = vmatpush1.bf16.msra.mxu0 0
        %1220 = vmatprep.subr.bf16.mxu0 0
        %1221 = vmatpush1.bf16.msra.mxu0 0
        %1222 = vmatprep.subr.bf16.mxu0 0
        %1223 = vmatpush1.bf16.msra.mxu0 0
        %1224 = vmatprep.subr.bf16.mxu0 0
        %1225 = vmatpush1.bf16.msra.mxu0 0
        %1226 = vmatprep.subr.bf16.mxu0 0
        %1227 = vmatpush1.bf16.msra.mxu0 0
        %1228 = vmatprep.subr.bf16.mxu0 0
        %1229 = vmatpush1.bf16.msra.mxu0 0
        %1230 = vmatprep.subr.bf16.mxu0 0
        %1231 = vmatpush1.bf16.msra.mxu0 0
        %1232 = vmatprep.subr.bf16.mxu0 0
        %1233 = vmatpush1.bf16.msra.mxu0 0
        %1234 = vmatprep.subr.bf16.mxu0 0
        %1235 = vmatpush1.bf16.msra.mxu0 0
        %1236 = vmatprep.subr.bf16.mxu0 0
        %1237 = vmatpush1.bf16.msra.mxu0 0
        %1238 = vmatprep.subr.bf16.mxu0 0
        %1239 = vmatpush1.bf16.msra.mxu0 0
        %1240 = vmatprep.subr.bf16.mxu0 0
        %1241 = vmatpush1.bf16.msra.mxu0 0
        %1242 = vmatprep.subr.bf16.mxu0 0
        %1243 = vmatpush1.bf16.msra.mxu0 0
        %1244 = vmatprep.subr.bf16.mxu0 0
        %1245 = vmatpush1.bf16.msra.mxu0 0
        %1246 = vmatprep.subr.bf16.mxu0 0
        %1247 = vmatpush1.bf16.msra.mxu0 0
        %1248 = vmatprep.mubr.bf16.mxu0 0
        %1249 = vmatmul.mubr.bf16.gmra.mrb[0].mxu0 %v1214
        %v1250 = vpop.f32.mrb[0].mxu0
        %v1251 = vadd.f32 0.0, %v1250
        %v1252 = vpop.f32.mrb[0].mxu0
        %v1253 = vpop.f32.mrb[0].mxu0
        %v1254 = vpop.f32.mrb[0].mxu0
        %1255 = vdwg.mxu0
        %v1256 = vmul.f32 %v1211, %v1251
        %v1257 = vadd.f32 %v1178, %v1256
        %1259 = vrot.lane.b32.xlu0 %v1257, 8
        %v1260 = vpop.permute.xlu0 %1259
        %vm1262 = vcmask 130112
        %1263 = vst.msk [vmem:[#allocation2] sm:$0xff] %vm1262, %v1260
        %v1264 = vld [vmem:[%s634] sm:$0xf]
        %v1265 = vld [vmem:[%s638] sm:$0xf]
        %s1266 = scalar_lea.vmem %s3, 2
        %v1267 = vld [vmem:[%s1266] sm:$0x1]
        %v1269 = vunpack.c.l.b16 %v1264
        %v1270 = vpack.c.b16 %v1269, %v1269
        %1271 = vrot.lane.b32.xlu0 %v1270, 112
        %v1272 = vpop.permute.xlu0 %1271
        %v1274 = vunpack.c.l.b16 %v1265
        %v1275 = vpack.c.b16 %v1274, %v1274
        %1276 = vrot.lane.b32.xlu0 %v1275, 112
        %v1277 = vpop.permute.xlu0 %1276
        %v1279 = vsel %vm652, %v1272, 0
        %v1282 = vsel %vm652, %v1277, 0
        %1284 = vmatprep.subr.bf16.mxu0 0
        %1285 = vmatpush1.bf16.xpose.msra.mxu0 %v1282
        %1286 = vmatprep.subr.bf16.mxu0 0
        %1287 = vmatpush1.bf16.xpose.msra.mxu0 0
        %1288 = vmatprep.subr.bf16.mxu0 0
        %1289 = vmatpush1.bf16.xpose.msra.mxu0 0
        %1290 = vmatprep.subr.bf16.mxu0 0
        %1291 = vmatpush1.bf16.xpose.msra.mxu0 0
        %1292 = vmatprep.subr.bf16.mxu0 0
        %1293 = vmatpush1.bf16.xpose.msra.mxu0 0
        %1294 = vmatprep.subr.bf16.mxu0 0
        %1295 = vmatpush1.bf16.xpose.msra.mxu0 0
        %1296 = vmatprep.subr.bf16.mxu0 0
        %1297 = vmatpush1.bf16.xpose.msra.mxu0 0
        %1298 = vmatprep.subr.bf16.mxu0 0
        %1299 = vmatpush1.bf16.xpose.msra.mxu0 0
        %1300 = vmatprep.subr.bf16.mxu0 0
        %1301 = vmatpush1.bf16.xpose.msra.mxu0 0
        %1302 = vmatprep.subr.bf16.mxu0 0
        %1303 = vmatpush1.bf16.xpose.msra.mxu0 0
        %1304 = vmatprep.subr.bf16.mxu0 0
        %1305 = vmatpush1.bf16.xpose.msra.mxu0 0
        %1306 = vmatprep.subr.bf16.mxu0 0
        %1307 = vmatpush1.bf16.xpose.msra.mxu0 0
        %1308 = vmatprep.subr.bf16.mxu0 0
        %1309 = vmatpush1.bf16.xpose.msra.mxu0 0
        %1310 = vmatprep.subr.bf16.mxu0 0
        %1311 = vmatpush1.bf16.xpose.msra.mxu0 0
        %1312 = vmatprep.subr.bf16.mxu0 0
        %1313 = vmatpush1.bf16.xpose.msra.mxu0 0
        %1314 = vmatprep.subr.bf16.mxu0 0
        %1315 = vmatpush1.bf16.xpose.msra.mxu0 0
        %1316 = vmatprep.mubr.bf16.mxu0 0
        %1317 = vmatmul.mubr.bf16.gmra.mrb[0].mxu0 %v1279
        %v1318 = vpop.f32.mrb[0].mxu0
        %v1319 = vadd.f32 0.0, %v1318
        %v1320 = vpop.f32.mrb[0].mxu0
        %v1321 = vpop.f32.mrb[0].mxu0
        %v1322 = vpop.f32.mrb[0].mxu0
        %1323 = vdwg.mxu0
        %v1325 = vsel %vm652, %v1267, 0
        %1327 = vmatprep.subr.bf16.mxu0 0
        %1328 = vmatpush1.bf16.xpose.msra.mxu0 %v1325
        %1329 = vmatprep.subr.bf16.mxu0 0
        %1330 = vmatpush1.bf16.xpose.msra.mxu0 0
        %1331 = vmatprep.subr.bf16.mxu0 0
        %1332 = vmatpush1.bf16.xpose.msra.mxu0 0
        %1333 = vmatprep.subr.bf16.mxu0 0
        %1334 = vmatpush1.bf16.xpose.msra.mxu0 0
        %1335 = vmatprep.subr.bf16.mxu0 0
        %1336 = vmatpush1.bf16.xpose.msra.mxu0 0
        %1337 = vmatprep.subr.bf16.mxu0 0
        %1338 = vmatpush1.bf16.xpose.msra.mxu0 0
        %1339 = vmatprep.subr.bf16.mxu0 0
        %1340 = vmatpush1.bf16.xpose.msra.mxu0 0
        %1341 = vmatprep.subr.bf16.mxu0 0
        %1342 = vmatpush1.bf16.xpose.msra.mxu0 0
        %1343 = vmatprep.subr.bf16.mxu0 0
        %1344 = vmatpush1.bf16.xpose.msra.mxu0 0
        %1345 = vmatprep.subr.bf16.mxu0 0
        %1346 = vmatpush1.bf16.xpose.msra.mxu0 0
        %1347 = vmatprep.subr.bf16.mxu0 0
        %1348 = vmatpush1.bf16.xpose.msra.mxu0 0
        %1349 = vmatprep.subr.bf16.mxu0 0
        %1350 = vmatpush1.bf16.xpose.msra.mxu0 0
        %1351 = vmatprep.subr.bf16.mxu0 0
        %1352 = vmatpush1.bf16.xpose.msra.mxu0 0
        %1353 = vmatprep.subr.bf16.mxu0 0
        %1354 = vmatpush1.bf16.xpose.msra.mxu0 0
        %1355 = vmatprep.subr.bf16.mxu0 0
        %1356 = vmatpush1.bf16.xpose.msra.mxu0 0
        %1357 = vmatprep.subr.bf16.mxu0 0
        %1358 = vmatpush1.bf16.xpose.msra.mxu0 0
        %1359 = vmatprep.mubr.bf16.mxu0 0
        %1360 = vmatmul.mubr.bf16.gmra.mrb[0].mxu0 %v1279
        %v1361 = vpop.f32.mrb[0].mxu0
        %v1362 = vadd.f32 0.0, %v1361
        %v1363 = vpop.f32.mrb[0].mxu0
        %v1364 = vpop.f32.mrb[0].mxu0
        %v1365 = vpop.f32.mrb[0].mxu0
        %1366 = vdwg.mxu0
        %1367 = vmatprep.subr.bf16.mxu0 0
        %1368 = vmatpush1.bf16.xpose.msra.mxu0 %v1282
        %1369 = vmatprep.subr.bf16.mxu0 0
        %1370 = vmatpush1.bf16.xpose.msra.mxu0 0
        %1371 = vmatprep.subr.bf16.mxu0 0
        %1372 = vmatpush1.bf16.xpose.msra.mxu0 0
        %1373 = vmatprep.subr.bf16.mxu0 0
        %1374 = vmatpush1.bf16.xpose.msra.mxu0 0
        %1375 = vmatprep.subr.bf16.mxu0 0
        %1376 = vmatpush1.bf16.xpose.msra.mxu0 0
        %1377 = vmatprep.subr.bf16.mxu0 0
        %1378 = vmatpush1.bf16.xpose.msra.mxu0 0
        %1379 = vmatprep.subr.bf16.mxu0 0
        %1380 = vmatpush1.bf16.xpose.msra.mxu0 0
        %1381 = vmatprep.subr.bf16.mxu0 0
        %1382 = vmatpush1.bf16.xpose.msra.mxu0 0
        %1383 = vmatprep.subr.bf16.mxu0 0
        %1384 = vmatpush1.bf16.xpose.msra.mxu0 0
        %1385 = vmatprep.subr.bf16.mxu0 0
        %1386 = vmatpush1.bf16.xpose.msra.mxu0 0
        %1387 = vmatprep.subr.bf16.mxu0 0
        %1388 = vmatpush1.bf16.xpose.msra.mxu0 0
        %1389 = vmatprep.subr.bf16.mxu0 0
        %1390 = vmatpush1.bf16.xpose.msra.mxu0 0
        %1391 = vmatprep.subr.bf16.mxu0 0
        %1392 = vmatpush1.bf16.xpose.msra.mxu0 0
        %1393 = vmatprep.subr.bf16.mxu0 0
        %1394 = vmatpush1.bf16.xpose.msra.mxu0 0
        %1395 = vmatprep.subr.bf16.mxu0 0
        %1396 = vmatpush1.bf16.xpose.msra.mxu0 0
        %1397 = vmatprep.subr.bf16.mxu0 0
        %1398 = vmatpush1.bf16.xpose.msra.mxu0 0
        %1399 = vmatprep.mubr.bf16.mxu0 0
        %1400 = vmatmul.mubr.bf16.gmra.mrb[0].mxu0 %v1325
        %v1401 = vpop.f32.mrb[0].mxu0
        %v1402 = vadd.f32 0.0, %v1401
        %v1403 = vpop.f32.mrb[0].mxu0
        %v1404 = vpop.f32.mrb[0].mxu0
        %v1405 = vpop.f32.mrb[0].mxu0
        %1406 = vdwg.mxu0
        %s1407 = sld [smem:[#allocation3 + $0x100]]
        %s1408 = sld [smem:[#allocation6 + $0x100]]
        %s1409 = sld [smem:[#allocation8 + $0x100]]
        %s1410 = sld [smem:[#allocation9 + $0x100]]
        %1412 = vset.pattern.permute.xlu0 0
        %1413 = vperm.xlu0 %1412, %v1362
        %v1414 = vpop.permute.xlu0 %1413
        %v1416 = vsub.f32 %v1319, %v1414
        %v1417 = vlaneseq
        %v1418 = vshrl.u32 %v1417, 7
        %v1419 = vsub.s32 0, %v1418
        %v1420 = vrot.slane %v1402, %v1419
        %v1421 = vsub.f32 %v1416, %v1420
        %v1422 = vstv %s1410
        %v1423 = vadd.f32 %v1421, %v1422
        %v1424 = vstv %s1407
        %v1425 = vmul.f32 %v1424, %v1423
        %v1426 = vstv %s1408
        %v1427 = vadd.f32 %v1425, %v1426
        %v1428 = vsel %vm648, %v1427, %v1425
        %v1429 = vsel %vm652, %v1428, -inf
        %1430 = vmax.xlane.f32.xlu0 %v1429
        %v1431 = vpop.xlane.xlu0 %1430
        %v1432 = vsub.f32 %v1428, %v1431
        %v1433 = vmul.f32 %v1432, 1.442695
        %v1434 = vpow.pop %v1433
        %v1435 = vsel %vm652, %v1434, 0.0
        %1436 = vadd.xlane.f32.xlu0 %v1435
        %v1437 = vpop.xlane.xlu0 %1436
        %v1438 = vrcp.pop %v1437
        %v1439 = vstv %s1409
        %v1440 = vmul.f32 %v1439, %v1438
        %v1441 = vpack.c.bf16 %v1434, %v1434
        %1442 = vrot.lane.b32.xlu0 %v1275, 80
        %v1443 = vpop.permute.xlu0 %1442
        %v1445 = vsel %vm652, %v1441, 0
        %v1448 = vsel %vm825, %v1443, 0
        %1450 = vmatprep.subr.bf16.mxu0 0
        %1451 = vmatpush1.bf16.msra.mxu0 %v1448
        %1452 = vmatprep.subr.bf16.mxu0 0
        %1453 = vmatpush1.bf16.msra.mxu0 0
        %1454 = vmatprep.subr.bf16.mxu0 0
        %1455 = vmatpush1.bf16.msra.mxu0 0
        %1456 = vmatprep.subr.bf16.mxu0 0
        %1457 = vmatpush1.bf16.msra.mxu0 0
        %1458 = vmatprep.subr.bf16.mxu0 0
        %1459 = vmatpush1.bf16.msra.mxu0 0
        %1460 = vmatprep.subr.bf16.mxu0 0
        %1461 = vmatpush1.bf16.msra.mxu0 0
        %1462 = vmatprep.subr.bf16.mxu0 0
        %1463 = vmatpush1.bf16.msra.mxu0 0
        %1464 = vmatprep.subr.bf16.mxu0 0
        %1465 = vmatpush1.bf16.msra.mxu0 0
        %1466 = vmatprep.subr.bf16.mxu0 0
        %1467 = vmatpush1.bf16.msra.mxu0 0
        %1468 = vmatprep.subr.bf16.mxu0 0
        %1469 = vmatpush1.bf16.msra.mxu0 0
        %1470 = vmatprep.subr.bf16.mxu0 0
        %1471 = vmatpush1.bf16.msra.mxu0 0
        %1472 = vmatprep.subr.bf16.mxu0 0
        %1473 = vmatpush1.bf16.msra.mxu0 0
        %1474 = vmatprep.subr.bf16.mxu0 0
        %1475 = vmatpush1.bf16.msra.mxu0 0
        %1476 = vmatprep.subr.bf16.mxu0 0
        %1477 = vmatpush1.bf16.msra.mxu0 0
        %1478 = vmatprep.subr.bf16.mxu0 0
        %1479 = vmatpush1.bf16.msra.mxu0 0
        %1480 = vmatprep.subr.bf16.mxu0 0
        %1481 = vmatpush1.bf16.msra.mxu0 0
        %1482 = vmatprep.mubr.bf16.mxu0 0
        %1483 = vmatmul.mubr.bf16.gmra.mrb[0].mxu0 %v1445
        %v1484 = vpop.f32.mrb[0].mxu0
        %v1485 = vadd.f32 0.0, %v1484
        %v1486 = vpop.f32.mrb[0].mxu0
        %v1487 = vpop.f32.mrb[0].mxu0
        %v1488 = vpop.f32.mrb[0].mxu0
        %1489 = vdwg.mxu0
        %v1490 = vmul.f32 %v1440, %v1485
        %v1491 = vadd.f32 %v1490, 0.0
        %s1492 = sld [smem:[#allocation3 + $0x101]]
        %s1493 = sld [smem:[#allocation6 + $0x101]]
        %s1494 = sld [smem:[#allocation8 + $0x101]]
        %s1495 = sld [smem:[#allocation9 + $0x101]]
        %1496 = vset.pattern.permute.xlu0 1
        %1497 = vperm.xlu0 %1496, %v1362
        %v1498 = vpop.permute.xlu0 %1497
        %v1500 = vsub.f32 %v1319, %v1498
        %v1501 = vlaneseq
        %v1502 = vshrl.u32 %v1501, 7
        %v1503 = vsub.s32 1, %v1502
        %v1504 = vrot.slane %v1402, %v1503
        %v1505 = vsub.f32 %v1500, %v1504
        %v1506 = vstv %s1495
        %v1507 = vadd.f32 %v1505, %v1506
        %v1508 = vstv %s1492
        %v1509 = vmul.f32 %v1508, %v1507
        %v1510 = vstv %s1493
        %v1511 = vadd.f32 %v1509, %v1510
        %v1512 = vsel %vm648, %v1511, %v1509
        %v1513 = vsel %vm652, %v1512, -inf
        %1514 = vmax.xlane.f32.xlu0 %v1513
        %v1515 = vpop.xlane.xlu0 %1514
        %v1516 = vsub.f32 %v1512, %v1515
        %v1517 = vmul.f32 %v1516, 1.442695
        %v1518 = vpow.pop %v1517
        %v1519 = vsel %vm652, %v1518, 0.0
        %1520 = vadd.xlane.f32.xlu0 %v1519
        %v1521 = vpop.xlane.xlu0 %1520
        %v1522 = vrcp.pop %v1521
        %v1523 = vstv %s1494
        %v1524 = vmul.f32 %v1523, %v1522
        %v1525 = vpack.c.bf16 %v1518, %v1518
        %v1527 = vsel %vm652, %v1525, 0
        %1529 = vmatprep.subr.bf16.mxu0 0
        %1530 = vmatpush1.bf16.msra.mxu0 %v1448
        %1531 = vmatprep.subr.bf16.mxu0 0
        %1532 = vmatpush1.bf16.msra.mxu0 0
        %1533 = vmatprep.subr.bf16.mxu0 0
        %1534 = vmatpush1.bf16.msra.mxu0 0
        %1535 = vmatprep.subr.bf16.mxu0 0
        %1536 = vmatpush1.bf16.msra.mxu0 0
        %1537 = vmatprep.subr.bf16.mxu0 0
        %1538 = vmatpush1.bf16.msra.mxu0 0
        %1539 = vmatprep.subr.bf16.mxu0 0
        %1540 = vmatpush1.bf16.msra.mxu0 0
        %1541 = vmatprep.subr.bf16.mxu0 0
        %1542 = vmatpush1.bf16.msra.mxu0 0
        %1543 = vmatprep.subr.bf16.mxu0 0
        %1544 = vmatpush1.bf16.msra.mxu0 0
        %1545 = vmatprep.subr.bf16.mxu0 0
        %1546 = vmatpush1.bf16.msra.mxu0 0
        %1547 = vmatprep.subr.bf16.mxu0 0
        %1548 = vmatpush1.bf16.msra.mxu0 0
        %1549 = vmatprep.subr.bf16.mxu0 0
        %1550 = vmatpush1.bf16.msra.mxu0 0
        %1551 = vmatprep.subr.bf16.mxu0 0
        %1552 = vmatpush1.bf16.msra.mxu0 0
        %1553 = vmatprep.subr.bf16.mxu0 0
        %1554 = vmatpush1.bf16.msra.mxu0 0
        %1555 = vmatprep.subr.bf16.mxu0 0
        %1556 = vmatpush1.bf16.msra.mxu0 0
        %1557 = vmatprep.subr.bf16.mxu0 0
        %1558 = vmatpush1.bf16.msra.mxu0 0
        %1559 = vmatprep.subr.bf16.mxu0 0
        %1560 = vmatpush1.bf16.msra.mxu0 0
        %1561 = vmatprep.mubr.bf16.mxu0 0
        %1562 = vmatmul.mubr.bf16.gmra.mrb[0].mxu0 %v1527
        %v1563 = vpop.f32.mrb[0].mxu0
        %v1564 = vadd.f32 0.0, %v1563
        %v1565 = vpop.f32.mrb[0].mxu0
        %v1566 = vpop.f32.mrb[0].mxu0
        %v1567 = vpop.f32.mrb[0].mxu0
        %1568 = vdwg.mxu0
        %v1569 = vmul.f32 %v1524, %v1564
        %v1570 = vadd.f32 %v1491, %v1569
        %1572 = vrot.lane.b32.xlu0 %v1570, 16
        %v1573 = vpop.permute.xlu0 %1572
        %vm1575 = vcmask 195712
        %1576 = vst.msk [vmem:[#allocation2] sm:$0xff] %vm1575, %v1573
        %v1577 = vld [vmem:[%s634] sm:$0xf]
        %v1578 = vld [vmem:[%s638] sm:$0xf]
        %s1579 = scalar_lea.vmem %s3, 3
        %v1580 = vld [vmem:[%s1579] sm:$0x1]
        %v1582 = vunpack.c.l.b16 %v1577
        %v1583 = vpack.c.b16 %v1582, %v1582
        %1584 = vrot.lane.b32.xlu0 %v1583, 104
        %v1585 = vpop.permute.xlu0 %1584
        %v1587 = vunpack.c.l.b16 %v1578
        %v1588 = vpack.c.b16 %v1587, %v1587
        %1589 = vrot.lane.b32.xlu0 %v1588, 104
        %v1590 = vpop.permute.xlu0 %1589
        %v1592 = vsel %vm652, %v1585, 0
        %v1595 = vsel %vm652, %v1590, 0
        %1597 = vmatprep.subr.bf16.mxu0 0
        %1598 = vmatpush1.bf16.xpose.msra.mxu0 %v1595
        %1599 = vmatprep.subr.bf16.mxu0 0
        %1600 = vmatpush1.bf16.xpose.msra.mxu0 0
        %1601 = vmatprep.subr.bf16.mxu0 0
        %1602 = vmatpush1.bf16.xpose.msra.mxu0 0
        %1603 = vmatprep.subr.bf16.mxu0 0
        %1604 = vmatpush1.bf16.xpose.msra.mxu0 0
        %1605 = vmatprep.subr.bf16.mxu0 0
        %1606 = vmatpush1.bf16.xpose.msra.mxu0 0
        %1607 = vmatprep.subr.bf16.mxu0 0
        %1608 = vmatpush1.bf16.xpose.msra.mxu0 0
        %1609 = vmatprep.subr.bf16.mxu0 0
        %1610 = vmatpush1.bf16.xpose.msra.mxu0 0
        %1611 = vmatprep.subr.bf16.mxu0 0
        %1612 = vmatpush1.bf16.xpose.msra.mxu0 0
        %1613 = vmatprep.subr.bf16.mxu0 0
        %1614 = vmatpush1.bf16.xpose.msra.mxu0 0
        %1615 = vmatprep.subr.bf16.mxu0 0
        %1616 = vmatpush1.bf16.xpose.msra.mxu0 0
        %1617 = vmatprep.subr.bf16.mxu0 0
        %1618 = vmatpush1.bf16.xpose.msra.mxu0 0
        %1619 = vmatprep.subr.bf16.mxu0 0
        %1620 = vmatpush1.bf16.xpose.msra.mxu0 0
        %1621 = vmatprep.subr.bf16.mxu0 0
        %1622 = vmatpush1.bf16.xpose.msra.mxu0 0
        %1623 = vmatprep.subr.bf16.mxu0 0
        %1624 = vmatpush1.bf16.xpose.msra.mxu0 0
        %1625 = vmatprep.subr.bf16.mxu0 0
        %1626 = vmatpush1.bf16.xpose.msra.mxu0 0
        %1627 = vmatprep.subr.bf16.mxu0 0
        %1628 = vmatpush1.bf16.xpose.msra.mxu0 0
        %1629 = vmatprep.mubr.bf16.mxu0 0
        %1630 = vmatmul.mubr.bf16.gmra.mrb[0].mxu0 %v1592
        %v1631 = vpop.f32.mrb[0].mxu0
        %v1632 = vadd.f32 0.0, %v1631
        %v1633 = vpop.f32.mrb[0].mxu0
        %v1634 = vpop.f32.mrb[0].mxu0
        %v1635 = vpop.f32.mrb[0].mxu0
        %1636 = vdwg.mxu0
        %v1638 = vsel %vm652, %v1580, 0
        %1640 = vmatprep.subr.bf16.mxu0 0
        %1641 = vmatpush1.bf16.xpose.msra.mxu0 %v1638
        %1642 = vmatprep.subr.bf16.mxu0 0
        %1643 = vmatpush1.bf16.xpose.msra.mxu0 0
        %1644 = vmatprep.subr.bf16.mxu0 0
        %1645 = vmatpush1.bf16.xpose.msra.mxu0 0
        %1646 = vmatprep.subr.bf16.mxu0 0
        %1647 = vmatpush1.bf16.xpose.msra.mxu0 0
        %1648 = vmatprep.subr.bf16.mxu0 0
        %1649 = vmatpush1.bf16.xpose.msra.mxu0 0
        %1650 = vmatprep.subr.bf16.mxu0 0
        %1651 = vmatpush1.bf16.xpose.msra.mxu0 0
        %1652 = vmatprep.subr.bf16.mxu0 0
        %1653 = vmatpush1.bf16.xpose.msra.mxu0 0
        %1654 = vmatprep.subr.bf16.mxu0 0
        %1655 = vmatpush1.bf16.xpose.msra.mxu0 0
        %1656 = vmatprep.subr.bf16.mxu0 0
        %1657 = vmatpush1.bf16.xpose.msra.mxu0 0
        %1658 = vmatprep.subr.bf16.mxu0 0
        %1659 = vmatpush1.bf16.xpose.msra.mxu0 0
        %1660 = vmatprep.subr.bf16.mxu0 0
        %1661 = vmatpush1.bf16.xpose.msra.mxu0 0
        %1662 = vmatprep.subr.bf16.mxu0 0
        %1663 = vmatpush1.bf16.xpose.msra.mxu0 0
        %1664 = vmatprep.subr.bf16.mxu0 0
        %1665 = vmatpush1.bf16.xpose.msra.mxu0 0
        %1666 = vmatprep.subr.bf16.mxu0 0
        %1667 = vmatpush1.bf16.xpose.msra.mxu0 0
        %1668 = vmatprep.subr.bf16.mxu0 0
        %1669 = vmatpush1.bf16.xpose.msra.mxu0 0
        %1670 = vmatprep.subr.bf16.mxu0 0
        %1671 = vmatpush1.bf16.xpose.msra.mxu0 0
        %1672 = vmatprep.mubr.bf16.mxu0 0
        %1673 = vmatmul.mubr.bf16.gmra.mrb[0].mxu0 %v1592
        %v1674 = vpop.f32.mrb[0].mxu0
        %v1675 = vadd.f32 0.0, %v1674
        %v1676 = vpop.f32.mrb[0].mxu0
        %v1677 = vpop.f32.mrb[0].mxu0
        %v1678 = vpop.f32.mrb[0].mxu0
        %1679 = vdwg.mxu0
        %1680 = vmatprep.subr.bf16.mxu0 0
        %1681 = vmatpush1.bf16.xpose.msra.mxu0 %v1595
        %1682 = vmatprep.subr.bf16.mxu0 0
        %1683 = vmatpush1.bf16.xpose.msra.mxu0 0
        %1684 = vmatprep.subr.bf16.mxu0 0
        %1685 = vmatpush1.bf16.xpose.msra.mxu0 0
        %1686 = vmatprep.subr.bf16.mxu0 0
        %1687 = vmatpush1.bf16.xpose.msra.mxu0 0
        %1688 = vmatprep.subr.bf16.mxu0 0
        %1689 = vmatpush1.bf16.xpose.msra.mxu0 0
        %1690 = vmatprep.subr.bf16.mxu0 0
        %1691 = vmatpush1.bf16.xpose.msra.mxu0 0
        %1692 = vmatprep.subr.bf16.mxu0 0
        %1693 = vmatpush1.bf16.xpose.msra.mxu0 0
        %1694 = vmatprep.subr.bf16.mxu0 0
        %1695 = vmatpush1.bf16.xpose.msra.mxu0 0
        %1696 = vmatprep.subr.bf16.mxu0 0
        %1697 = vmatpush1.bf16.xpose.msra.mxu0 0
        %1698 = vmatprep.subr.bf16.mxu0 0
        %1699 = vmatpush1.bf16.xpose.msra.mxu0 0
        %1700 = vmatprep.subr.bf16.mxu0 0
        %1701 = vmatpush1.bf16.xpose.msra.mxu0 0
        %1702 = vmatprep.subr.bf16.mxu0 0
        %1703 = vmatpush1.bf16.xpose.msra.mxu0 0
        %1704 = vmatprep.subr.bf16.mxu0 0
        %1705 = vmatpush1.bf16.xpose.msra.mxu0 0
        %1706 = vmatprep.subr.bf16.mxu0 0
        %1707 = vmatpush1.bf16.xpose.msra.mxu0 0
        %1708 = vmatprep.subr.bf16.mxu0 0
        %1709 = vmatpush1.bf16.xpose.msra.mxu0 0
        %1710 = vmatprep.subr.bf16.mxu0 0
        %1711 = vmatpush1.bf16.xpose.msra.mxu0 0
        %1712 = vmatprep.mubr.bf16.mxu0 0
        %1713 = vmatmul.mubr.bf16.gmra.mrb[0].mxu0 %v1638
        %v1714 = vpop.f32.mrb[0].mxu0
        %v1715 = vadd.f32 0.0, %v1714
        %v1716 = vpop.f32.mrb[0].mxu0
        %v1717 = vpop.f32.mrb[0].mxu0
        %v1718 = vpop.f32.mrb[0].mxu0
        %1719 = vdwg.mxu0
        %s1720 = sld [smem:[#allocation3 + $0x180]]
        %s1721 = sld [smem:[#allocation6 + $0x180]]
        %s1722 = sld [smem:[#allocation8 + $0x180]]
        %s1723 = sld [smem:[#allocation9 + $0x180]]
        %1725 = vset.pattern.permute.xlu0 0
        %1726 = vperm.xlu0 %1725, %v1675
        %v1727 = vpop.permute.xlu0 %1726
        %v1729 = vsub.f32 %v1632, %v1727
        %v1730 = vlaneseq
        %v1731 = vshrl.u32 %v1730, 7
        %v1732 = vsub.s32 0, %v1731
        %v1733 = vrot.slane %v1715, %v1732
        %v1734 = vsub.f32 %v1729, %v1733
        %v1735 = vstv %s1723
        %v1736 = vadd.f32 %v1734, %v1735
        %v1737 = vstv %s1720
        %v1738 = vmul.f32 %v1737, %v1736
        %v1739 = vstv %s1721
        %v1740 = vadd.f32 %v1738, %v1739
        %v1741 = vsel %vm648, %v1740, %v1738
        %v1742 = vsel %vm652, %v1741, -inf
        %1743 = vmax.xlane.f32.xlu0 %v1742
        %v1744 = vpop.xlane.xlu0 %1743
        %v1745 = vsub.f32 %v1741, %v1744
        %v1746 = vmul.f32 %v1745, 1.442695
        %v1747 = vpow.pop %v1746
        %v1748 = vsel %vm652, %v1747, 0.0
        %1749 = vadd.xlane.f32.xlu0 %v1748
        %v1750 = vpop.xlane.xlu0 %1749
        %v1751 = vrcp.pop %v1750
        %v1752 = vstv %s1722
        %v1753 = vmul.f32 %v1752, %v1751
        %v1754 = vpack.c.bf16 %v1747, %v1747
        %1755 = vrot.lane.b32.xlu0 %v1588, 72
        %v1756 = vpop.permute.xlu0 %1755
        %v1758 = vsel %vm652, %v1754, 0
        %v1761 = vsel %vm825, %v1756, 0
        %1763 = vmatprep.subr.bf16.mxu0 0
        %1764 = vmatpush1.bf16.msra.mxu0 %v1761
        %1765 = vmatprep.subr.bf16.mxu0 0
        %1766 = vmatpush1.bf16.msra.mxu0 0
        %1767 = vmatprep.subr.bf16.mxu0 0
        %1768 = vmatpush1.bf16.msra.mxu0 0
        %1769 = vmatprep.subr.bf16.mxu0 0
        %1770 = vmatpush1.bf16.msra.mxu0 0
        %1771 = vmatprep.subr.bf16.mxu0 0
        %1772 = vmatpush1.bf16.msra.mxu0 0
        %1773 = vmatprep.subr.bf16.mxu0 0
        %1774 = vmatpush1.bf16.msra.mxu0 0
        %1775 = vmatprep.subr.bf16.mxu0 0
        %1776 = vmatpush1.bf16.msra.mxu0 0
        %1777 = vmatprep.subr.bf16.mxu0 0
        %1778 = vmatpush1.bf16.msra.mxu0 0
        %1779 = vmatprep.subr.bf16.mxu0 0
        %1780 = vmatpush1.bf16.msra.mxu0 0
        %1781 = vmatprep.subr.bf16.mxu0 0
        %1782 = vmatpush1.bf16.msra.mxu0 0
        %1783 = vmatprep.subr.bf16.mxu0 0
        %1784 = vmatpush1.bf16.msra.mxu0 0
        %1785 = vmatprep.subr.bf16.mxu0 0
        %1786 = vmatpush1.bf16.msra.mxu0 0
        %1787 = vmatprep.subr.bf16.mxu0 0
        %1788 = vmatpush1.bf16.msra.mxu0 0
        %1789 = vmatprep.subr.bf16.mxu0 0
        %1790 = vmatpush1.bf16.msra.mxu0 0
        %1791 = vmatprep.subr.bf16.mxu0 0
        %1792 = vmatpush1.bf16.msra.mxu0 0
        %1793 = vmatprep.subr.bf16.mxu0 0
        %1794 = vmatpush1.bf16.msra.mxu0 0
        %1795 = vmatprep.mubr.bf16.mxu0 0
        %1796 = vmatmul.mubr.bf16.gmra.mrb[0].mxu0 %v1758
        %v1797 = vpop.f32.mrb[0].mxu0
        %v1798 = vadd.f32 0.0, %v1797
        %v1799 = vpop.f32.mrb[0].mxu0
        %v1800 = vpop.f32.mrb[0].mxu0
        %v1801 = vpop.f32.mrb[0].mxu0
        %1802 = vdwg.mxu0
        %v1803 = vmul.f32 %v1753, %v1798
        %v1804 = vadd.f32 %v1803, 0.0
        %s1805 = sld [smem:[#allocation3 + $0x181]]
        %s1806 = sld [smem:[#allocation6 + $0x181]]
        %s1807 = sld [smem:[#allocation8 + $0x181]]
        %s1808 = sld [smem:[#allocation9 + $0x181]]
        %1809 = vset.pattern.permute.xlu0 1
        %1810 = vperm.xlu0 %1809, %v1675
        %v1811 = vpop.permute.xlu0 %1810
        %v1813 = vsub.f32 %v1632, %v1811
        %v1814 = vlaneseq
        %v1815 = vshrl.u32 %v1814, 7
        %v1816 = vsub.s32 1, %v1815
        %v1817 = vrot.slane %v1715, %v1816
        %v1818 = vsub.f32 %v1813, %v1817
        %v1819 = vstv %s1808
        %v1820 = vadd.f32 %v1818, %v1819
        %v1821 = vstv %s1805
        %v1822 = vmul.f32 %v1821, %v1820
        %v1823 = vstv %s1806
        %v1824 = vadd.f32 %v1822, %v1823
        %v1825 = vsel %vm648, %v1824, %v1822
        %v1826 = vsel %vm652, %v1825, -inf
        %1827 = vmax.xlane.f32.xlu0 %v1826
        %v1828 = vpop.xlane.xlu0 %1827
        %v1829 = vsub.f32 %v1825, %v1828
        %v1830 = vmul.f32 %v1829, 1.442695
        %v1831 = vpow.pop %v1830
        %v1832 = vsel %vm652, %v1831, 0.0
        %1833 = vadd.xlane.f32.xlu0 %v1832
        %v1834 = vpop.xlane.xlu0 %1833
        %v1835 = vrcp.pop %v1834
        %v1836 = vstv %s1807
        %v1837 = vmul.f32 %v1836, %v1835
        %v1838 = vpack.c.bf16 %v1831, %v1831
        %v1840 = vsel %vm652, %v1838, 0
        %1842 = vmatprep.subr.bf16.mxu0 0
        %1843 = vmatpush1.bf16.msra.mxu0 %v1761
        %1844 = vmatprep.subr.bf16.mxu0 0
        %1845 = vmatpush1.bf16.msra.mxu0 0
        %1846 = vmatprep.subr.bf16.mxu0 0
        %1847 = vmatpush1.bf16.msra.mxu0 0
        %1848 = vmatprep.subr.bf16.mxu0 0
        %1849 = vmatpush1.bf16.msra.mxu0 0
        %1850 = vmatprep.subr.bf16.mxu0 0
        %1851 = vmatpush1.bf16.msra.mxu0 0
        %1852 = vmatprep.subr.bf16.mxu0 0
        %1853 = vmatpush1.bf16.msra.mxu0 0
        %1854 = vmatprep.subr.bf16.mxu0 0
        %1855 = vmatpush1.bf16.msra.mxu0 0
        %1856 = vmatprep.subr.bf16.mxu0 0
        %1857 = vmatpush1.bf16.msra.mxu0 0
        %1858 = vmatprep.subr.bf16.mxu0 0
        %1859 = vmatpush1.bf16.msra.mxu0 0
        %1860 = vmatprep.subr.bf16.mxu0 0
        %1861 = vmatpush1.bf16.msra.mxu0 0
        %1862 = vmatprep.subr.bf16.mxu0 0
        %1863 = vmatpush1.bf16.msra.mxu0 0
        %1864 = vmatprep.subr.bf16.mxu0 0
        %1865 = vmatpush1.bf16.msra.mxu0 0
        %1866 = vmatprep.subr.bf16.mxu0 0
        %1867 = vmatpush1.bf16.msra.mxu0 0
        %1868 = vmatprep.subr.bf16.mxu0 0
        %1869 = vmatpush1.bf16.msra.mxu0 0
        %1870 = vmatprep.subr.bf16.mxu0 0
        %1871 = vmatpush1.bf16.msra.mxu0 0
        %1872 = vmatprep.subr.bf16.mxu0 0
        %1873 = vmatpush1.bf16.msra.mxu0 0
        %1874 = vmatprep.mubr.bf16.mxu0 0
        %1875 = vmatmul.mubr.bf16.gmra.mrb[0].mxu0 %v1840
        %v1876 = vpop.f32.mrb[0].mxu0
        %v1877 = vadd.f32 0.0, %v1876
        %v1878 = vpop.f32.mrb[0].mxu0
        %v1879 = vpop.f32.mrb[0].mxu0
        %v1880 = vpop.f32.mrb[0].mxu0
        %1881 = vdwg.mxu0
        %v1882 = vmul.f32 %v1837, %v1877
        %v1883 = vadd.f32 %v1804, %v1882
        %1885 = vrot.lane.b32.xlu0 %v1883, 24
        %v1886 = vpop.permute.xlu0 %1885
        %vm1888 = vcmask 261312
        %1889 = vst.msk [vmem:[#allocation2] sm:$0xff] %vm1888, %v1886
        %v1890 = vld [vmem:[#allocation2] sm:$0xff]
        %v1891 = vpack.c.bf16 %v1890, %v1890
        %v1892 = vld [vmem:[%s8] sm:$0xf]
        %v1893 = vld [vmem:[%s8 + $0x4] sm:$0xf]
        %v1894 = vld [vmem:[%s8 + $0x8] sm:$0xf]
        %v1895 = vld [vmem:[%s8 + $0xc] sm:$0xf]
        %v1896 = vld [vmem:[%s9] sm:$0x1]
        %v1898 = vlaneseq
        %v1899 = vshrl.u32 %v1898, 7
        %v1900 = vsub.s32 0, %v1899
        %v1901 = vrot.slane %v1896, %v1900
        %v1907 = vunpack.c.l.b16 %v1892
        %v1908 = vunpack.c.l.b16 %v1893
        %v1909 = vunpack.c.l.b16 %v1894
        %v1910 = vunpack.c.l.b16 %v1895
        %v1911 = vpack.c.b16 %v1908, %v1907
        %v1912 = vpack.c.b16 %v1910, %v1909
        %vm1915 = vcmask 261120
        %v1917 = vsel %vm1915, %v1891, 0
        %1919 = vmatprep.subr.bf16.mxu0 0
        %1920 = vmatpush1.bf16.msra.mxu0 %v1911
        %1921 = vmatprep.subr.bf16.mxu0 0
        %1922 = vmatpush1.bf16.msra.mxu0 %v1912
        %1923 = vmatprep.subr.bf16.mxu0 0
        %1924 = vmatpush1.bf16.msra.mxu0 0
        %1925 = vmatprep.subr.bf16.mxu0 0
        %1926 = vmatpush1.bf16.msra.mxu0 0
        %1927 = vmatprep.subr.bf16.mxu0 0
        %1928 = vmatpush1.bf16.msra.mxu0 0
        %1929 = vmatprep.subr.bf16.mxu0 0
        %1930 = vmatpush1.bf16.msra.mxu0 0
        %1931 = vmatprep.subr.bf16.mxu0 0
        %1932 = vmatpush1.bf16.msra.mxu0 0
        %1933 = vmatprep.subr.bf16.mxu0 0
        %1934 = vmatpush1.bf16.msra.mxu0 0
        %1935 = vmatprep.subr.bf16.mxu0 0
        %1936 = vmatpush1.bf16.msra.mxu0 0
        %1937 = vmatprep.subr.bf16.mxu0 0
        %1938 = vmatpush1.bf16.msra.mxu0 0
        %1939 = vmatprep.subr.bf16.mxu0 0
        %1940 = vmatpush1.bf16.msra.mxu0 0
        %1941 = vmatprep.subr.bf16.mxu0 0
        %1942 = vmatpush1.bf16.msra.mxu0 0
        %1943 = vmatprep.subr.bf16.mxu0 0
        %1944 = vmatpush1.bf16.msra.mxu0 0
        %1945 = vmatprep.subr.bf16.mxu0 0
        %1946 = vmatpush1.bf16.msra.mxu0 0
        %1947 = vmatprep.subr.bf16.mxu0 0
        %1948 = vmatpush1.bf16.msra.mxu0 0
        %1949 = vmatprep.subr.bf16.mxu0 0
        %1950 = vmatpush1.bf16.msra.mxu0 0
        %1951 = vmatprep.mubr.bf16.mxu0 0
        %1952 = vmatmul.mubr.bf16.gmra.mrb[0].mxu0 %v1917
        %v1953 = vpop.f32.mrb[0].mxu0
        %v1954 = vadd.f32 %v1901, %v1953
        %v1955 = vpop.f32.mrb[0].mxu0
        %v1956 = vpop.f32.mrb[0].mxu0
        %v1957 = vpop.f32.mrb[0].mxu0
        %1958 = vdwg.mxu0
        %v1959 = vadd.f32 %v640, %v1954
        %v1960 = vsel %vm1915, %v1959, 0.0
        %1961 = vadd.xlane.f32.xlu0 %v1960
        %v1962 = vpop.xlane.xlu0 %1961
        %v1963 = vrcp.pop 32.0
        %v1964 = vmul.f32 %v1962, %v1963
        %v1965 = vsub.f32 %v1959, %v1964
        %v1966 = vmul.f32 %v1965, %v1965
        %v1967 = vsel %vm1915, %v1966, 0.0
        %1968 = vadd.xlane.f32.xlu0 %v1967
        %v1969 = vpop.xlane.xlu0 %1968
        %v1970 = vmul.f32 %v1969, %v1963
        %v1971 = vadd.f32 %v1970, 1e-05
        %v1972 = vrsqrt.pop %v1971
        %v1973 = vmul.f32 %v1965, %v1972
        %v1974 = vld [vmem:[%s10] sm:$0x1]
        %v1976 = vlaneseq
        %v1977 = vshrl.u32 %v1976, 7
        %v1978 = vsub.s32 0, %v1977
        %v1979 = vrot.slane %v1974, %v1978
        %v1981 = vmul.f32 %v1973, %v1979
        %v1982 = vld [vmem:[%s11] sm:$0x1]
        %v1984 = vlaneseq
        %v1985 = vshrl.u32 %v1984, 7
        %v1986 = vsub.s32 0, %v1985
        %v1987 = vrot.slane %v1982, %v1986
        %v1989 = vadd.f32 %v1981, %v1987
        %v1990 = vpack.c.bf16 %v1989, %v1989
        %v1991 = vld [vmem:[%s12] sm:$0xf]
        %v1992 = vld [vmem:[%s12 + $0x4] sm:$0xf]
        %v1993 = vld [vmem:[%s12 + $0x8] sm:$0xf]
        %v1994 = vld [vmem:[%s12 + $0xc] sm:$0xf]
        %v1995 = vld [vmem:[%s13] sm:$0x1]
        %v1997 = vlaneseq
        %v1998 = vshrl.u32 %v1997, 7
        %v1999 = vsub.s32 0, %v1998
        %v2000 = vrot.slane %v1995, %v1999
        %v2006 = vunpack.c.l.b16 %v1991
        %v2007 = vunpack.c.l.b16 %v1992
        %v2008 = vunpack.c.l.b16 %v1993
        %v2009 = vunpack.c.l.b16 %v1994
        %v2010 = vpack.c.b16 %v2007, %v2006
        %v2011 = vpack.c.b16 %v2009, %v2008
        %v2015 = vsel %vm1915, %v1990, 0
        %2017 = vmatprep.subr.bf16.mxu0 0
        %2018 = vmatpush1.bf16.msra.mxu0 %v2010
        %2019 = vmatprep.subr.bf16.mxu0 0
        %2020 = vmatpush1.bf16.msra.mxu0 %v2011
        %2021 = vmatprep.subr.bf16.mxu0 0
        %2022 = vmatpush1.bf16.msra.mxu0 0
        %2023 = vmatprep.subr.bf16.mxu0 0
        %2024 = vmatpush1.bf16.msra.mxu0 0
        %2025 = vmatprep.subr.bf16.mxu0 0
        %2026 = vmatpush1.bf16.msra.mxu0 0
        %2027 = vmatprep.subr.bf16.mxu0 0
        %2028 = vmatpush1.bf16.msra.mxu0 0
        %2029 = vmatprep.subr.bf16.mxu0 0
        %2030 = vmatpush1.bf16.msra.mxu0 0
        %2031 = vmatprep.subr.bf16.mxu0 0
        %2032 = vmatpush1.bf16.msra.mxu0 0
        %2033 = vmatprep.subr.bf16.mxu0 0
        %2034 = vmatpush1.bf16.msra.mxu0 0
        %2035 = vmatprep.subr.bf16.mxu0 0
        %2036 = vmatpush1.bf16.msra.mxu0 0
        %2037 = vmatprep.subr.bf16.mxu0 0
        %2038 = vmatpush1.bf16.msra.mxu0 0
        %2039 = vmatprep.subr.bf16.mxu0 0
        %2040 = vmatpush1.bf16.msra.mxu0 0
        %2041 = vmatprep.subr.bf16.mxu0 0
        %2042 = vmatpush1.bf16.msra.mxu0 0
        %2043 = vmatprep.subr.bf16.mxu0 0
        %2044 = vmatpush1.bf16.msra.mxu0 0
        %2045 = vmatprep.subr.bf16.mxu0 0
        %2046 = vmatpush1.bf16.msra.mxu0 0
        %2047 = vmatprep.subr.bf16.mxu0 0
        %2048 = vmatpush1.bf16.msra.mxu0 0
        %2049 = vmatprep.mubr.bf16.mxu0 0
        %2050 = vmatmul.mubr.bf16.gmra.mrb[0].mxu0 %v2015
        %v2051 = vpop.f32.mrb[0].mxu0
        %v2052 = vadd.f32 %v2000, %v2051
        %v2053 = vpop.f32.mrb[0].mxu0
        %v2054 = vpop.f32.mrb[0].mxu0
        %v2055 = vpop.f32.mrb[0].mxu0
        %2056 = vdwg.mxu0
        %v2057 = vmul.f32 %v2052, 0.5
        %v2058 = vmul.f32 %v2052, 0.044715
        %v2059 = vmul.f32 %v2058, %v2052
        %v2060 = vmul.f32 %v2059, %v2052
        %v2061 = vadd.f32 %v2052, %v2060
        %v2062 = vmul.f32 %v2061, 0.7978846
        %v2063 = vtanh.pop %v2062
        %v2064 = vadd.f32 %v2063, 1.0
        %v2065 = vmul.f32 %v2057, %v2064
        %v2066 = vpack.c.bf16 %v2065, %v2065
        %v2067 = vld [vmem:[%s14] sm:$0xf]
        %v2068 = vld [vmem:[%s14 + $0x4] sm:$0xf]
        %v2069 = vld [vmem:[%s14 + $0x8] sm:$0xf]
        %v2070 = vld [vmem:[%s14 + $0xc] sm:$0xf]
        %v2071 = vld [vmem:[%s14 + $0x10] sm:$0xf]
        %v2072 = vld [vmem:[%s14 + $0x14] sm:$0xf]
        %v2073 = vld [vmem:[%s14 + $0x18] sm:$0xf]
        %v2074 = vld [vmem:[%s14 + $0x1c] sm:$0xf]
        %v2075 = vld [vmem:[%s14 + $0x20] sm:$0xf]
        %v2076 = vld [vmem:[%s14 + $0x24] sm:$0xf]
        %v2077 = vld [vmem:[%s14 + $0x28] sm:$0xf]
        %v2078 = vld [vmem:[%s14 + $0x2c] sm:$0xf]
        %v2079 = vld [vmem:[%s14 + $0x30] sm:$0xf]
        %v2080 = vld [vmem:[%s14 + $0x34] sm:$0xf]
        %v2081 = vld [vmem:[%s14 + $0x38] sm:$0xf]
        %v2082 = vld [vmem:[%s14 + $0x3c] sm:$0xf]
        %v2083 = vld [vmem:[%s15] sm:$0x1]
        %v2085 = vlaneseq
        %v2086 = vshrl.u32 %v2085, 7
        %v2087 = vsub.s32 0, %v2086
        %v2088 = vrot.slane %v2083, %v2087
        %v2106 = vunpack.c.l.b16 %v2067
        %v2107 = vunpack.c.l.b16 %v2068
        %v2108 = vunpack.c.l.b16 %v2069
        %v2109 = vunpack.c.l.b16 %v2070
        %v2110 = vunpack.c.l.b16 %v2071
        %v2111 = vunpack.c.l.b16 %v2072
        %v2112 = vunpack.c.l.b16 %v2073
        %v2113 = vunpack.c.l.b16 %v2074
        %v2114 = vunpack.c.l.b16 %v2075
        %v2115 = vunpack.c.l.b16 %v2076
        %v2116 = vunpack.c.l.b16 %v2077
        %v2117 = vunpack.c.l.b16 %v2078
        %v2118 = vunpack.c.l.b16 %v2079
        %v2119 = vunpack.c.l.b16 %v2080
        %v2120 = vunpack.c.l.b16 %v2081
        %v2121 = vunpack.c.l.b16 %v2082
        %v2122 = vpack.c.b16 %v2107, %v2106
        %v2123 = vpack.c.b16 %v2109, %v2108
        %v2124 = vpack.c.b16 %v2111, %v2110
        %v2125 = vpack.c.b16 %v2113, %v2112
        %v2126 = vpack.c.b16 %v2115, %v2114
        %v2127 = vpack.c.b16 %v2117, %v2116
        %v2128 = vpack.c.b16 %v2119, %v2118
        %v2129 = vpack.c.b16 %v2121, %v2120
        %2138 = vmatprep.subr.bf16.mxu0 0
        %2139 = vmatpush1.bf16.msra.mxu0 %v2122
        %2140 = vmatprep.subr.bf16.mxu0 0
        %2141 = vmatpush1.bf16.msra.mxu0 %v2123
        %2142 = vmatprep.subr.bf16.mxu0 0
        %2143 = vmatpush1.bf16.msra.mxu0 %v2124
        %2144 = vmatprep.subr.bf16.mxu0 0
        %2145 = vmatpush1.bf16.msra.mxu0 %v2125
        %2146 = vmatprep.subr.bf16.mxu0 0
        %2147 = vmatpush1.bf16.msra.mxu0 %v2126
        %2148 = vmatprep.subr.bf16.mxu0 0
        %2149 = vmatpush1.bf16.msra.mxu0 %v2127
        %2150 = vmatprep.subr.bf16.mxu0 0
        %2151 = vmatpush1.bf16.msra.mxu0 %v2128
        %2152 = vmatprep.subr.bf16.mxu0 0
        %2153 = vmatpush1.bf16.msra.mxu0 %v2129
        %2154 = vmatprep.subr.bf16.mxu0 0
        %2155 = vmatpush1.bf16.msra.mxu0 0
        %2156 = vmatprep.subr.bf16.mxu0 0
        %2157 = vmatpush1.bf16.msra.mxu0 0
        %2158 = vmatprep.subr.bf16.mxu0 0
        %2159 = vmatpush1.bf16.msra.mxu0 0
        %2160 = vmatprep.subr.bf16.mxu0 0
        %2161 = vmatpush1.bf16.msra.mxu0 0
        %2162 = vmatprep.subr.bf16.mxu0 0
        %2163 = vmatpush1.bf16.msra.mxu0 0
        %2164 = vmatprep.subr.bf16.mxu0 0
        %2165 = vmatpush1.bf16.msra.mxu0 0
        %2166 = vmatprep.subr.bf16.mxu0 0
        %2167 = vmatpush1.bf16.msra.mxu0 0
        %2168 = vmatprep.subr.bf16.mxu0 0
        %2169 = vmatpush1.bf16.msra.mxu0 0
        %2170 = vmatprep.mubr.bf16.mxu0 0
        %2171 = vmatmul.mubr.bf16.gmra.mrb[0].mxu0 %v2066
        %v2172 = vpop.f32.mrb[0].mxu0
        %v2173 = vadd.f32 %v2088, %v2172
        %v2174 = vpop.f32.mrb[0].mxu0
        %v2175 = vpop.f32.mrb[0].mxu0
        %v2176 = vpop.f32.mrb[0].mxu0
        %2177 = vdwg.mxu0
        %v2178 = vadd.f32 %v1959, %v2173
        %2179 = vst.msk [vmem:[%s620] sm:$0xff] %vm1915, %v2178
        %s2180 = sand.u32 %s410, 1
        %s2181 = scalar_lea.sflag [#allocation4], %s2180
        %s2182 = sand.u32 %s410, 1
        %s2183 = smul.addr %s2182, 8
        %s2184 = scalar_lea.vmem [#allocation11], %s2183
        // Predicated region
        $region101: #{gsa_transformer_block.3} parent=83 // pred_check
          %p2185 = pneg %p420
        $region102: #{gsa_transformer_block.3} parent=83 // pred_check_branch
          %2187 = sbr.rel (%p2185) target = $region104
        $region103: #{gsa_transformer_block.3} parent=83 // pred_region
          %s2189 = ssub.s32 128, 128
          %2190 = vsyncadd %s2181, %s2189
          %s2191 = sadd.s32 %s38, %s37
          %s2192 = smul.addr %s2191, 128
          %s2193 = scalar_lea.hbm %s16, %s2192
          %s2195 = sshll.u32 %s2184, 4
          %s2196 = int_to_ptr.vmem [resolvable:$true] %s2195
          %2198 = dma.vmem_to_hbm [thread:$0]  %s2196, 128, %s2193, %s2181
        $region104: #{gsa_transformer_block.3} parent=83 // pred_fallthru
          _
      $region84: #{gsa_transformer_block.3} parent=5 // pred_fallthru
        _
      %p2199 = scmp.le.s32.totalorder 2, %s28
      // Predicated region
      $region105: #{gsa_transformer_block.3} parent=5 // pred_check
        %p2200 = pneg %p2199
      $region106: #{gsa_transformer_block.3} parent=5 // pred_check_branch
        %2202 = sbr.rel (%p2200) target = $region108
      $region107: #{gsa_transformer_block.3} parent=5 // pred_region
        %s2203 = ssub.s32 %s28, 2
        // Predicated region
        $region109: #{gsa_transformer_block.3} parent=107 // pred_check
          %p2204 = pneg %p426
        $region110: #{gsa_transformer_block.3} parent=107 // pred_check_branch
          %2206 = sbr.rel (%p2204) target = $region112
        $region111: #{gsa_transformer_block.3} parent=107 // pred_region
          %s2207 = sand.u32 %s411, 1
          %s2208 = scalar_lea.sflag [#allocation4], %s2207
          %s2209 = sand.u32 %s411, 1
          %s2210 = smul.addr %s2209, 8
          %s2211 = scalar_lea.vmem [#allocation11], %s2210
          %2212 = dma.done %s2208, 128
        $region112: #{gsa_transformer_block.3} parent=107 // pred_fallthru
          _
      $region108: #{gsa_transformer_block.3} parent=5 // pred_fallthru
        _
    $region6: #{gsa_transformer_block.3} parent=1 // loop_footer
      %s32 = sadd.s32 1, %s28
    $region7: #{gsa_transformer_block.3} parent=1 // loop_footer_branch
      %27 = sbr.rel target = $region3
    $region8: #{gsa_transformer_block.3} parent=1 // loop_exit
      _
    %2213 = vsyncpa [#allocation4], 1
    %s2214 = scalar_lea.sflag [#allocation4], 1
    %2215 = vsyncpa %s2214, 1
    %2216 = vsyncpa [#allocation5], 1
    %s2217 = scalar_lea.sflag [#allocation5], 1
    %2218 = vsyncpa %s2217, 1
    %2219 = vsyncpa [#allocation7], 1
    %2220 = vsyncpa [#allocation10], 1

</llo_original>
